<compile_context>
chip_gen: v7x
topology: tpu7x:2x2x1
jax: 0.10.0
libtpu: 0.0.40
codegen_flags: <defaults>
</compile_context>

<pallas_src>
import numpy as np
import jax
import jax.numpy as jnp
from jax import lax
from jax.experimental import pallas as pl
from jax.experimental.pallas import tpu as pltpu


# ----------------------------- Pallas kernel ------------------------------ #
def _spectral_info_kernel(x_ref, wfft_ref, we_ref, be_ref, wp_ref, bp_ref,
                          wu_ref, bu_ref, wd_ref, bd_ref, wr_ref, br_ref,
                          rec_ref, normed_ref):
    f32 = jnp.float32
    x = x_ref[...]                                            # (TM, W*H)

    # |rfft2(patch)| via one fused real/imag DFT matmul: [re | im] = x @ [Wre|Wim]
    # HIGHEST precision only on this matmul (it sets the 1e-3 accuracy budget).
    ri = jnp.dot(x, wfft_ref[...], precision=lax.Precision.HIGHEST,
                 preferred_element_type=f32)                  # (TM, 2*FP)
    fp = ri.shape[-1] // 2
    re = ri[:, :fp]
    im = ri[:, fp:]
    s = re * re + im * im                                     # |X|^2, computed once
    raw = jnp.sqrt(s)                                         # (TM, FP)

    # per-patch L2 norm; rsqrt keeps the divides on the (otherwise idle) EUP
    sum_s = jnp.sum(s, axis=-1, keepdims=True)                # == ||raw||^2
    norms = jnp.sqrt(sum_s)                                   # (TM, 1)
    normed = raw * lax.rsqrt(sum_s + 1e-24)                   # ~ raw / (norms + 1e-12)
    normed_ref[...] = normed

    # encoder MLP: default precision (native bf16 MXU passes), f32 accumulation
    e = jnp.dot(normed, we_ref[...], preferred_element_type=f32) + be_ref[...]
    p = jnp.dot(e, wp_ref[...], preferred_element_type=f32) + bp_ref[...]
    u = jnp.dot(p, wu_ref[...], preferred_element_type=f32) + bu_ref[...]

    # TODO(synk): sparse_softmax(x, normalize=True) forward assumed to be a
    # hard one-hot at the (first) argmax.
    C = u.shape[-1]
    mx = jnp.max(u, axis=-1, keepdims=True)
    iota = lax.broadcasted_iota(jnp.int32, u.shape, 1)
    cand = jnp.where(u == mx, iota, C)                        # first max index
    idx = jnp.min(cand, axis=-1, keepdims=True)
    one_hot = (iota == idx).astype(f32)

    # decoder: one_hot @ Wd is an exact row select at any MXU precision
    d = jnp.dot(one_hot, wd_ref[...], preferred_element_type=f32) + bd_ref[...]
    r = jnp.dot(d, wr_ref[...], preferred_element_type=f32) + br_ref[...]
    sum_r2 = jnp.sum(r * r, axis=-1, keepdims=True)
    # TODO(synk): unit_norm() source not provided; epsilon assumed ~1e-8
    recon = r * lax.rsqrt(sum_r2 + 1e-16)
    rec_ref[...] = recon * norms


# ------------------------------- glue code -------------------------------- #
def make_rfft2_fused(w, h):
    """Fused DFT matrix [Wre | Wim] of shape (w*h, 2*(w//2+1)*h) so that
    abs(flat_patch @ Wre + i * flat_patch @ Wim)
      == abs(torch.fft.rfft2(patch, dim=(-1,-2))).flatten()   (kw*h + kh order)."""
    m = np.arange(w)[:, None, None, None]
    n = np.arange(h)[None, :, None, None]
    kw = np.arange(w // 2 + 1)[None, None, :, None]
    kh = np.arange(h)[None, None, None, :]
    theta = 2.0 * np.pi * (kw * m / w + kh * n / h)           # (w, h, w//2+1, h)
    fp = (w // 2 + 1) * h
    wre = np.cos(theta).reshape(w * h, fp)
    wim = (-np.sin(theta)).reshape(w * h, fp)
    return jnp.asarray(np.concatenate([wre, wim], axis=1), jnp.float32)


def extract_patches(spec, w, h, ws, hs):
    """torch .unfold(1, w, ws).unfold(2, h, hs) -> (B, n1, n2, w, h), built
    from strided slices + stacks (no gather HLO)."""
    B, F_, T = spec.shape
    n1 = (F_ - w) // ws + 1
    n2 = (T - h) // hs + 1
    rows = jnp.stack(
        [spec[:, a:a + (n1 - 1) * ws + 1:ws, :] for a in range(w)], axis=2)
    # rows: (B, n1, w, T) with rows[b, i, a, t] = spec[b, i*ws + a, t]
    cols = jnp.stack(
        [rows[..., b0:b0 + (n2 - 1) * hs + 1:hs] for b0 in range(h)], axis=-1)
    # cols: (B, n1, w, n2, h)
    p = jnp.transpose(cols, (0, 1, 3, 2, 4))                  # (B, n1, n2, w, h)
    return p, n1, n2


def _choose_tm(m, tm_max=512):
    """Row tile: large enough to feed the MXU (<= tm_max, 128-multiple when
    big), while keeping >= 4 grid steps (pipeline overlap + both v7x
    TensorCores) when the problem allows.  Tiny problems get one full block."""
    if m <= 32:
        return int(m)                 # single full-extent block, no ragged edge
    if m >= 4 * tm_max:
        return tm_max
    t = max(8, pl.cdiv(m, 4))
    t = pl.cdiv(t, 128) * 128 if t > 128 else pl.cdiv(t, 8) * 8
    return int(min(t, tm_max))


def init_params(key, full_patch, emb, n_centroids):
    ks = jax.random.split(key, 5)
    std = 0.02
    f32 = jnp.float32
    We = (jax.random.normal(ks[0], (full_patch, emb)) * std).astype(f32)
    be = jnp.zeros((1, emb), f32)
    Wp = (jax.random.normal(ks[1], (emb, emb)) * std).astype(f32)
    bp = jnp.zeros((1, emb), f32)
    Wu = (jax.random.normal(ks[2], (emb, n_centroids)) * std).astype(f32)
    bu = jnp.zeros((1, n_centroids), f32)
    Wd = (jax.random.normal(ks[3], (n_centroids, emb)) * std).astype(f32)
    bd = jnp.zeros((1, emb), f32)
    Wr = (jax.random.normal(ks[4], (emb, full_patch)) * std).astype(f32)
    br = jnp.zeros((1, full_patch), f32)
    return (We, be, Wp, bp, Wu, bu, Wd, bd, Wr, br)


def spectral_info_forward(signal, params, *, patch_size=(16, 16),
                          patch_step=(8, 8), start_channels=32, tm=None):
    """signal: (B, frames, start_channels) -- the `signal.shape[1] != 1` branch
    of SpectralInfoLoss.encode/forward.  Returns (normed_recon, normed), each
    of shape (B, n_patches, full_patch)."""
    w, h = patch_size
    ws, hs = patch_step
    full_patch = (w // 2 + 1) * h

    frames = signal.shape[1]
    spec = signal.reshape(-1, frames, start_channels).astype(jnp.float32)
    Bspec = spec.shape[0]

    p, n1, n2 = extract_patches(spec, w, h, ws, hs)           # (B, n1, n2, w, h)
    P = n1 * n2
    patches = p.reshape(Bspec * P, w * h)                     # (M, w*h)
    M = patches.shape[0]

    wfft = make_rfft2_fused(w, h)                             # (w*h, 2*full_patch)
    weights = (wfft,) + tuple(params)

    if tm is None:
        tm = _choose_tm(M)
    grid = (pl.cdiv(M, tm),)   # ragged last tile handled by Pallas block padding

    row_in = pl.BlockSpec((tm, w * h), lambda i: (i, 0))
    resident = lambda a: pl.BlockSpec(a.shape, lambda i: (0, 0))   # weights stay in VMEM
    out_spec = pl.BlockSpec((tm, full_patch), lambda i: (i, 0))

    rec, normed = pl.pallas_call(
        _spectral_info_kernel,
        out_shape=(jax.ShapeDtypeStruct((M, full_patch), jnp.float32),
                   jax.ShapeDtypeStruct((M, full_patch), jnp.float32)),
        grid_spec=pltpu.PrefetchScalarGridSpec(
            num_scalar_prefetch=0,
            grid=grid,
            in_specs=[row_in] + [resident(a) for a in weights],
            out_specs=[out_spec, out_spec]),
        compiler_params=pltpu.CompilerParams(
            dimension_semantics=("parallel",)),
    )(patches, *weights)

    return (rec.reshape(Bspec, P, full_patch),
            normed.reshape(Bspec, P, full_patch))


def multiband_spectral_info_forward(bands, band_params, band_cfg):
    """MultiBandSpectralInfoLoss.forward given pre-decomposed band signals.
    TODO(synk): fft_frequency_decompose() source not provided; bands must be
    supplied already decomposed (dict band_size -> (B, frames, start_channels)).
    Returns (recon, target), each (B, -1) concatenated over bands."""
    recs, tgts = [], []
    for k in bands:
        nr, nm = spectral_info_forward(bands[k], band_params[k], **band_cfg[k])
        recs.append(nr.reshape(nr.shape[0], -1))
        tgts.append(nm.reshape(nm.shape[0], -1))
    return jnp.concatenate(recs, axis=-1), jnp.concatenate(tgts, axis=-1)


# --------------------------------- main ------------------------------------ #
if __name__ == "__main__":
    # Small config consistent with the module: stft_window_size=62 ->
    # start_channels = 62 // 2 + 1 = 32; patch_size=(16,16), patch_step=(8,8),
    # embedding_channels=32, n_centroids=128.  Two bands emulate the MultiBand
    # wrapper (bands supplied pre-decomposed).
    B, frames, start_channels = 2, 24, 32
    patch_size, patch_step = (16, 16), (8, 8)
    emb, n_centroids = 32, 128
    w, h = patch_size
    ws, hs = patch_step
    full_patch = (w // 2 + 1) * h                             # 144

    key = jax.random.PRNGKey(0)
    k_b0, k_b1, k_p0, k_p1 = jax.random.split(key, 4)
    bands = {
        512: jax.random.normal(k_b0, (B, frames, start_channels), jnp.float32),
        1024: jax.random.normal(k_b1, (B, frames, start_channels), jnp.float32),
    }
    band_params = {512: init_params(k_p0, full_patch, emb, n_centroids),
                   1024: init_params(k_p1, full_patch, emb, n_centroids)}
    cfg = dict(patch_size=patch_size, patch_step=patch_step,
               start_channels=start_channels)
    band_cfg = {512: cfg, 1024: cfg}

    recon_cat, target_cat = multiband_spectral_info_forward(
        bands, band_params, band_cfg)
    jax.block_until_ready((recon_cat, target_cat))

    # Per-band sanity: kernel's fused-DFT |rfft2| + normalization vs a numpy
    # reference built with explicit torch-unfold semantics.
    n1 = (frames - w) // ws + 1
    n2 = (start_channels - h) // hs + 1
    P = n1 * n2
    for k, sig in bands.items():
        normed_recon, normed = spectral_info_forward(sig, band_params[k], **cfg)
        jax.block_until_ready((normed_recon, normed))
        sig_np = np.asarray(sig)
        pt = np.zeros((B, n1, n2, w, h), np.float32)
        for i in range(n1):
            for j in range(n2):
                pt[:, i, j] = sig_np[:, i * ws:i * ws + w, j * hs:j * hs + h]
        ref = np.abs(np.fft.fft(np.fft.rfft(pt, axis=-2), axis=-1))
        ref = ref.reshape(B, P, full_patch)
        ref_normed = ref / (np.sqrt((ref * ref).sum(-1, keepdims=True)) + 1e-12)
        assert normed.shape == (B, P, full_patch)
        assert normed_recon.shape == (B, P, full_patch)
        assert np.allclose(np.asarray(normed), ref_normed, atol=1e-3)
        assert np.isfinite(np.asarray(normed_recon)).all()

    assert recon_cat.shape == (B, 2 * P * full_patch)
    assert target_cat.shape == (B, 2 * P * full_patch)
    print("KERNEL_OK")
</pallas_src>

<mosaic_0001>
module attributes {stable_mosaic.version = 11 : i64} {
  func.func @_spectral_info_kernel(%arg0: i32, %arg1: memref<12x256xf32, #tpu.memory_space<vmem>>, %arg2: memref<256x288xf32, #tpu.memory_space<vmem>>, %arg3: memref<144x32xf32, #tpu.memory_space<vmem>>, %arg4: memref<1x32xf32, #tpu.memory_space<vmem>>, %arg5: memref<32x32xf32, #tpu.memory_space<vmem>>, %arg6: memref<1x32xf32, #tpu.memory_space<vmem>>, %arg7: memref<32x128xf32, #tpu.memory_space<vmem>>, %arg8: memref<1x128xf32, #tpu.memory_space<vmem>>, %arg9: memref<128x32xf32, #tpu.memory_space<vmem>>, %arg10: memref<1x32xf32, #tpu.memory_space<vmem>>, %arg11: memref<32x144xf32, #tpu.memory_space<vmem>>, %arg12: memref<1x144xf32, #tpu.memory_space<vmem>>, %arg13: memref<12x144xf32, #tpu.memory_space<vmem>>, %arg14: memref<12x144xf32, #tpu.memory_space<vmem>>) attributes {dimension_semantics = [#tpu.dimension_semantics<parallel>], iteration_bounds = array<i64: 1>, scalar_prefetch = 0 : i64, scratch_operands = 0 : i64, tpu.core_type = #tpu.core_type<tc>, window_params = [{transform_indices = @transform_0, window_bounds = array<i64: 12, 256>}, {pipeline_mode = #tpu.pipeline_mode<synchronous>, transform_indices = @transform_1, window_bounds = array<i64: 256, 288>}, {pipeline_mode = #tpu.pipeline_mode<synchronous>, transform_indices = @transform_2, window_bounds = array<i64: 144, 32>}, {pipeline_mode = #tpu.pipeline_mode<synchronous>, transform_indices = @transform_3, window_bounds = array<i64: 1, 32>}, {pipeline_mode = #tpu.pipeline_mode<synchronous>, transform_indices = @transform_4, window_bounds = array<i64: 32, 32>}, {pipeline_mode = #tpu.pipeline_mode<synchronous>, transform_indices = @transform_5, window_bounds = array<i64: 1, 32>}, {pipeline_mode = #tpu.pipeline_mode<synchronous>, transform_indices = @transform_6, window_bounds = array<i64: 32, 128>}, {pipeline_mode = #tpu.pipeline_mode<synchronous>, transform_indices = @transform_7, window_bounds = array<i64: 1, 128>}, {pipeline_mode = #tpu.pipeline_mode<synchronous>, transform_indices = @transform_8, window_bounds = array<i64: 128, 32>}, {pipeline_mode = #tpu.pipeline_mode<synchronous>, transform_indices = @transform_9, window_bounds = array<i64: 1, 32>}, {pipeline_mode = #tpu.pipeline_mode<synchronous>, transform_indices = @transform_10, window_bounds = array<i64: 32, 144>}, {pipeline_mode = #tpu.pipeline_mode<synchronous>, transform_indices = @transform_11, window_bounds = array<i64: 1, 144>}, {transform_indices = @transform_12, window_bounds = array<i64: 12, 144>}, {transform_indices = @transform_13, window_bounds = array<i64: 12, 144>}]} {
    %c0 = arith.constant 0 : index
    %c0_0 = arith.constant 0 : index
    %0 = vector.load %arg1[%c0, %c0_0] : memref<12x256xf32, #tpu.memory_space<vmem>>, vector<12x256xf32>
    %c0_1 = arith.constant 0 : index
    %c0_2 = arith.constant 0 : index
    %1 = vector.load %arg2[%c0_1, %c0_2] : memref<256x288xf32, #tpu.memory_space<vmem>>, vector<256x288xf32>
    %cst = arith.constant dense<0.000000e+00> : vector<12x288xf32>
    %2 = tpu.matmul %0, %1, %cst {dimension_numbers = #tpu.dot_dimension_numbers<[1], [0], [0], [1], [0, 0, 1, 1], [], []>, precision = #tpu.contract_precision<fp32>} : vector<12x256xf32>, vector<256x288xf32>, vector<12x288xf32> -> vector<12x288xf32>
    %3 = vector.extract_strided_slice %2 {offsets = [0, 0], sizes = [12, 144], strides = [1, 1]} : vector<12x288xf32> to vector<12x144xf32>
    %4 = vector.extract_strided_slice %2 {offsets = [0, 144], sizes = [12, 144], strides = [1, 1]} : vector<12x288xf32> to vector<12x144xf32>
    %5 = arith.mulf %3, %3 : vector<12x144xf32>
    %6 = arith.mulf %4, %4 : vector<12x144xf32>
    %7 = arith.addf %5, %6 : vector<12x144xf32>
    %8 = math.sqrt %7 : vector<12x144xf32>
    %cst_3 = arith.constant dense<0.000000e+00> : vector<12xf32>
    %9 = vector.multi_reduction <add>, %7, %cst_3 [1] : vector<12x144xf32> to vector<12xf32>
    %10 = vector.shape_cast %9 : vector<12xf32> to vector<12x1xf32>
    %11 = math.sqrt %10 : vector<12x1xf32>
    %cst_4 = arith.constant 1.000000e-24 : f32
    %12 = vector.broadcast %cst_4 : f32 to vector<12x1xf32>
    %13 = arith.addf %10, %12 : vector<12x1xf32>
    %14 = math.rsqrt %13 : vector<12x1xf32>
    %15 = vector.broadcast %14 : vector<12x1xf32> to vector<12x144xf32>
    %16 = arith.mulf %8, %15 : vector<12x144xf32>
    %c0_5 = arith.constant 0 : index
    %c0_6 = arith.constant 0 : index
    %17 = vector.load %arg14[%c0_5, %c0_6] : memref<12x144xf32, #tpu.memory_space<vmem>>, vector<12x144xf32>
    tpu.vector_store %arg14[%c0_5, %c0_6], %16 {strides = array<i32>} : memref<12x144xf32, #tpu.memory_space<vmem>>, vector<12x144xf32>,
    %c0_7 = arith.constant 0 : index
    %c0_8 = arith.constant 0 : index
    %18 = vector.load %arg3[%c0_7, %c0_8] : memref<144x32xf32, #tpu.memory_space<vmem>>, vector<144x32xf32>
    %cst_9 = arith.constant dense<0.000000e+00> : vector<12x32xf32>
    %19 = tpu.matmul %16, %18, %cst_9 {dimension_numbers = #tpu.dot_dimension_numbers<[1], [0], [0], [1], [0, 0, 1, 1], [], []>} : vector<12x144xf32>, vector<144x32xf32>, vector<12x32xf32> -> vector<12x32xf32>
    %c0_10 = arith.constant 0 : index
    %c0_11 = arith.constant 0 : index
    %20 = vector.load %arg4[%c0_10, %c0_11] : memref<1x32xf32, #tpu.memory_space<vmem>>, vector<1x32xf32>
    %21 = vector.broadcast %20 : vector<1x32xf32> to vector<12x32xf32>
    %22 = arith.addf %19, %21 : vector<12x32xf32>
    %c0_12 = arith.constant 0 : index
    %c0_13 = arith.constant 0 : index
    %23 = vector.load %arg5[%c0_12, %c0_13] : memref<32x32xf32, #tpu.memory_space<vmem>>, vector<32x32xf32>
    %cst_14 = arith.constant dense<0.000000e+00> : vector<12x32xf32>
    %24 = tpu.matmul %22, %23, %cst_14 {dimension_numbers = #tpu.dot_dimension_numbers<[1], [0], [0], [1], [0, 0, 1, 1], [], []>} : vector<12x32xf32>, vector<32x32xf32>, vector<12x32xf32> -> vector<12x32xf32>
    %c0_15 = arith.constant 0 : index
    %c0_16 = arith.constant 0 : index
    %25 = vector.load %arg6[%c0_15, %c0_16] : memref<1x32xf32, #tpu.memory_space<vmem>>, vector<1x32xf32>
    %26 = vector.broadcast %25 : vector<1x32xf32> to vector<12x32xf32>
    %27 = arith.addf %24, %26 : vector<12x32xf32>
    %c0_17 = arith.constant 0 : index
    %c0_18 = arith.constant 0 : index
    %28 = vector.load %arg7[%c0_17, %c0_18] : memref<32x128xf32, #tpu.memory_space<vmem>>, vector<32x128xf32>
    %cst_19 = arith.constant dense<0.000000e+00> : vector<12x128xf32>
    %29 = tpu.matmul %27, %28, %cst_19 {dimension_numbers = #tpu.dot_dimension_numbers<[1], [0], [0], [1], [0, 0, 1, 1], [], []>} : vector<12x32xf32>, vector<32x128xf32>, vector<12x128xf32> -> vector<12x128xf32>
    %c0_20 = arith.constant 0 : index
    %c0_21 = arith.constant 0 : index
    %30 = vector.load %arg8[%c0_20, %c0_21] : memref<1x128xf32, #tpu.memory_space<vmem>>, vector<1x128xf32>
    %31 = vector.broadcast %30 : vector<1x128xf32> to vector<12x128xf32>
    %32 = arith.addf %29, %31 : vector<12x128xf32>
    %cst_22 = arith.constant dense<0xFF800000> : vector<12xf32>
    %33 = vector.multi_reduction <maximumf>, %32, %cst_22 [1] : vector<12x128xf32> to vector<12xf32>
    %34 = vector.shape_cast %33 : vector<12xf32> to vector<12x1xf32>
    %35 = tpu.iota {dimensions = array<i32: 1>} : vector<12x128xi32>
    %36 = vector.broadcast %34 : vector<12x1xf32> to vector<12x128xf32>
    %37 = arith.cmpf oeq, %32, %36 : vector<12x128xf32>
    %c128_i32 = arith.constant 128 : i32
    %38 = vector.broadcast %c128_i32 : i32 to vector<12x128xi32>
    %39 = arith.select %37, %35, %38 : vector<12x128xi1>, vector<12x128xi32>
    %cst_23 = arith.constant dense<2147483647> : vector<12xi32>
    %40 = vector.multi_reduction <minsi>, %39, %cst_23 [1] : vector<12x128xi32> to vector<12xi32>
    %41 = vector.shape_cast %40 : vector<12xi32> to vector<12x1xi32>
    %42 = vector.broadcast %41 : vector<12x1xi32> to vector<12x128xi32>
    %43 = arith.cmpi eq, %35, %42 : vector<12x128xi32>
    %44 = arith.extui %43 : vector<12x128xi1> to vector<12x128xi32>
    %45 = arith.sitofp %44 : vector<12x128xi32> to vector<12x128xf32>
    %c0_24 = arith.constant 0 : index
    %c0_25 = arith.constant 0 : index
    %46 = vector.load %arg9[%c0_24, %c0_25] : memref<128x32xf32, #tpu.memory_space<vmem>>, vector<128x32xf32>
    %cst_26 = arith.constant dense<0.000000e+00> : vector<12x32xf32>
    %47 = tpu.matmul %45, %46, %cst_26 {dimension_numbers = #tpu.dot_dimension_numbers<[1], [0], [0], [1], [0, 0, 1, 1], [], []>} : vector<12x128xf32>, vector<128x32xf32>, vector<12x32xf32> -> vector<12x32xf32>
    %c0_27 = arith.constant 0 : index
    %c0_28 = arith.constant 0 : index
    %48 = vector.load %arg10[%c0_27, %c0_28] : memref<1x32xf32, #tpu.memory_space<vmem>>, vector<1x32xf32>
    %49 = vector.broadcast %48 : vector<1x32xf32> to vector<12x32xf32>
    %50 = arith.addf %47, %49 : vector<12x32xf32>
    %c0_29 = arith.constant 0 : index
    %c0_30 = arith.constant 0 : index
    %51 = vector.load %arg11[%c0_29, %c0_30] : memref<32x144xf32, #tpu.memory_space<vmem>>, vector<32x144xf32>
    %cst_31 = arith.constant dense<0.000000e+00> : vector<12x144xf32>
    %52 = tpu.matmul %50, %51, %cst_31 {dimension_numbers = #tpu.dot_dimension_numbers<[1], [0], [0], [1], [0, 0, 1, 1], [], []>} : vector<12x32xf32>, vector<32x144xf32>, vector<12x144xf32> -> vector<12x144xf32>
    %c0_32 = arith.constant 0 : index
    %c0_33 = arith.constant 0 : index
    %53 = vector.load %arg12[%c0_32, %c0_33] : memref<1x144xf32, #tpu.memory_space<vmem>>, vector<1x144xf32>
    %54 = vector.broadcast %53 : vector<1x144xf32> to vector<12x144xf32>
    %55 = arith.addf %52, %54 : vector<12x144xf32>
    %56 = arith.mulf %55, %55 : vector<12x144xf32>
    %cst_34 = arith.constant dense<0.000000e+00> : vector<12xf32>
    %57 = vector.multi_reduction <add>, %56, %cst_34 [1] : vector<12x144xf32> to vector<12xf32>
    %58 = vector.shape_cast %57 : vector<12xf32> to vector<12x1xf32>
    %cst_35 = arith.constant 1.000000e-16 : f32
    %59 = vector.broadcast %cst_35 : f32 to vector<12x1xf32>
    %60 = arith.addf %58, %59 : vector<12x1xf32>
    %61 = math.rsqrt %60 : vector<12x1xf32>
    %62 = vector.broadcast %61 : vector<12x1xf32> to vector<12x144xf32>
    %63 = arith.mulf %55, %62 : vector<12x144xf32>
    %64 = vector.broadcast %11 : vector<12x1xf32> to vector<12x144xf32>
    %65 = arith.mulf %63, %64 : vector<12x144xf32>
    %c0_36 = arith.constant 0 : index
    %c0_37 = arith.constant 0 : index
    %66 = vector.load %arg13[%c0_36, %c0_37] : memref<12x144xf32, #tpu.memory_space<vmem>>, vector<12x144xf32>
    tpu.vector_store %arg13[%c0_36, %c0_37], %65 {strides = array<i32>} : memref<12x144xf32, #tpu.memory_space<vmem>>, vector<12x144xf32>,
    return
  }
  func.func @transform_0(%arg0: i32) -> (i32, i32) {
    %c0_i32 = arith.constant 0 : i32
    %c0_i32_0 = arith.constant 0 : i32
    return %arg0, %c0_i32 : i32, i32
  }
  func.func @transform_1(%arg0: i32) -> (i32, i32) {
    %c0_i32 = arith.constant 0 : i32
    %c0_i32_0 = arith.constant 0 : i32
    %c0_i32_1 = arith.constant 0 : i32
    return %c0_i32, %c0_i32_0 : i32, i32
  }
  func.func @transform_2(%arg0: i32) -> (i32, i32) {
    %c0_i32 = arith.constant 0 : i32
    %c0_i32_0 = arith.constant 0 : i32
    %c0_i32_1 = arith.constant 0 : i32
    return %c0_i32, %c0_i32_0 : i32, i32
  }
  func.func @transform_3(%arg0: i32) -> (i32, i32) {
    %c0_i32 = arith.constant 0 : i32
    %c0_i32_0 = arith.constant 0 : i32
    %c0_i32_1 = arith.constant 0 : i32
    return %c0_i32, %c0_i32_0 : i32, i32
  }
  func.func @transform_4(%arg0: i32) -> (i32, i32) {
    %c0_i32 = arith.constant 0 : i32
    %c0_i32_0 = arith.constant 0 : i32
    %c0_i32_1 = arith.constant 0 : i32
    return %c0_i32, %c0_i32_0 : i32, i32
  }
  func.func @transform_5(%arg0: i32) -> (i32, i32) {
    %c0_i32 = arith.constant 0 : i32
    %c0_i32_0 = arith.constant 0 : i32
    %c0_i32_1 = arith.constant 0 : i32
    return %c0_i32, %c0_i32_0 : i32, i32
  }
  func.func @transform_6(%arg0: i32) -> (i32, i32) {
    %c0_i32 = arith.constant 0 : i32
    %c0_i32_0 = arith.constant 0 : i32
    %c0_i32_1 = arith.constant 0 : i32
    return %c0_i32, %c0_i32_0 : i32, i32
  }
  func.func @transform_7(%arg0: i32) -> (i32, i32) {
    %c0_i32 = arith.constant 0 : i32
    %c0_i32_0 = arith.constant 0 : i32
    %c0_i32_1 = arith.constant 0 : i32
    return %c0_i32, %c0_i32_0 : i32, i32
  }
  func.func @transform_8(%arg0: i32) -> (i32, i32) {
    %c0_i32 = arith.constant 0 : i32
    %c0_i32_0 = arith.constant 0 : i32
    %c0_i32_1 = arith.constant 0 : i32
    return %c0_i32, %c0_i32_0 : i32, i32
  }
  func.func @transform_9(%arg0: i32) -> (i32, i32) {
    %c0_i32 = arith.constant 0 : i32
    %c0_i32_0 = arith.constant 0 : i32
    %c0_i32_1 = arith.constant 0 : i32
    return %c0_i32, %c0_i32_0 : i32, i32
  }
  func.func @transform_10(%arg0: i32) -> (i32, i32) {
    %c0_i32 = arith.constant 0 : i32
    %c0_i32_0 = arith.constant 0 : i32
    %c0_i32_1 = arith.constant 0 : i32
    return %c0_i32, %c0_i32_0 : i32, i32
  }
  func.func @transform_11(%arg0: i32) -> (i32, i32) {
    %c0_i32 = arith.constant 0 : i32
    %c0_i32_0 = arith.constant 0 : i32
    %c0_i32_1 = arith.constant 0 : i32
    return %c0_i32, %c0_i32_0 : i32, i32
  }
  func.func @transform_12(%arg0: i32) -> (i32, i32) {
    %c0_i32 = arith.constant 0 : i32
    %c0_i32_0 = arith.constant 0 : i32
    return %arg0, %c0_i32 : i32, i32
  }
  func.func @transform_13(%arg0: i32) -> (i32, i32) {
    %c0_i32 = arith.constant 0 : i32
    %c0_i32_0 = arith.constant 0 : i32
    return %arg0, %c0_i32 : i32, i32
  }
}

</mosaic_0001>

<llo_original>
// kernel: tpu_custom_call.1
$region0: #{tpu_custom_call.1}
  #allocation0 [shape = 'u32[]', space=smem, size = 0x4, offset = 0x4, fixed_abs, tag = 'smem constant byte address 0x4 - core index']
  #allocation1 [shape = 'u32[144,128]{1,0:T(1,128)}', space=vmem, size = 0x12000, scoped, tag = 'internal scratch']
  %s0 = inlined_call_operand.vmem [shape: f32[12,256], index: 0, kind: input, shape index: {}]
  %s1 = inlined_call_operand.vmem [shape: f32[256,288], index: 1, kind: input, shape index: {}]
  %s2 = inlined_call_operand.vmem [shape: f32[144,32], index: 2, kind: input, shape index: {}]
  %s3 = inlined_call_operand.vmem [shape: f32[1,32], index: 3, kind: input, shape index: {}]
  %s4 = inlined_call_operand.vmem [shape: f32[32,32], index: 4, kind: input, shape index: {}]
  %s5 = inlined_call_operand.vmem [shape: f32[1,32], index: 5, kind: input, shape index: {}]
  %s6 = inlined_call_operand.vmem [shape: f32[32,128], index: 6, kind: input, shape index: {}]
  %s7 = inlined_call_operand.vmem [shape: f32[1,128], index: 7, kind: input, shape index: {}]
  %s8 = inlined_call_operand.vmem [shape: f32[128,32], index: 8, kind: input, shape index: {}]
  %s9 = inlined_call_operand.vmem [shape: f32[1,32], index: 9, kind: input, shape index: {}]
  %s10 = inlined_call_operand.vmem [shape: f32[32,144], index: 10, kind: input, shape index: {}]
  %s11 = inlined_call_operand.vmem [shape: f32[1,144], index: 11, kind: input, shape index: {}]
  %s12 = inlined_call_operand.hbm [shape: f32[12,144], index: 12, kind: output, shape index: {0}]
  %s13 = inlined_call_operand.hbm [shape: f32[12,144], index: 13, kind: output, shape index: {1}]
  %14 = xla_tuple %s12, %s13
  %s15 = sld [smem:[#allocation0]]
  $region66: #{tpu_custom_call.1} parent=0
    _
  %s17 = ssub.s32 1, %s15
  %s18 = scalar_select 0, %s17, %s15
  $region1: #{tpu_custom_call.1} parent=0
    #allocation2 [shape = 'u8[16384]{0}', space=vmem, size = 0x4000, scoped, tag = 'output window, operand 0, single buffered']
    #allocation3 [shape = 's32[1]{0}', space=sflag, size = 0x4, scoped, tag = 'scoped memory for tpu_custom_call.1']
    #allocation4 [shape = 'u8[16384]{0}', space=vmem, size = 0x4000, scoped, tag = 'output window, operand 1, single buffered']
    #allocation5 [shape = 's32[1]{0}', space=sflag, size = 0x4, scoped, tag = 'scoped memory for tpu_custom_call.1']
    %19 = vsyncpa [#allocation3], 0
    %20 = vsyncpa [#allocation5], 0
    // Predicated region
    $region2: #{tpu_custom_call.1} parent=1 // pred_check
      _
    $region3: #{tpu_custom_call.1} parent=1 // pred_check_branch
      %22 = sbr.rel (0) target = $region5
    $region4: #{tpu_custom_call.1} parent=1 // pred_region
      _
    $region5: #{tpu_custom_call.1} parent=1 // pred_fallthru
      _
    // Predicated region
    $region6: #{tpu_custom_call.1} parent=1 // pred_check
      _
    $region7: #{tpu_custom_call.1} parent=1 // pred_check_branch
      %24 = sbr.rel (0) target = $region9
    $region8: #{tpu_custom_call.1} parent=1 // pred_region
      _
    $region9: #{tpu_custom_call.1} parent=1 // pred_fallthru
      _
    // Predicated region
    $region10: #{tpu_custom_call.1} parent=1 // pred_check
      _
    $region11: #{tpu_custom_call.1} parent=1 // pred_check_branch
      %26 = sbr.rel (0) target = $region13
    $region12: #{tpu_custom_call.1} parent=1 // pred_region
      _
    $region13: #{tpu_custom_call.1} parent=1 // pred_fallthru
      _
    // Predicated region
    $region14: #{tpu_custom_call.1} parent=1 // pred_check
      _
    $region15: #{tpu_custom_call.1} parent=1 // pred_check_branch
      %28 = sbr.rel (0) target = $region17
    $region16: #{tpu_custom_call.1} parent=1 // pred_region
      _
    $region17: #{tpu_custom_call.1} parent=1 // pred_fallthru
      _
    // Predicated region
    $region18: #{tpu_custom_call.1} parent=1 // pred_check
      _
    $region19: #{tpu_custom_call.1} parent=1 // pred_check_branch
      %30 = sbr.rel (0) target = $region21
    $region20: #{tpu_custom_call.1} parent=1 // pred_region
      _
    $region21: #{tpu_custom_call.1} parent=1 // pred_fallthru
      _
    // Predicated region
    $region22: #{tpu_custom_call.1} parent=1 // pred_check
      _
    $region23: #{tpu_custom_call.1} parent=1 // pred_check_branch
      %32 = sbr.rel (0) target = $region25
    $region24: #{tpu_custom_call.1} parent=1 // pred_region
      _
    $region25: #{tpu_custom_call.1} parent=1 // pred_fallthru
      _
    // Predicated region
    $region26: #{tpu_custom_call.1} parent=1 // pred_check
      _
    $region27: #{tpu_custom_call.1} parent=1 // pred_check_branch
      %34 = sbr.rel (0) target = $region29
    $region28: #{tpu_custom_call.1} parent=1 // pred_region
      _
    $region29: #{tpu_custom_call.1} parent=1 // pred_fallthru
      _
    // Predicated region
    $region30: #{tpu_custom_call.1} parent=1 // pred_check
      _
    $region31: #{tpu_custom_call.1} parent=1 // pred_check_branch
      %36 = sbr.rel (0) target = $region33
    $region32: #{tpu_custom_call.1} parent=1 // pred_region
      _
    $region33: #{tpu_custom_call.1} parent=1 // pred_fallthru
      _
    // Predicated region
    $region34: #{tpu_custom_call.1} parent=1 // pred_check
      _
    $region35: #{tpu_custom_call.1} parent=1 // pred_check_branch
      %38 = sbr.rel (0) target = $region37
    $region36: #{tpu_custom_call.1} parent=1 // pred_region
      _
    $region37: #{tpu_custom_call.1} parent=1 // pred_fallthru
      _
    // Predicated region
    $region38: #{tpu_custom_call.1} parent=1 // pred_check
      _
    $region39: #{tpu_custom_call.1} parent=1 // pred_check_branch
      %40 = sbr.rel (0) target = $region41
    $region40: #{tpu_custom_call.1} parent=1 // pred_region
      _
    $region41: #{tpu_custom_call.1} parent=1 // pred_fallthru
      _
    // Predicated region
    $region42: #{tpu_custom_call.1} parent=1 // pred_check
      _
    $region43: #{tpu_custom_call.1} parent=1 // pred_check_branch
      %42 = sbr.rel (0) target = $region45
    $region44: #{tpu_custom_call.1} parent=1 // pred_region
      _
    $region45: #{tpu_custom_call.1} parent=1 // pred_fallthru
      _
    // Predicated region
    $region46: #{tpu_custom_call.1} parent=1 // pred_check
      _
    $region47: #{tpu_custom_call.1} parent=1 // pred_check_branch
      %44 = sbr.rel (0) target = $region49
    $region48: #{tpu_custom_call.1} parent=1 // pred_region
      _
    $region49: #{tpu_custom_call.1} parent=1 // pred_fallthru
      _
    %v45 = vld [vmem:[%s0] sm:$0xff]
    %v46 = vld [vmem:[%s0 + $0x8] sm:$0xff]
    %v47 = vld [vmem:[%s0 + $0x10] sm:$0xf]
    %v48 = vld [vmem:[%s0 + $0x18] sm:$0xf]
    %v49 = vld [vmem:[%s1] sm:$0xff]
    %v50 = vld [vmem:[%s1 + $0x8] sm:$0xff]
    %v51 = vld [vmem:[%s1 + $0x10] sm:$0xff]
    %v52 = vld [vmem:[%s1 + $0x18] sm:$0xff]
    %v53 = vld [vmem:[%s1 + $0x20] sm:$0xff]
    %v54 = vld [vmem:[%s1 + $0x28] sm:$0xff]
    %v55 = vld [vmem:[%s1 + $0x30] sm:$0xff]
    %v56 = vld [vmem:[%s1 + $0x38] sm:$0xff]
    %v57 = vld [vmem:[%s1 + $0x40] sm:$0xff]
    %v58 = vld [vmem:[%s1 + $0x48] sm:$0xff]
    %v59 = vld [vmem:[%s1 + $0x50] sm:$0xff]
    %v60 = vld [vmem:[%s1 + $0x58] sm:$0xff]
    %v61 = vld [vmem:[%s1 + $0x60] sm:$0xff]
    %v62 = vld [vmem:[%s1 + $0x68] sm:$0xff]
    %v63 = vld [vmem:[%s1 + $0x70] sm:$0xff]
    %v64 = vld [vmem:[%s1 + $0x78] sm:$0xff]
    %v65 = vld [vmem:[%s1 + $0x80] sm:$0xff]
    %v66 = vld [vmem:[%s1 + $0x88] sm:$0xff]
    %v67 = vld [vmem:[%s1 + $0x90] sm:$0xff]
    %v68 = vld [vmem:[%s1 + $0x98] sm:$0xff]
    %v69 = vld [vmem:[%s1 + $0xa0] sm:$0xff]
    %v70 = vld [vmem:[%s1 + $0xa8] sm:$0xff]
    %v71 = vld [vmem:[%s1 + $0xb0] sm:$0xff]
    %v72 = vld [vmem:[%s1 + $0xb8] sm:$0xff]
    %v73 = vld [vmem:[%s1 + $0xc0] sm:$0xff]
    %v74 = vld [vmem:[%s1 + $0xc8] sm:$0xff]
    %v75 = vld [vmem:[%s1 + $0xd0] sm:$0xff]
    %v76 = vld [vmem:[%s1 + $0xd8] sm:$0xff]
    %v77 = vld [vmem:[%s1 + $0xe0] sm:$0xff]
    %v78 = vld [vmem:[%s1 + $0xe8] sm:$0xff]
    %v79 = vld [vmem:[%s1 + $0xf0] sm:$0xff]
    %v80 = vld [vmem:[%s1 + $0xf8] sm:$0xff]
    %v81 = vld [vmem:[%s1 + $0x100] sm:$0xff]
    %v82 = vld [vmem:[%s1 + $0x108] sm:$0xff]
    %v83 = vld [vmem:[%s1 + $0x110] sm:$0xff]
    %v84 = vld [vmem:[%s1 + $0x118] sm:$0xff]
    %v85 = vld [vmem:[%s1 + $0x120] sm:$0xff]
    %v86 = vld [vmem:[%s1 + $0x128] sm:$0xff]
    %v87 = vld [vmem:[%s1 + $0x130] sm:$0xff]
    %v88 = vld [vmem:[%s1 + $0x138] sm:$0xff]
    %v89 = vld [vmem:[%s1 + $0x140] sm:$0xff]
    %v90 = vld [vmem:[%s1 + $0x148] sm:$0xff]
    %v91 = vld [vmem:[%s1 + $0x150] sm:$0xff]
    %v92 = vld [vmem:[%s1 + $0x158] sm:$0xff]
    %v93 = vld [vmem:[%s1 + $0x160] sm:$0xff]
    %v94 = vld [vmem:[%s1 + $0x168] sm:$0xff]
    %v95 = vld [vmem:[%s1 + $0x170] sm:$0xff]
    %v96 = vld [vmem:[%s1 + $0x178] sm:$0xff]
    %v97 = vld [vmem:[%s1 + $0x180] sm:$0xff]
    %v98 = vld [vmem:[%s1 + $0x188] sm:$0xff]
    %v99 = vld [vmem:[%s1 + $0x190] sm:$0xff]
    %v100 = vld [vmem:[%s1 + $0x198] sm:$0xff]
    %v101 = vld [vmem:[%s1 + $0x1a0] sm:$0xff]
    %v102 = vld [vmem:[%s1 + $0x1a8] sm:$0xff]
    %v103 = vld [vmem:[%s1 + $0x1b0] sm:$0xff]
    %v104 = vld [vmem:[%s1 + $0x1b8] sm:$0xff]
    %v105 = vld [vmem:[%s1 + $0x1c0] sm:$0xff]
    %v106 = vld [vmem:[%s1 + $0x1c8] sm:$0xff]
    %v107 = vld [vmem:[%s1 + $0x1d0] sm:$0xff]
    %v108 = vld [vmem:[%s1 + $0x1d8] sm:$0xff]
    %v109 = vld [vmem:[%s1 + $0x1e0] sm:$0xff]
    %v110 = vld [vmem:[%s1 + $0x1e8] sm:$0xff]
    %v111 = vld [vmem:[%s1 + $0x1f0] sm:$0xff]
    %v112 = vld [vmem:[%s1 + $0x1f8] sm:$0xff]
    %v113 = vld [vmem:[%s1 + $0x200] sm:$0xff]
    %v114 = vld [vmem:[%s1 + $0x208] sm:$0xff]
    %v115 = vld [vmem:[%s1 + $0x210] sm:$0xff]
    %v116 = vld [vmem:[%s1 + $0x218] sm:$0xff]
    %v117 = vld [vmem:[%s1 + $0x220] sm:$0xff]
    %v118 = vld [vmem:[%s1 + $0x228] sm:$0xff]
    %v119 = vld [vmem:[%s1 + $0x230] sm:$0xff]
    %v120 = vld [vmem:[%s1 + $0x238] sm:$0xff]
    %v121 = vld [vmem:[%s1 + $0x240] sm:$0xff]
    %v122 = vld [vmem:[%s1 + $0x248] sm:$0xff]
    %v123 = vld [vmem:[%s1 + $0x250] sm:$0xff]
    %v124 = vld [vmem:[%s1 + $0x258] sm:$0xff]
    %v125 = vld [vmem:[%s1 + $0x260] sm:$0xff]
    %v126 = vld [vmem:[%s1 + $0x268] sm:$0xff]
    %v127 = vld [vmem:[%s1 + $0x270] sm:$0xff]
    %v128 = vld [vmem:[%s1 + $0x278] sm:$0xff]
    %v129 = vld [vmem:[%s1 + $0x280] sm:$0xff]
    %v130 = vld [vmem:[%s1 + $0x288] sm:$0xff]
    %v131 = vld [vmem:[%s1 + $0x290] sm:$0xff]
    %v132 = vld [vmem:[%s1 + $0x298] sm:$0xff]
    %v133 = vld [vmem:[%s1 + $0x2a0] sm:$0xff]
    %v134 = vld [vmem:[%s1 + $0x2a8] sm:$0xff]
    %v135 = vld [vmem:[%s1 + $0x2b0] sm:$0xff]
    %v136 = vld [vmem:[%s1 + $0x2b8] sm:$0xff]
    %v137 = vld [vmem:[%s1 + $0x2c0] sm:$0xff]
    %v138 = vld [vmem:[%s1 + $0x2c8] sm:$0xff]
    %v139 = vld [vmem:[%s1 + $0x2d0] sm:$0xff]
    %v140 = vld [vmem:[%s1 + $0x2d8] sm:$0xff]
    %v141 = vld [vmem:[%s1 + $0x2e0] sm:$0xff]
    %v142 = vld [vmem:[%s1 + $0x2e8] sm:$0xff]
    %v143 = vld [vmem:[%s1 + $0x2f0] sm:$0xff]
    %v144 = vld [vmem:[%s1 + $0x2f8] sm:$0xff]
    %v145 = vand.u32 %v50, 4294901760
    %146 = vmatprep.subr.mxu0 %v145
    %v147 = vand.u32 %v49, 4294901760
    %148 = vmatpush1.msra.mxu0 %v147
    %v149 = vand.u32 %v53, 4294901760
    %150 = vmatprep.subr.mxu0 %v149
    %v151 = vand.u32 %v52, 4294901760
    %152 = vmatpush1.msra.mxu0 %v151
    %v153 = vand.u32 %v56, 4294901760
    %154 = vmatprep.subr.mxu0 %v153
    %v155 = vand.u32 %v55, 4294901760
    %156 = vmatpush1.msra.mxu0 %v155
    %v157 = vand.u32 %v59, 4294901760
    %158 = vmatprep.subr.mxu0 %v157
    %v159 = vand.u32 %v58, 4294901760
    %160 = vmatpush1.msra.mxu0 %v159
    %v161 = vand.u32 %v62, 4294901760
    %162 = vmatprep.subr.mxu0 %v161
    %v163 = vand.u32 %v61, 4294901760
    %164 = vmatpush1.msra.mxu0 %v163
    %v165 = vand.u32 %v65, 4294901760
    %166 = vmatprep.subr.mxu0 %v165
    %v167 = vand.u32 %v64, 4294901760
    %168 = vmatpush1.msra.mxu0 %v167
    %v169 = vand.u32 %v68, 4294901760
    %170 = vmatprep.subr.mxu0 %v169
    %v171 = vand.u32 %v67, 4294901760
    %172 = vmatpush1.msra.mxu0 %v171
    %v173 = vand.u32 %v71, 4294901760
    %174 = vmatprep.subr.mxu0 %v173
    %v175 = vand.u32 %v70, 4294901760
    %176 = vmatpush1.msra.mxu0 %v175
    %v177 = vand.u32 %v74, 4294901760
    %178 = vmatprep.subr.mxu0 %v177
    %v179 = vand.u32 %v73, 4294901760
    %180 = vmatpush1.msra.mxu0 %v179
    %v181 = vand.u32 %v77, 4294901760
    %182 = vmatprep.subr.mxu0 %v181
    %v183 = vand.u32 %v76, 4294901760
    %184 = vmatpush1.msra.mxu0 %v183
    %v185 = vand.u32 %v80, 4294901760
    %186 = vmatprep.subr.mxu0 %v185
    %v187 = vand.u32 %v79, 4294901760
    %188 = vmatpush1.msra.mxu0 %v187
    %v189 = vand.u32 %v83, 4294901760
    %190 = vmatprep.subr.mxu0 %v189
    %v191 = vand.u32 %v82, 4294901760
    %192 = vmatpush1.msra.mxu0 %v191
    %v193 = vand.u32 %v86, 4294901760
    %194 = vmatprep.subr.mxu0 %v193
    %v195 = vand.u32 %v85, 4294901760
    %196 = vmatpush1.msra.mxu0 %v195
    %v197 = vand.u32 %v89, 4294901760
    %198 = vmatprep.subr.mxu0 %v197
    %v199 = vand.u32 %v88, 4294901760
    %200 = vmatpush1.msra.mxu0 %v199
    %v201 = vand.u32 %v92, 4294901760
    %202 = vmatprep.subr.mxu0 %v201
    %v203 = vand.u32 %v91, 4294901760
    %204 = vmatpush1.msra.mxu0 %v203
    %v205 = vand.u32 %v95, 4294901760
    %206 = vmatprep.subr.mxu0 %v205
    %v207 = vand.u32 %v94, 4294901760
    %208 = vmatpush1.msra.mxu0 %v207
    %v209 = vand.u32 %v98, 4294901760
    %210 = vmatprep.subr.mxu0 %v209
    %v211 = vand.u32 %v97, 4294901760
    %212 = vmatpush1.msra.mxu0 %v211
    %v213 = vand.u32 %v101, 4294901760
    %214 = vmatprep.subr.mxu0 %v213
    %v215 = vand.u32 %v100, 4294901760
    %216 = vmatpush1.msra.mxu0 %v215
    %v217 = vand.u32 %v104, 4294901760
    %218 = vmatprep.subr.mxu0 %v217
    %v219 = vand.u32 %v103, 4294901760
    %220 = vmatpush1.msra.mxu0 %v219
    %v221 = vand.u32 %v107, 4294901760
    %222 = vmatprep.subr.mxu0 %v221
    %v223 = vand.u32 %v106, 4294901760
    %224 = vmatpush1.msra.mxu0 %v223
    %v225 = vand.u32 %v110, 4294901760
    %226 = vmatprep.subr.mxu0 %v225
    %v227 = vand.u32 %v109, 4294901760
    %228 = vmatpush1.msra.mxu0 %v227
    %v229 = vand.u32 %v113, 4294901760
    %230 = vmatprep.subr.mxu0 %v229
    %v231 = vand.u32 %v112, 4294901760
    %232 = vmatpush1.msra.mxu0 %v231
    %v233 = vand.u32 %v116, 4294901760
    %234 = vmatprep.subr.mxu0 %v233
    %v235 = vand.u32 %v115, 4294901760
    %236 = vmatpush1.msra.mxu0 %v235
    %v237 = vand.u32 %v119, 4294901760
    %238 = vmatprep.subr.mxu0 %v237
    %v239 = vand.u32 %v118, 4294901760
    %240 = vmatpush1.msra.mxu0 %v239
    %v241 = vand.u32 %v122, 4294901760
    %242 = vmatprep.subr.mxu0 %v241
    %v243 = vand.u32 %v121, 4294901760
    %244 = vmatpush1.msra.mxu0 %v243
    %v245 = vand.u32 %v125, 4294901760
    %246 = vmatprep.subr.mxu0 %v245
    %v247 = vand.u32 %v124, 4294901760
    %248 = vmatpush1.msra.mxu0 %v247
    %v249 = vand.u32 %v128, 4294901760
    %250 = vmatprep.subr.mxu0 %v249
    %v251 = vand.u32 %v127, 4294901760
    %252 = vmatpush1.msra.mxu0 %v251
    %v253 = vand.u32 %v131, 4294901760
    %254 = vmatprep.subr.mxu0 %v253
    %v255 = vand.u32 %v130, 4294901760
    %256 = vmatpush1.msra.mxu0 %v255
    %v257 = vand.u32 %v134, 4294901760
    %258 = vmatprep.subr.mxu0 %v257
    %v259 = vand.u32 %v133, 4294901760
    %260 = vmatpush1.msra.mxu0 %v259
    %v261 = vand.u32 %v137, 4294901760
    %262 = vmatprep.subr.mxu0 %v261
    %v263 = vand.u32 %v136, 4294901760
    %264 = vmatpush1.msra.mxu0 %v263
    %v265 = vand.u32 %v140, 4294901760
    %266 = vmatprep.subr.mxu0 %v265
    %v267 = vand.u32 %v139, 4294901760
    %268 = vmatpush1.msra.mxu0 %v267
    %v269 = vand.u32 %v143, 4294901760
    %270 = vmatprep.subr.mxu0 %v269
    %v271 = vand.u32 %v142, 4294901760
    %272 = vmatpush1.msra.mxu0 %v271
    %v273 = vand.u32 %v46, 4294901760
    %v274 = vsub.f32 %v46, %v273
    %v275 = vand.u32 %v274, 4294901760
    %v276 = vsub.f32 %v274, %v275
    %v277 = vand.u32 %v276, 4294901760
    %278 = vmatprep.mubr.f32.mxu0 %v277
    %v279 = vand.u32 %v45, 4294901760
    %v280 = vsub.f32 %v45, %v279
    %v281 = vand.u32 %v280, 4294901760
    %v282 = vsub.f32 %v280, %v281
    %v283 = vand.u32 %v282, 4294901760
    %284 = vmatmul.mubr.f32.gmra.mrb[0].mxu0 %v283
    %v285 = vpop.f32.mrb[0].mxu0
    %v286 = vadd.f32 0.0, %v285
    %v287 = vpop.f32.mrb[0].mxu0
    %v288 = vadd.f32 0.0, %v287
    %v289 = vand.u32 %v48, 4294901760
    %v290 = vsub.f32 %v48, %v289
    %v291 = vand.u32 %v290, 4294901760
    %v292 = vsub.f32 %v290, %v291
    %v293 = vand.u32 %v292, 4294901760
    %294 = vmatprep.mubr.f32.mxu0 %v293
    %v295 = vand.u32 %v47, 4294901760
    %v296 = vsub.f32 %v47, %v295
    %v297 = vand.u32 %v296, 4294901760
    %v298 = vsub.f32 %v296, %v297
    %v299 = vand.u32 %v298, 4294901760
    %300 = vmatmul.mubr.f32.gmra.mrb[0].mxu0 %v299
    %v301 = vpop.f32.mrb[0].mxu0
    %v302 = vadd.f32 0.0, %v301
    %v303 = vpop.f32.mrb[0].mxu0
    %v304 = vadd.f32 0.0, %v303
    %305 = vdwg.mxu0
    %v306 = vand.u32 %v50, 4294901760
    %v307 = vsub.f32 %v50, %v306
    %v308 = vand.u32 %v307, 4294901760
    %v309 = vsub.f32 %v307, %v308
    %v310 = vand.u32 %v309, 4294901760
    %311 = vmatprep.subr.mxu0 %v310
    %v312 = vand.u32 %v49, 4294901760
    %v313 = vsub.f32 %v49, %v312
    %v314 = vand.u32 %v313, 4294901760
    %v315 = vsub.f32 %v313, %v314
    %v316 = vand.u32 %v315, 4294901760
    %317 = vmatpush1.msra.mxu0 %v316
    %v318 = vand.u32 %v53, 4294901760
    %v319 = vsub.f32 %v53, %v318
    %v320 = vand.u32 %v319, 4294901760
    %v321 = vsub.f32 %v319, %v320
    %v322 = vand.u32 %v321, 4294901760
    %323 = vmatprep.subr.mxu0 %v322
    %v324 = vand.u32 %v52, 4294901760
    %v325 = vsub.f32 %v52, %v324
    %v326 = vand.u32 %v325, 4294901760
    %v327 = vsub.f32 %v325, %v326
    %v328 = vand.u32 %v327, 4294901760
    %329 = vmatpush1.msra.mxu0 %v328
    %v330 = vand.u32 %v56, 4294901760
    %v331 = vsub.f32 %v56, %v330
    %v332 = vand.u32 %v331, 4294901760
    %v333 = vsub.f32 %v331, %v332
    %v334 = vand.u32 %v333, 4294901760
    %335 = vmatprep.subr.mxu0 %v334
    %v336 = vand.u32 %v55, 4294901760
    %v337 = vsub.f32 %v55, %v336
    %v338 = vand.u32 %v337, 4294901760
    %v339 = vsub.f32 %v337, %v338
    %v340 = vand.u32 %v339, 4294901760
    %341 = vmatpush1.msra.mxu0 %v340
    %v342 = vand.u32 %v59, 4294901760
    %v343 = vsub.f32 %v59, %v342
    %v344 = vand.u32 %v343, 4294901760
    %v345 = vsub.f32 %v343, %v344
    %v346 = vand.u32 %v345, 4294901760
    %347 = vmatprep.subr.mxu0 %v346
    %v348 = vand.u32 %v58, 4294901760
    %v349 = vsub.f32 %v58, %v348
    %v350 = vand.u32 %v349, 4294901760
    %v351 = vsub.f32 %v349, %v350
    %v352 = vand.u32 %v351, 4294901760
    %353 = vmatpush1.msra.mxu0 %v352
    %v354 = vand.u32 %v62, 4294901760
    %v355 = vsub.f32 %v62, %v354
    %v356 = vand.u32 %v355, 4294901760
    %v357 = vsub.f32 %v355, %v356
    %v358 = vand.u32 %v357, 4294901760
    %359 = vmatprep.subr.mxu0 %v358
    %v360 = vand.u32 %v61, 4294901760
    %v361 = vsub.f32 %v61, %v360
    %v362 = vand.u32 %v361, 4294901760
    %v363 = vsub.f32 %v361, %v362
    %v364 = vand.u32 %v363, 4294901760
    %365 = vmatpush1.msra.mxu0 %v364
    %v366 = vand.u32 %v65, 4294901760
    %v367 = vsub.f32 %v65, %v366
    %v368 = vand.u32 %v367, 4294901760
    %v369 = vsub.f32 %v367, %v368
    %v370 = vand.u32 %v369, 4294901760
    %371 = vmatprep.subr.mxu0 %v370
    %v372 = vand.u32 %v64, 4294901760
    %v373 = vsub.f32 %v64, %v372
    %v374 = vand.u32 %v373, 4294901760
    %v375 = vsub.f32 %v373, %v374
    %v376 = vand.u32 %v375, 4294901760
    %377 = vmatpush1.msra.mxu0 %v376
    %v378 = vand.u32 %v68, 4294901760
    %v379 = vsub.f32 %v68, %v378
    %v380 = vand.u32 %v379, 4294901760
    %v381 = vsub.f32 %v379, %v380
    %v382 = vand.u32 %v381, 4294901760
    %383 = vmatprep.subr.mxu0 %v382
    %v384 = vand.u32 %v67, 4294901760
    %v385 = vsub.f32 %v67, %v384
    %v386 = vand.u32 %v385, 4294901760
    %v387 = vsub.f32 %v385, %v386
    %v388 = vand.u32 %v387, 4294901760
    %389 = vmatpush1.msra.mxu0 %v388
    %v390 = vand.u32 %v71, 4294901760
    %v391 = vsub.f32 %v71, %v390
    %v392 = vand.u32 %v391, 4294901760
    %v393 = vsub.f32 %v391, %v392
    %v394 = vand.u32 %v393, 4294901760
    %395 = vmatprep.subr.mxu0 %v394
    %v396 = vand.u32 %v70, 4294901760
    %v397 = vsub.f32 %v70, %v396
    %v398 = vand.u32 %v397, 4294901760
    %v399 = vsub.f32 %v397, %v398
    %v400 = vand.u32 %v399, 4294901760
    %401 = vmatpush1.msra.mxu0 %v400
    %v402 = vand.u32 %v74, 4294901760
    %v403 = vsub.f32 %v74, %v402
    %v404 = vand.u32 %v403, 4294901760
    %v405 = vsub.f32 %v403, %v404
    %v406 = vand.u32 %v405, 4294901760
    %407 = vmatprep.subr.mxu0 %v406
    %v408 = vand.u32 %v73, 4294901760
    %v409 = vsub.f32 %v73, %v408
    %v410 = vand.u32 %v409, 4294901760
    %v411 = vsub.f32 %v409, %v410
    %v412 = vand.u32 %v411, 4294901760
    %413 = vmatpush1.msra.mxu0 %v412
    %v414 = vand.u32 %v77, 4294901760
    %v415 = vsub.f32 %v77, %v414
    %v416 = vand.u32 %v415, 4294901760
    %v417 = vsub.f32 %v415, %v416
    %v418 = vand.u32 %v417, 4294901760
    %419 = vmatprep.subr.mxu0 %v418
    %v420 = vand.u32 %v76, 4294901760
    %v421 = vsub.f32 %v76, %v420
    %v422 = vand.u32 %v421, 4294901760
    %v423 = vsub.f32 %v421, %v422
    %v424 = vand.u32 %v423, 4294901760
    %425 = vmatpush1.msra.mxu0 %v424
    %v426 = vand.u32 %v80, 4294901760
    %v427 = vsub.f32 %v80, %v426
    %v428 = vand.u32 %v427, 4294901760
    %v429 = vsub.f32 %v427, %v428
    %v430 = vand.u32 %v429, 4294901760
    %431 = vmatprep.subr.mxu0 %v430
    %v432 = vand.u32 %v79, 4294901760
    %v433 = vsub.f32 %v79, %v432
    %v434 = vand.u32 %v433, 4294901760
    %v435 = vsub.f32 %v433, %v434
    %v436 = vand.u32 %v435, 4294901760
    %437 = vmatpush1.msra.mxu0 %v436
    %v438 = vand.u32 %v83, 4294901760
    %v439 = vsub.f32 %v83, %v438
    %v440 = vand.u32 %v439, 4294901760
    %v441 = vsub.f32 %v439, %v440
    %v442 = vand.u32 %v441, 4294901760
    %443 = vmatprep.subr.mxu0 %v442
    %v444 = vand.u32 %v82, 4294901760
    %v445 = vsub.f32 %v82, %v444
    %v446 = vand.u32 %v445, 4294901760
    %v447 = vsub.f32 %v445, %v446
    %v448 = vand.u32 %v447, 4294901760
    %449 = vmatpush1.msra.mxu0 %v448
    %v450 = vand.u32 %v86, 4294901760
    %v451 = vsub.f32 %v86, %v450
    %v452 = vand.u32 %v451, 4294901760
    %v453 = vsub.f32 %v451, %v452
    %v454 = vand.u32 %v453, 4294901760
    %455 = vmatprep.subr.mxu0 %v454
    %v456 = vand.u32 %v85, 4294901760
    %v457 = vsub.f32 %v85, %v456
    %v458 = vand.u32 %v457, 4294901760
    %v459 = vsub.f32 %v457, %v458
    %v460 = vand.u32 %v459, 4294901760
    %461 = vmatpush1.msra.mxu0 %v460
    %v462 = vand.u32 %v89, 4294901760
    %v463 = vsub.f32 %v89, %v462
    %v464 = vand.u32 %v463, 4294901760
    %v465 = vsub.f32 %v463, %v464
    %v466 = vand.u32 %v465, 4294901760
    %467 = vmatprep.subr.mxu0 %v466
    %v468 = vand.u32 %v88, 4294901760
    %v469 = vsub.f32 %v88, %v468
    %v470 = vand.u32 %v469, 4294901760
    %v471 = vsub.f32 %v469, %v470
    %v472 = vand.u32 %v471, 4294901760
    %473 = vmatpush1.msra.mxu0 %v472
    %v474 = vand.u32 %v92, 4294901760
    %v475 = vsub.f32 %v92, %v474
    %v476 = vand.u32 %v475, 4294901760
    %v477 = vsub.f32 %v475, %v476
    %v478 = vand.u32 %v477, 4294901760
    %479 = vmatprep.subr.mxu0 %v478
    %v480 = vand.u32 %v91, 4294901760
    %v481 = vsub.f32 %v91, %v480
    %v482 = vand.u32 %v481, 4294901760
    %v483 = vsub.f32 %v481, %v482
    %v484 = vand.u32 %v483, 4294901760
    %485 = vmatpush1.msra.mxu0 %v484
    %v486 = vand.u32 %v95, 4294901760
    %v487 = vsub.f32 %v95, %v486
    %v488 = vand.u32 %v487, 4294901760
    %v489 = vsub.f32 %v487, %v488
    %v490 = vand.u32 %v489, 4294901760
    %491 = vmatprep.subr.mxu0 %v490
    %v492 = vand.u32 %v94, 4294901760
    %v493 = vsub.f32 %v94, %v492
    %v494 = vand.u32 %v493, 4294901760
    %v495 = vsub.f32 %v493, %v494
    %v496 = vand.u32 %v495, 4294901760
    %497 = vmatpush1.msra.mxu0 %v496
    %v498 = vand.u32 %v98, 4294901760
    %v499 = vsub.f32 %v98, %v498
    %v500 = vand.u32 %v499, 4294901760
    %v501 = vsub.f32 %v499, %v500
    %v502 = vand.u32 %v501, 4294901760
    %503 = vmatprep.subr.mxu0 %v502
    %v504 = vand.u32 %v97, 4294901760
    %v505 = vsub.f32 %v97, %v504
    %v506 = vand.u32 %v505, 4294901760
    %v507 = vsub.f32 %v505, %v506
    %v508 = vand.u32 %v507, 4294901760
    %509 = vmatpush1.msra.mxu0 %v508
    %v510 = vand.u32 %v101, 4294901760
    %v511 = vsub.f32 %v101, %v510
    %v512 = vand.u32 %v511, 4294901760
    %v513 = vsub.f32 %v511, %v512
    %v514 = vand.u32 %v513, 4294901760
    %515 = vmatprep.subr.mxu0 %v514
    %v516 = vand.u32 %v100, 4294901760
    %v517 = vsub.f32 %v100, %v516
    %v518 = vand.u32 %v517, 4294901760
    %v519 = vsub.f32 %v517, %v518
    %v520 = vand.u32 %v519, 4294901760
    %521 = vmatpush1.msra.mxu0 %v520
    %v522 = vand.u32 %v104, 4294901760
    %v523 = vsub.f32 %v104, %v522
    %v524 = vand.u32 %v523, 4294901760
    %v525 = vsub.f32 %v523, %v524
    %v526 = vand.u32 %v525, 4294901760
    %527 = vmatprep.subr.mxu0 %v526
    %v528 = vand.u32 %v103, 4294901760
    %v529 = vsub.f32 %v103, %v528
    %v530 = vand.u32 %v529, 4294901760
    %v531 = vsub.f32 %v529, %v530
    %v532 = vand.u32 %v531, 4294901760
    %533 = vmatpush1.msra.mxu0 %v532
    %v534 = vand.u32 %v107, 4294901760
    %v535 = vsub.f32 %v107, %v534
    %v536 = vand.u32 %v535, 4294901760
    %v537 = vsub.f32 %v535, %v536
    %v538 = vand.u32 %v537, 4294901760
    %539 = vmatprep.subr.mxu0 %v538
    %v540 = vand.u32 %v106, 4294901760
    %v541 = vsub.f32 %v106, %v540
    %v542 = vand.u32 %v541, 4294901760
    %v543 = vsub.f32 %v541, %v542
    %v544 = vand.u32 %v543, 4294901760
    %545 = vmatpush1.msra.mxu0 %v544
    %v546 = vand.u32 %v110, 4294901760
    %v547 = vsub.f32 %v110, %v546
    %v548 = vand.u32 %v547, 4294901760
    %v549 = vsub.f32 %v547, %v548
    %v550 = vand.u32 %v549, 4294901760
    %551 = vmatprep.subr.mxu0 %v550
    %v552 = vand.u32 %v109, 4294901760
    %v553 = vsub.f32 %v109, %v552
    %v554 = vand.u32 %v553, 4294901760
    %v555 = vsub.f32 %v553, %v554
    %v556 = vand.u32 %v555, 4294901760
    %557 = vmatpush1.msra.mxu0 %v556
    %v558 = vand.u32 %v113, 4294901760
    %v559 = vsub.f32 %v113, %v558
    %v560 = vand.u32 %v559, 4294901760
    %v561 = vsub.f32 %v559, %v560
    %v562 = vand.u32 %v561, 4294901760
    %563 = vmatprep.subr.mxu0 %v562
    %v564 = vand.u32 %v112, 4294901760
    %v565 = vsub.f32 %v112, %v564
    %v566 = vand.u32 %v565, 4294901760
    %v567 = vsub.f32 %v565, %v566
    %v568 = vand.u32 %v567, 4294901760
    %569 = vmatpush1.msra.mxu0 %v568
    %v570 = vand.u32 %v116, 4294901760
    %v571 = vsub.f32 %v116, %v570
    %v572 = vand.u32 %v571, 4294901760
    %v573 = vsub.f32 %v571, %v572
    %v574 = vand.u32 %v573, 4294901760
    %575 = vmatprep.subr.mxu0 %v574
    %v576 = vand.u32 %v115, 4294901760
    %v577 = vsub.f32 %v115, %v576
    %v578 = vand.u32 %v577, 4294901760
    %v579 = vsub.f32 %v577, %v578
    %v580 = vand.u32 %v579, 4294901760
    %581 = vmatpush1.msra.mxu0 %v580
    %v582 = vand.u32 %v119, 4294901760
    %v583 = vsub.f32 %v119, %v582
    %v584 = vand.u32 %v583, 4294901760
    %v585 = vsub.f32 %v583, %v584
    %v586 = vand.u32 %v585, 4294901760
    %587 = vmatprep.subr.mxu0 %v586
    %v588 = vand.u32 %v118, 4294901760
    %v589 = vsub.f32 %v118, %v588
    %v590 = vand.u32 %v589, 4294901760
    %v591 = vsub.f32 %v589, %v590
    %v592 = vand.u32 %v591, 4294901760
    %593 = vmatpush1.msra.mxu0 %v592
    %v594 = vand.u32 %v122, 4294901760
    %v595 = vsub.f32 %v122, %v594
    %v596 = vand.u32 %v595, 4294901760
    %v597 = vsub.f32 %v595, %v596
    %v598 = vand.u32 %v597, 4294901760
    %599 = vmatprep.subr.mxu0 %v598
    %v600 = vand.u32 %v121, 4294901760
    %v601 = vsub.f32 %v121, %v600
    %v602 = vand.u32 %v601, 4294901760
    %v603 = vsub.f32 %v601, %v602
    %v604 = vand.u32 %v603, 4294901760
    %605 = vmatpush1.msra.mxu0 %v604
    %v606 = vand.u32 %v125, 4294901760
    %v607 = vsub.f32 %v125, %v606
    %v608 = vand.u32 %v607, 4294901760
    %v609 = vsub.f32 %v607, %v608
    %v610 = vand.u32 %v609, 4294901760
    %611 = vmatprep.subr.mxu0 %v610
    %v612 = vand.u32 %v124, 4294901760
    %v613 = vsub.f32 %v124, %v612
    %v614 = vand.u32 %v613, 4294901760
    %v615 = vsub.f32 %v613, %v614
    %v616 = vand.u32 %v615, 4294901760
    %617 = vmatpush1.msra.mxu0 %v616
    %v618 = vand.u32 %v128, 4294901760
    %v619 = vsub.f32 %v128, %v618
    %v620 = vand.u32 %v619, 4294901760
    %v621 = vsub.f32 %v619, %v620
    %v622 = vand.u32 %v621, 4294901760
    %623 = vmatprep.subr.mxu0 %v622
    %v624 = vand.u32 %v127, 4294901760
    %v625 = vsub.f32 %v127, %v624
    %v626 = vand.u32 %v625, 4294901760
    %v627 = vsub.f32 %v625, %v626
    %v628 = vand.u32 %v627, 4294901760
    %629 = vmatpush1.msra.mxu0 %v628
    %v630 = vand.u32 %v131, 4294901760
    %v631 = vsub.f32 %v131, %v630
    %v632 = vand.u32 %v631, 4294901760
    %v633 = vsub.f32 %v631, %v632
    %v634 = vand.u32 %v633, 4294901760
    %635 = vmatprep.subr.mxu0 %v634
    %v636 = vand.u32 %v130, 4294901760
    %v637 = vsub.f32 %v130, %v636
    %v638 = vand.u32 %v637, 4294901760
    %v639 = vsub.f32 %v637, %v638
    %v640 = vand.u32 %v639, 4294901760
    %641 = vmatpush1.msra.mxu0 %v640
    %v642 = vand.u32 %v134, 4294901760
    %v643 = vsub.f32 %v134, %v642
    %v644 = vand.u32 %v643, 4294901760
    %v645 = vsub.f32 %v643, %v644
    %v646 = vand.u32 %v645, 4294901760
    %647 = vmatprep.subr.mxu0 %v646
    %v648 = vand.u32 %v133, 4294901760
    %v649 = vsub.f32 %v133, %v648
    %v650 = vand.u32 %v649, 4294901760
    %v651 = vsub.f32 %v649, %v650
    %v652 = vand.u32 %v651, 4294901760
    %653 = vmatpush1.msra.mxu0 %v652
    %v654 = vand.u32 %v137, 4294901760
    %v655 = vsub.f32 %v137, %v654
    %v656 = vand.u32 %v655, 4294901760
    %v657 = vsub.f32 %v655, %v656
    %v658 = vand.u32 %v657, 4294901760
    %659 = vmatprep.subr.mxu0 %v658
    %v660 = vand.u32 %v136, 4294901760
    %v661 = vsub.f32 %v136, %v660
    %v662 = vand.u32 %v661, 4294901760
    %v663 = vsub.f32 %v661, %v662
    %v664 = vand.u32 %v663, 4294901760
    %665 = vmatpush1.msra.mxu0 %v664
    %v666 = vand.u32 %v140, 4294901760
    %v667 = vsub.f32 %v140, %v666
    %v668 = vand.u32 %v667, 4294901760
    %v669 = vsub.f32 %v667, %v668
    %v670 = vand.u32 %v669, 4294901760
    %671 = vmatprep.subr.mxu0 %v670
    %v672 = vand.u32 %v139, 4294901760
    %v673 = vsub.f32 %v139, %v672
    %v674 = vand.u32 %v673, 4294901760
    %v675 = vsub.f32 %v673, %v674
    %v676 = vand.u32 %v675, 4294901760
    %677 = vmatpush1.msra.mxu0 %v676
    %v678 = vand.u32 %v143, 4294901760
    %v679 = vsub.f32 %v143, %v678
    %v680 = vand.u32 %v679, 4294901760
    %v681 = vsub.f32 %v679, %v680
    %v682 = vand.u32 %v681, 4294901760
    %683 = vmatprep.subr.mxu0 %v682
    %v684 = vand.u32 %v142, 4294901760
    %v685 = vsub.f32 %v142, %v684
    %v686 = vand.u32 %v685, 4294901760
    %v687 = vsub.f32 %v685, %v686
    %v688 = vand.u32 %v687, 4294901760
    %689 = vmatpush1.msra.mxu0 %v688
    %v690 = vand.u32 %v46, 4294901760
    %691 = vmatprep.mubr.f32.mxu0 %v690
    %v692 = vand.u32 %v45, 4294901760
    %693 = vmatmul.mubr.f32.gmra.mrb[0].mxu0 %v692
    %v694 = vpop.f32.mrb[0].mxu0
    %v695 = vadd.f32 %v286, %v694
    %v696 = vpop.f32.mrb[0].mxu0
    %v697 = vadd.f32 %v288, %v696
    %v698 = vand.u32 %v48, 4294901760
    %699 = vmatprep.mubr.f32.mxu0 %v698
    %v700 = vand.u32 %v47, 4294901760
    %701 = vmatmul.mubr.f32.gmra.mrb[0].mxu0 %v700
    %v702 = vpop.f32.mrb[0].mxu0
    %v703 = vadd.f32 %v302, %v702
    %v704 = vpop.f32.mrb[0].mxu0
    %v705 = vadd.f32 %v304, %v704
    %706 = vdwg.mxu0
    %v707 = vand.u32 %v50, 4294901760
    %v708 = vsub.f32 %v50, %v707
    %709 = vmatprep.subr.mxu0 %v708
    %v710 = vand.u32 %v49, 4294901760
    %v711 = vsub.f32 %v49, %v710
    %712 = vmatpush1.msra.mxu0 %v711
    %v713 = vand.u32 %v53, 4294901760
    %v714 = vsub.f32 %v53, %v713
    %715 = vmatprep.subr.mxu0 %v714
    %v716 = vand.u32 %v52, 4294901760
    %v717 = vsub.f32 %v52, %v716
    %718 = vmatpush1.msra.mxu0 %v717
    %v719 = vand.u32 %v56, 4294901760
    %v720 = vsub.f32 %v56, %v719
    %721 = vmatprep.subr.mxu0 %v720
    %v722 = vand.u32 %v55, 4294901760
    %v723 = vsub.f32 %v55, %v722
    %724 = vmatpush1.msra.mxu0 %v723
    %v725 = vand.u32 %v59, 4294901760
    %v726 = vsub.f32 %v59, %v725
    %727 = vmatprep.subr.mxu0 %v726
    %v728 = vand.u32 %v58, 4294901760
    %v729 = vsub.f32 %v58, %v728
    %730 = vmatpush1.msra.mxu0 %v729
    %v731 = vand.u32 %v62, 4294901760
    %v732 = vsub.f32 %v62, %v731
    %733 = vmatprep.subr.mxu0 %v732
    %v734 = vand.u32 %v61, 4294901760
    %v735 = vsub.f32 %v61, %v734
    %736 = vmatpush1.msra.mxu0 %v735
    %v737 = vand.u32 %v65, 4294901760
    %v738 = vsub.f32 %v65, %v737
    %739 = vmatprep.subr.mxu0 %v738
    %v740 = vand.u32 %v64, 4294901760
    %v741 = vsub.f32 %v64, %v740
    %742 = vmatpush1.msra.mxu0 %v741
    %v743 = vand.u32 %v68, 4294901760
    %v744 = vsub.f32 %v68, %v743
    %745 = vmatprep.subr.mxu0 %v744
    %v746 = vand.u32 %v67, 4294901760
    %v747 = vsub.f32 %v67, %v746
    %748 = vmatpush1.msra.mxu0 %v747
    %v749 = vand.u32 %v71, 4294901760
    %v750 = vsub.f32 %v71, %v749
    %751 = vmatprep.subr.mxu0 %v750
    %v752 = vand.u32 %v70, 4294901760
    %v753 = vsub.f32 %v70, %v752
    %754 = vmatpush1.msra.mxu0 %v753
    %v755 = vand.u32 %v74, 4294901760
    %v756 = vsub.f32 %v74, %v755
    %757 = vmatprep.subr.mxu0 %v756
    %v758 = vand.u32 %v73, 4294901760
    %v759 = vsub.f32 %v73, %v758
    %760 = vmatpush1.msra.mxu0 %v759
    %v761 = vand.u32 %v77, 4294901760
    %v762 = vsub.f32 %v77, %v761
    %763 = vmatprep.subr.mxu0 %v762
    %v764 = vand.u32 %v76, 4294901760
    %v765 = vsub.f32 %v76, %v764
    %766 = vmatpush1.msra.mxu0 %v765
    %v767 = vand.u32 %v80, 4294901760
    %v768 = vsub.f32 %v80, %v767
    %769 = vmatprep.subr.mxu0 %v768
    %v770 = vand.u32 %v79, 4294901760
    %v771 = vsub.f32 %v79, %v770
    %772 = vmatpush1.msra.mxu0 %v771
    %v773 = vand.u32 %v83, 4294901760
    %v774 = vsub.f32 %v83, %v773
    %775 = vmatprep.subr.mxu0 %v774
    %v776 = vand.u32 %v82, 4294901760
    %v777 = vsub.f32 %v82, %v776
    %778 = vmatpush1.msra.mxu0 %v777
    %v779 = vand.u32 %v86, 4294901760
    %v780 = vsub.f32 %v86, %v779
    %781 = vmatprep.subr.mxu0 %v780
    %v782 = vand.u32 %v85, 4294901760
    %v783 = vsub.f32 %v85, %v782
    %784 = vmatpush1.msra.mxu0 %v783
    %v785 = vand.u32 %v89, 4294901760
    %v786 = vsub.f32 %v89, %v785
    %787 = vmatprep.subr.mxu0 %v786
    %v788 = vand.u32 %v88, 4294901760
    %v789 = vsub.f32 %v88, %v788
    %790 = vmatpush1.msra.mxu0 %v789
    %v791 = vand.u32 %v92, 4294901760
    %v792 = vsub.f32 %v92, %v791
    %793 = vmatprep.subr.mxu0 %v792
    %v794 = vand.u32 %v91, 4294901760
    %v795 = vsub.f32 %v91, %v794
    %796 = vmatpush1.msra.mxu0 %v795
    %v797 = vand.u32 %v95, 4294901760
    %v798 = vsub.f32 %v95, %v797
    %799 = vmatprep.subr.mxu0 %v798
    %v800 = vand.u32 %v94, 4294901760
    %v801 = vsub.f32 %v94, %v800
    %802 = vmatpush1.msra.mxu0 %v801
    %v803 = vand.u32 %v98, 4294901760
    %v804 = vsub.f32 %v98, %v803
    %805 = vmatprep.subr.mxu0 %v804
    %v806 = vand.u32 %v97, 4294901760
    %v807 = vsub.f32 %v97, %v806
    %808 = vmatpush1.msra.mxu0 %v807
    %v809 = vand.u32 %v101, 4294901760
    %v810 = vsub.f32 %v101, %v809
    %811 = vmatprep.subr.mxu0 %v810
    %v812 = vand.u32 %v100, 4294901760
    %v813 = vsub.f32 %v100, %v812
    %814 = vmatpush1.msra.mxu0 %v813
    %v815 = vand.u32 %v104, 4294901760
    %v816 = vsub.f32 %v104, %v815
    %817 = vmatprep.subr.mxu0 %v816
    %v818 = vand.u32 %v103, 4294901760
    %v819 = vsub.f32 %v103, %v818
    %820 = vmatpush1.msra.mxu0 %v819
    %v821 = vand.u32 %v107, 4294901760
    %v822 = vsub.f32 %v107, %v821
    %823 = vmatprep.subr.mxu0 %v822
    %v824 = vand.u32 %v106, 4294901760
    %v825 = vsub.f32 %v106, %v824
    %826 = vmatpush1.msra.mxu0 %v825
    %v827 = vand.u32 %v110, 4294901760
    %v828 = vsub.f32 %v110, %v827
    %829 = vmatprep.subr.mxu0 %v828
    %v830 = vand.u32 %v109, 4294901760
    %v831 = vsub.f32 %v109, %v830
    %832 = vmatpush1.msra.mxu0 %v831
    %v833 = vand.u32 %v113, 4294901760
    %v834 = vsub.f32 %v113, %v833
    %835 = vmatprep.subr.mxu0 %v834
    %v836 = vand.u32 %v112, 4294901760
    %v837 = vsub.f32 %v112, %v836
    %838 = vmatpush1.msra.mxu0 %v837
    %v839 = vand.u32 %v116, 4294901760
    %v840 = vsub.f32 %v116, %v839
    %841 = vmatprep.subr.mxu0 %v840
    %v842 = vand.u32 %v115, 4294901760
    %v843 = vsub.f32 %v115, %v842
    %844 = vmatpush1.msra.mxu0 %v843
    %v845 = vand.u32 %v119, 4294901760
    %v846 = vsub.f32 %v119, %v845
    %847 = vmatprep.subr.mxu0 %v846
    %v848 = vand.u32 %v118, 4294901760
    %v849 = vsub.f32 %v118, %v848
    %850 = vmatpush1.msra.mxu0 %v849
    %v851 = vand.u32 %v122, 4294901760
    %v852 = vsub.f32 %v122, %v851
    %853 = vmatprep.subr.mxu0 %v852
    %v854 = vand.u32 %v121, 4294901760
    %v855 = vsub.f32 %v121, %v854
    %856 = vmatpush1.msra.mxu0 %v855
    %v857 = vand.u32 %v125, 4294901760
    %v858 = vsub.f32 %v125, %v857
    %859 = vmatprep.subr.mxu0 %v858
    %v860 = vand.u32 %v124, 4294901760
    %v861 = vsub.f32 %v124, %v860
    %862 = vmatpush1.msra.mxu0 %v861
    %v863 = vand.u32 %v128, 4294901760
    %v864 = vsub.f32 %v128, %v863
    %865 = vmatprep.subr.mxu0 %v864
    %v866 = vand.u32 %v127, 4294901760
    %v867 = vsub.f32 %v127, %v866
    %868 = vmatpush1.msra.mxu0 %v867
    %v869 = vand.u32 %v131, 4294901760
    %v870 = vsub.f32 %v131, %v869
    %871 = vmatprep.subr.mxu0 %v870
    %v872 = vand.u32 %v130, 4294901760
    %v873 = vsub.f32 %v130, %v872
    %874 = vmatpush1.msra.mxu0 %v873
    %v875 = vand.u32 %v134, 4294901760
    %v876 = vsub.f32 %v134, %v875
    %877 = vmatprep.subr.mxu0 %v876
    %v878 = vand.u32 %v133, 4294901760
    %v879 = vsub.f32 %v133, %v878
    %880 = vmatpush1.msra.mxu0 %v879
    %v881 = vand.u32 %v137, 4294901760
    %v882 = vsub.f32 %v137, %v881
    %883 = vmatprep.subr.mxu0 %v882
    %v884 = vand.u32 %v136, 4294901760
    %v885 = vsub.f32 %v136, %v884
    %886 = vmatpush1.msra.mxu0 %v885
    %v887 = vand.u32 %v140, 4294901760
    %v888 = vsub.f32 %v140, %v887
    %889 = vmatprep.subr.mxu0 %v888
    %v890 = vand.u32 %v139, 4294901760
    %v891 = vsub.f32 %v139, %v890
    %892 = vmatpush1.msra.mxu0 %v891
    %v893 = vand.u32 %v143, 4294901760
    %v894 = vsub.f32 %v143, %v893
    %895 = vmatprep.subr.mxu0 %v894
    %v896 = vand.u32 %v142, 4294901760
    %v897 = vsub.f32 %v142, %v896
    %898 = vmatpush1.msra.mxu0 %v897
    %v899 = vand.u32 %v46, 4294901760
    %v900 = vsub.f32 %v46, %v899
    %901 = vmatprep.mubr.f32.mxu0 %v900
    %v902 = vand.u32 %v45, 4294901760
    %v903 = vsub.f32 %v45, %v902
    %904 = vmatmul.mubr.f32.gmra.mrb[0].mxu0 %v903
    %v905 = vpop.f32.mrb[0].mxu0
    %v906 = vadd.f32 %v695, %v905
    %v907 = vpop.f32.mrb[0].mxu0
    %v908 = vadd.f32 %v697, %v907
    %v909 = vand.u32 %v48, 4294901760
    %v910 = vsub.f32 %v48, %v909
    %911 = vmatprep.mubr.f32.mxu0 %v910
    %v912 = vand.u32 %v47, 4294901760
    %v913 = vsub.f32 %v47, %v912
    %914 = vmatmul.mubr.f32.gmra.mrb[0].mxu0 %v913
    %v915 = vpop.f32.mrb[0].mxu0
    %v916 = vadd.f32 %v703, %v915
    %v917 = vpop.f32.mrb[0].mxu0
    %v918 = vadd.f32 %v705, %v917
    %919 = vdwg.mxu0
    %v920 = vand.u32 %v50, 4294901760
    %921 = vmatprep.subr.mxu0 %v920
    %v922 = vand.u32 %v49, 4294901760
    %923 = vmatpush1.msra.mxu0 %v922
    %v924 = vand.u32 %v53, 4294901760
    %925 = vmatprep.subr.mxu0 %v924
    %v926 = vand.u32 %v52, 4294901760
    %927 = vmatpush1.msra.mxu0 %v926
    %v928 = vand.u32 %v56, 4294901760
    %929 = vmatprep.subr.mxu0 %v928
    %v930 = vand.u32 %v55, 4294901760
    %931 = vmatpush1.msra.mxu0 %v930
    %v932 = vand.u32 %v59, 4294901760
    %933 = vmatprep.subr.mxu0 %v932
    %v934 = vand.u32 %v58, 4294901760
    %935 = vmatpush1.msra.mxu0 %v934
    %v936 = vand.u32 %v62, 4294901760
    %937 = vmatprep.subr.mxu0 %v936
    %v938 = vand.u32 %v61, 4294901760
    %939 = vmatpush1.msra.mxu0 %v938
    %v940 = vand.u32 %v65, 4294901760
    %941 = vmatprep.subr.mxu0 %v940
    %v942 = vand.u32 %v64, 4294901760
    %943 = vmatpush1.msra.mxu0 %v942
    %v944 = vand.u32 %v68, 4294901760
    %945 = vmatprep.subr.mxu0 %v944
    %v946 = vand.u32 %v67, 4294901760
    %947 = vmatpush1.msra.mxu0 %v946
    %v948 = vand.u32 %v71, 4294901760
    %949 = vmatprep.subr.mxu0 %v948
    %v950 = vand.u32 %v70, 4294901760
    %951 = vmatpush1.msra.mxu0 %v950
    %v952 = vand.u32 %v74, 4294901760
    %953 = vmatprep.subr.mxu0 %v952
    %v954 = vand.u32 %v73, 4294901760
    %955 = vmatpush1.msra.mxu0 %v954
    %v956 = vand.u32 %v77, 4294901760
    %957 = vmatprep.subr.mxu0 %v956
    %v958 = vand.u32 %v76, 4294901760
    %959 = vmatpush1.msra.mxu0 %v958
    %v960 = vand.u32 %v80, 4294901760
    %961 = vmatprep.subr.mxu0 %v960
    %v962 = vand.u32 %v79, 4294901760
    %963 = vmatpush1.msra.mxu0 %v962
    %v964 = vand.u32 %v83, 4294901760
    %965 = vmatprep.subr.mxu0 %v964
    %v966 = vand.u32 %v82, 4294901760
    %967 = vmatpush1.msra.mxu0 %v966
    %v968 = vand.u32 %v86, 4294901760
    %969 = vmatprep.subr.mxu0 %v968
    %v970 = vand.u32 %v85, 4294901760
    %971 = vmatpush1.msra.mxu0 %v970
    %v972 = vand.u32 %v89, 4294901760
    %973 = vmatprep.subr.mxu0 %v972
    %v974 = vand.u32 %v88, 4294901760
    %975 = vmatpush1.msra.mxu0 %v974
    %v976 = vand.u32 %v92, 4294901760
    %977 = vmatprep.subr.mxu0 %v976
    %v978 = vand.u32 %v91, 4294901760
    %979 = vmatpush1.msra.mxu0 %v978
    %v980 = vand.u32 %v95, 4294901760
    %981 = vmatprep.subr.mxu0 %v980
    %v982 = vand.u32 %v94, 4294901760
    %983 = vmatpush1.msra.mxu0 %v982
    %v984 = vand.u32 %v98, 4294901760
    %985 = vmatprep.subr.mxu0 %v984
    %v986 = vand.u32 %v97, 4294901760
    %987 = vmatpush1.msra.mxu0 %v986
    %v988 = vand.u32 %v101, 4294901760
    %989 = vmatprep.subr.mxu0 %v988
    %v990 = vand.u32 %v100, 4294901760
    %991 = vmatpush1.msra.mxu0 %v990
    %v992 = vand.u32 %v104, 4294901760
    %993 = vmatprep.subr.mxu0 %v992
    %v994 = vand.u32 %v103, 4294901760
    %995 = vmatpush1.msra.mxu0 %v994
    %v996 = vand.u32 %v107, 4294901760
    %997 = vmatprep.subr.mxu0 %v996
    %v998 = vand.u32 %v106, 4294901760
    %999 = vmatpush1.msra.mxu0 %v998
    %v1000 = vand.u32 %v110, 4294901760
    %1001 = vmatprep.subr.mxu0 %v1000
    %v1002 = vand.u32 %v109, 4294901760
    %1003 = vmatpush1.msra.mxu0 %v1002
    %v1004 = vand.u32 %v113, 4294901760
    %1005 = vmatprep.subr.mxu0 %v1004
    %v1006 = vand.u32 %v112, 4294901760
    %1007 = vmatpush1.msra.mxu0 %v1006
    %v1008 = vand.u32 %v116, 4294901760
    %1009 = vmatprep.subr.mxu0 %v1008
    %v1010 = vand.u32 %v115, 4294901760
    %1011 = vmatpush1.msra.mxu0 %v1010
    %v1012 = vand.u32 %v119, 4294901760
    %1013 = vmatprep.subr.mxu0 %v1012
    %v1014 = vand.u32 %v118, 4294901760
    %1015 = vmatpush1.msra.mxu0 %v1014
    %v1016 = vand.u32 %v122, 4294901760
    %1017 = vmatprep.subr.mxu0 %v1016
    %v1018 = vand.u32 %v121, 4294901760
    %1019 = vmatpush1.msra.mxu0 %v1018
    %v1020 = vand.u32 %v125, 4294901760
    %1021 = vmatprep.subr.mxu0 %v1020
    %v1022 = vand.u32 %v124, 4294901760
    %1023 = vmatpush1.msra.mxu0 %v1022
    %v1024 = vand.u32 %v128, 4294901760
    %1025 = vmatprep.subr.mxu0 %v1024
    %v1026 = vand.u32 %v127, 4294901760
    %1027 = vmatpush1.msra.mxu0 %v1026
    %v1028 = vand.u32 %v131, 4294901760
    %1029 = vmatprep.subr.mxu0 %v1028
    %v1030 = vand.u32 %v130, 4294901760
    %1031 = vmatpush1.msra.mxu0 %v1030
    %v1032 = vand.u32 %v134, 4294901760
    %1033 = vmatprep.subr.mxu0 %v1032
    %v1034 = vand.u32 %v133, 4294901760
    %1035 = vmatpush1.msra.mxu0 %v1034
    %v1036 = vand.u32 %v137, 4294901760
    %1037 = vmatprep.subr.mxu0 %v1036
    %v1038 = vand.u32 %v136, 4294901760
    %1039 = vmatpush1.msra.mxu0 %v1038
    %v1040 = vand.u32 %v140, 4294901760
    %1041 = vmatprep.subr.mxu0 %v1040
    %v1042 = vand.u32 %v139, 4294901760
    %1043 = vmatpush1.msra.mxu0 %v1042
    %v1044 = vand.u32 %v143, 4294901760
    %1045 = vmatprep.subr.mxu0 %v1044
    %v1046 = vand.u32 %v142, 4294901760
    %1047 = vmatpush1.msra.mxu0 %v1046
    %v1048 = vand.u32 %v46, 4294901760
    %v1049 = vsub.f32 %v46, %v1048
    %v1050 = vand.u32 %v1049, 4294901760
    %1051 = vmatprep.mubr.f32.mxu0 %v1050
    %v1052 = vand.u32 %v45, 4294901760
    %v1053 = vsub.f32 %v45, %v1052
    %v1054 = vand.u32 %v1053, 4294901760
    %1055 = vmatmul.mubr.f32.gmra.mrb[0].mxu0 %v1054
    %v1056 = vpop.f32.mrb[0].mxu0
    %v1057 = vadd.f32 %v906, %v1056
    %v1058 = vpop.f32.mrb[0].mxu0
    %v1059 = vadd.f32 %v908, %v1058
    %v1060 = vand.u32 %v48, 4294901760
    %v1061 = vsub.f32 %v48, %v1060
    %v1062 = vand.u32 %v1061, 4294901760
    %1063 = vmatprep.mubr.f32.mxu0 %v1062
    %v1064 = vand.u32 %v47, 4294901760
    %v1065 = vsub.f32 %v47, %v1064
    %v1066 = vand.u32 %v1065, 4294901760
    %1067 = vmatmul.mubr.f32.gmra.mrb[0].mxu0 %v1066
    %v1068 = vpop.f32.mrb[0].mxu0
    %v1069 = vadd.f32 %v916, %v1068
    %v1070 = vpop.f32.mrb[0].mxu0
    %v1071 = vadd.f32 %v918, %v1070
    %1072 = vdwg.mxu0
    %v1073 = vand.u32 %v50, 4294901760
    %v1074 = vsub.f32 %v50, %v1073
    %v1075 = vand.u32 %v1074, 4294901760
    %1076 = vmatprep.subr.mxu0 %v1075
    %v1077 = vand.u32 %v49, 4294901760
    %v1078 = vsub.f32 %v49, %v1077
    %v1079 = vand.u32 %v1078, 4294901760
    %1080 = vmatpush1.msra.mxu0 %v1079
    %v1081 = vand.u32 %v53, 4294901760
    %v1082 = vsub.f32 %v53, %v1081
    %v1083 = vand.u32 %v1082, 4294901760
    %1084 = vmatprep.subr.mxu0 %v1083
    %v1085 = vand.u32 %v52, 4294901760
    %v1086 = vsub.f32 %v52, %v1085
    %v1087 = vand.u32 %v1086, 4294901760
    %1088 = vmatpush1.msra.mxu0 %v1087
    %v1089 = vand.u32 %v56, 4294901760
    %v1090 = vsub.f32 %v56, %v1089
    %v1091 = vand.u32 %v1090, 4294901760
    %1092 = vmatprep.subr.mxu0 %v1091
    %v1093 = vand.u32 %v55, 4294901760
    %v1094 = vsub.f32 %v55, %v1093
    %v1095 = vand.u32 %v1094, 4294901760
    %1096 = vmatpush1.msra.mxu0 %v1095
    %v1097 = vand.u32 %v59, 4294901760
    %v1098 = vsub.f32 %v59, %v1097
    %v1099 = vand.u32 %v1098, 4294901760
    %1100 = vmatprep.subr.mxu0 %v1099
    %v1101 = vand.u32 %v58, 4294901760
    %v1102 = vsub.f32 %v58, %v1101
    %v1103 = vand.u32 %v1102, 4294901760
    %1104 = vmatpush1.msra.mxu0 %v1103
    %v1105 = vand.u32 %v62, 4294901760
    %v1106 = vsub.f32 %v62, %v1105
    %v1107 = vand.u32 %v1106, 4294901760
    %1108 = vmatprep.subr.mxu0 %v1107
    %v1109 = vand.u32 %v61, 4294901760
    %v1110 = vsub.f32 %v61, %v1109
    %v1111 = vand.u32 %v1110, 4294901760
    %1112 = vmatpush1.msra.mxu0 %v1111
    %v1113 = vand.u32 %v65, 4294901760
    %v1114 = vsub.f32 %v65, %v1113
    %v1115 = vand.u32 %v1114, 4294901760
    %1116 = vmatprep.subr.mxu0 %v1115
    %v1117 = vand.u32 %v64, 4294901760
    %v1118 = vsub.f32 %v64, %v1117
    %v1119 = vand.u32 %v1118, 4294901760
    %1120 = vmatpush1.msra.mxu0 %v1119
    %v1121 = vand.u32 %v68, 4294901760
    %v1122 = vsub.f32 %v68, %v1121
    %v1123 = vand.u32 %v1122, 4294901760
    %1124 = vmatprep.subr.mxu0 %v1123
    %v1125 = vand.u32 %v67, 4294901760
    %v1126 = vsub.f32 %v67, %v1125
    %v1127 = vand.u32 %v1126, 4294901760
    %1128 = vmatpush1.msra.mxu0 %v1127
    %v1129 = vand.u32 %v71, 4294901760
    %v1130 = vsub.f32 %v71, %v1129
    %v1131 = vand.u32 %v1130, 4294901760
    %1132 = vmatprep.subr.mxu0 %v1131
    %v1133 = vand.u32 %v70, 4294901760
    %v1134 = vsub.f32 %v70, %v1133
    %v1135 = vand.u32 %v1134, 4294901760
    %1136 = vmatpush1.msra.mxu0 %v1135
    %v1137 = vand.u32 %v74, 4294901760
    %v1138 = vsub.f32 %v74, %v1137
    %v1139 = vand.u32 %v1138, 4294901760
    %1140 = vmatprep.subr.mxu0 %v1139
    %v1141 = vand.u32 %v73, 4294901760
    %v1142 = vsub.f32 %v73, %v1141
    %v1143 = vand.u32 %v1142, 4294901760
    %1144 = vmatpush1.msra.mxu0 %v1143
    %v1145 = vand.u32 %v77, 4294901760
    %v1146 = vsub.f32 %v77, %v1145
    %v1147 = vand.u32 %v1146, 4294901760
    %1148 = vmatprep.subr.mxu0 %v1147
    %v1149 = vand.u32 %v76, 4294901760
    %v1150 = vsub.f32 %v76, %v1149
    %v1151 = vand.u32 %v1150, 4294901760
    %1152 = vmatpush1.msra.mxu0 %v1151
    %v1153 = vand.u32 %v80, 4294901760
    %v1154 = vsub.f32 %v80, %v1153
    %v1155 = vand.u32 %v1154, 4294901760
    %1156 = vmatprep.subr.mxu0 %v1155
    %v1157 = vand.u32 %v79, 4294901760
    %v1158 = vsub.f32 %v79, %v1157
    %v1159 = vand.u32 %v1158, 4294901760
    %1160 = vmatpush1.msra.mxu0 %v1159
    %v1161 = vand.u32 %v83, 4294901760
    %v1162 = vsub.f32 %v83, %v1161
    %v1163 = vand.u32 %v1162, 4294901760
    %1164 = vmatprep.subr.mxu0 %v1163
    %v1165 = vand.u32 %v82, 4294901760
    %v1166 = vsub.f32 %v82, %v1165
    %v1167 = vand.u32 %v1166, 4294901760
    %1168 = vmatpush1.msra.mxu0 %v1167
    %v1169 = vand.u32 %v86, 4294901760
    %v1170 = vsub.f32 %v86, %v1169
    %v1171 = vand.u32 %v1170, 4294901760
    %1172 = vmatprep.subr.mxu0 %v1171
    %v1173 = vand.u32 %v85, 4294901760
    %v1174 = vsub.f32 %v85, %v1173
    %v1175 = vand.u32 %v1174, 4294901760
    %1176 = vmatpush1.msra.mxu0 %v1175
    %v1177 = vand.u32 %v89, 4294901760
    %v1178 = vsub.f32 %v89, %v1177
    %v1179 = vand.u32 %v1178, 4294901760
    %1180 = vmatprep.subr.mxu0 %v1179
    %v1181 = vand.u32 %v88, 4294901760
    %v1182 = vsub.f32 %v88, %v1181
    %v1183 = vand.u32 %v1182, 4294901760
    %1184 = vmatpush1.msra.mxu0 %v1183
    %v1185 = vand.u32 %v92, 4294901760
    %v1186 = vsub.f32 %v92, %v1185
    %v1187 = vand.u32 %v1186, 4294901760
    %1188 = vmatprep.subr.mxu0 %v1187
    %v1189 = vand.u32 %v91, 4294901760
    %v1190 = vsub.f32 %v91, %v1189
    %v1191 = vand.u32 %v1190, 4294901760
    %1192 = vmatpush1.msra.mxu0 %v1191
    %v1193 = vand.u32 %v95, 4294901760
    %v1194 = vsub.f32 %v95, %v1193
    %v1195 = vand.u32 %v1194, 4294901760
    %1196 = vmatprep.subr.mxu0 %v1195
    %v1197 = vand.u32 %v94, 4294901760
    %v1198 = vsub.f32 %v94, %v1197
    %v1199 = vand.u32 %v1198, 4294901760
    %1200 = vmatpush1.msra.mxu0 %v1199
    %v1201 = vand.u32 %v98, 4294901760
    %v1202 = vsub.f32 %v98, %v1201
    %v1203 = vand.u32 %v1202, 4294901760
    %1204 = vmatprep.subr.mxu0 %v1203
    %v1205 = vand.u32 %v97, 4294901760
    %v1206 = vsub.f32 %v97, %v1205
    %v1207 = vand.u32 %v1206, 4294901760
    %1208 = vmatpush1.msra.mxu0 %v1207
    %v1209 = vand.u32 %v101, 4294901760
    %v1210 = vsub.f32 %v101, %v1209
    %v1211 = vand.u32 %v1210, 4294901760
    %1212 = vmatprep.subr.mxu0 %v1211
    %v1213 = vand.u32 %v100, 4294901760
    %v1214 = vsub.f32 %v100, %v1213
    %v1215 = vand.u32 %v1214, 4294901760
    %1216 = vmatpush1.msra.mxu0 %v1215
    %v1217 = vand.u32 %v104, 4294901760
    %v1218 = vsub.f32 %v104, %v1217
    %v1219 = vand.u32 %v1218, 4294901760
    %1220 = vmatprep.subr.mxu0 %v1219
    %v1221 = vand.u32 %v103, 4294901760
    %v1222 = vsub.f32 %v103, %v1221
    %v1223 = vand.u32 %v1222, 4294901760
    %1224 = vmatpush1.msra.mxu0 %v1223
    %v1225 = vand.u32 %v107, 4294901760
    %v1226 = vsub.f32 %v107, %v1225
    %v1227 = vand.u32 %v1226, 4294901760
    %1228 = vmatprep.subr.mxu0 %v1227
    %v1229 = vand.u32 %v106, 4294901760
    %v1230 = vsub.f32 %v106, %v1229
    %v1231 = vand.u32 %v1230, 4294901760
    %1232 = vmatpush1.msra.mxu0 %v1231
    %v1233 = vand.u32 %v110, 4294901760
    %v1234 = vsub.f32 %v110, %v1233
    %v1235 = vand.u32 %v1234, 4294901760
    %1236 = vmatprep.subr.mxu0 %v1235
    %v1237 = vand.u32 %v109, 4294901760
    %v1238 = vsub.f32 %v109, %v1237
    %v1239 = vand.u32 %v1238, 4294901760
    %1240 = vmatpush1.msra.mxu0 %v1239
    %v1241 = vand.u32 %v113, 4294901760
    %v1242 = vsub.f32 %v113, %v1241
    %v1243 = vand.u32 %v1242, 4294901760
    %1244 = vmatprep.subr.mxu0 %v1243
    %v1245 = vand.u32 %v112, 4294901760
    %v1246 = vsub.f32 %v112, %v1245
    %v1247 = vand.u32 %v1246, 4294901760
    %1248 = vmatpush1.msra.mxu0 %v1247
    %v1249 = vand.u32 %v116, 4294901760
    %v1250 = vsub.f32 %v116, %v1249
    %v1251 = vand.u32 %v1250, 4294901760
    %1252 = vmatprep.subr.mxu0 %v1251
    %v1253 = vand.u32 %v115, 4294901760
    %v1254 = vsub.f32 %v115, %v1253
    %v1255 = vand.u32 %v1254, 4294901760
    %1256 = vmatpush1.msra.mxu0 %v1255
    %v1257 = vand.u32 %v119, 4294901760
    %v1258 = vsub.f32 %v119, %v1257
    %v1259 = vand.u32 %v1258, 4294901760
    %1260 = vmatprep.subr.mxu0 %v1259
    %v1261 = vand.u32 %v118, 4294901760
    %v1262 = vsub.f32 %v118, %v1261
    %v1263 = vand.u32 %v1262, 4294901760
    %1264 = vmatpush1.msra.mxu0 %v1263
    %v1265 = vand.u32 %v122, 4294901760
    %v1266 = vsub.f32 %v122, %v1265
    %v1267 = vand.u32 %v1266, 4294901760
    %1268 = vmatprep.subr.mxu0 %v1267
    %v1269 = vand.u32 %v121, 4294901760
    %v1270 = vsub.f32 %v121, %v1269
    %v1271 = vand.u32 %v1270, 4294901760
    %1272 = vmatpush1.msra.mxu0 %v1271
    %v1273 = vand.u32 %v125, 4294901760
    %v1274 = vsub.f32 %v125, %v1273
    %v1275 = vand.u32 %v1274, 4294901760
    %1276 = vmatprep.subr.mxu0 %v1275
    %v1277 = vand.u32 %v124, 4294901760
    %v1278 = vsub.f32 %v124, %v1277
    %v1279 = vand.u32 %v1278, 4294901760
    %1280 = vmatpush1.msra.mxu0 %v1279
    %v1281 = vand.u32 %v128, 4294901760
    %v1282 = vsub.f32 %v128, %v1281
    %v1283 = vand.u32 %v1282, 4294901760
    %1284 = vmatprep.subr.mxu0 %v1283
    %v1285 = vand.u32 %v127, 4294901760
    %v1286 = vsub.f32 %v127, %v1285
    %v1287 = vand.u32 %v1286, 4294901760
    %1288 = vmatpush1.msra.mxu0 %v1287
    %v1289 = vand.u32 %v131, 4294901760
    %v1290 = vsub.f32 %v131, %v1289
    %v1291 = vand.u32 %v1290, 4294901760
    %1292 = vmatprep.subr.mxu0 %v1291
    %v1293 = vand.u32 %v130, 4294901760
    %v1294 = vsub.f32 %v130, %v1293
    %v1295 = vand.u32 %v1294, 4294901760
    %1296 = vmatpush1.msra.mxu0 %v1295
    %v1297 = vand.u32 %v134, 4294901760
    %v1298 = vsub.f32 %v134, %v1297
    %v1299 = vand.u32 %v1298, 4294901760
    %1300 = vmatprep.subr.mxu0 %v1299
    %v1301 = vand.u32 %v133, 4294901760
    %v1302 = vsub.f32 %v133, %v1301
    %v1303 = vand.u32 %v1302, 4294901760
    %1304 = vmatpush1.msra.mxu0 %v1303
    %v1305 = vand.u32 %v137, 4294901760
    %v1306 = vsub.f32 %v137, %v1305
    %v1307 = vand.u32 %v1306, 4294901760
    %1308 = vmatprep.subr.mxu0 %v1307
    %v1309 = vand.u32 %v136, 4294901760
    %v1310 = vsub.f32 %v136, %v1309
    %v1311 = vand.u32 %v1310, 4294901760
    %1312 = vmatpush1.msra.mxu0 %v1311
    %v1313 = vand.u32 %v140, 4294901760
    %v1314 = vsub.f32 %v140, %v1313
    %v1315 = vand.u32 %v1314, 4294901760
    %1316 = vmatprep.subr.mxu0 %v1315
    %v1317 = vand.u32 %v139, 4294901760
    %v1318 = vsub.f32 %v139, %v1317
    %v1319 = vand.u32 %v1318, 4294901760
    %1320 = vmatpush1.msra.mxu0 %v1319
    %v1321 = vand.u32 %v143, 4294901760
    %v1322 = vsub.f32 %v143, %v1321
    %v1323 = vand.u32 %v1322, 4294901760
    %1324 = vmatprep.subr.mxu0 %v1323
    %v1325 = vand.u32 %v142, 4294901760
    %v1326 = vsub.f32 %v142, %v1325
    %v1327 = vand.u32 %v1326, 4294901760
    %1328 = vmatpush1.msra.mxu0 %v1327
    %v1329 = vand.u32 %v46, 4294901760
    %1330 = vmatprep.mubr.f32.mxu0 %v1329
    %v1331 = vand.u32 %v45, 4294901760
    %1332 = vmatmul.mubr.f32.gmra.mrb[0].mxu0 %v1331
    %v1333 = vpop.f32.mrb[0].mxu0
    %v1334 = vadd.f32 %v1057, %v1333
    %v1335 = vpop.f32.mrb[0].mxu0
    %v1336 = vadd.f32 %v1059, %v1335
    %v1337 = vand.u32 %v48, 4294901760
    %1338 = vmatprep.mubr.f32.mxu0 %v1337
    %v1339 = vand.u32 %v47, 4294901760
    %1340 = vmatmul.mubr.f32.gmra.mrb[0].mxu0 %v1339
    %v1341 = vpop.f32.mrb[0].mxu0
    %v1342 = vadd.f32 %v1069, %v1341
    %v1343 = vpop.f32.mrb[0].mxu0
    %v1344 = vadd.f32 %v1071, %v1343
    %1345 = vdwg.mxu0
    %v1346 = vand.u32 %v50, 4294901760
    %1347 = vmatprep.subr.mxu0 %v1346
    %v1348 = vand.u32 %v49, 4294901760
    %1349 = vmatpush1.msra.mxu0 %v1348
    %v1350 = vand.u32 %v53, 4294901760
    %1351 = vmatprep.subr.mxu0 %v1350
    %v1352 = vand.u32 %v52, 4294901760
    %1353 = vmatpush1.msra.mxu0 %v1352
    %v1354 = vand.u32 %v56, 4294901760
    %1355 = vmatprep.subr.mxu0 %v1354
    %v1356 = vand.u32 %v55, 4294901760
    %1357 = vmatpush1.msra.mxu0 %v1356
    %v1358 = vand.u32 %v59, 4294901760
    %1359 = vmatprep.subr.mxu0 %v1358
    %v1360 = vand.u32 %v58, 4294901760
    %1361 = vmatpush1.msra.mxu0 %v1360
    %v1362 = vand.u32 %v62, 4294901760
    %1363 = vmatprep.subr.mxu0 %v1362
    %v1364 = vand.u32 %v61, 4294901760
    %1365 = vmatpush1.msra.mxu0 %v1364
    %v1366 = vand.u32 %v65, 4294901760
    %1367 = vmatprep.subr.mxu0 %v1366
    %v1368 = vand.u32 %v64, 4294901760
    %1369 = vmatpush1.msra.mxu0 %v1368
    %v1370 = vand.u32 %v68, 4294901760
    %1371 = vmatprep.subr.mxu0 %v1370
    %v1372 = vand.u32 %v67, 4294901760
    %1373 = vmatpush1.msra.mxu0 %v1372
    %v1374 = vand.u32 %v71, 4294901760
    %1375 = vmatprep.subr.mxu0 %v1374
    %v1376 = vand.u32 %v70, 4294901760
    %1377 = vmatpush1.msra.mxu0 %v1376
    %v1378 = vand.u32 %v74, 4294901760
    %1379 = vmatprep.subr.mxu0 %v1378
    %v1380 = vand.u32 %v73, 4294901760
    %1381 = vmatpush1.msra.mxu0 %v1380
    %v1382 = vand.u32 %v77, 4294901760
    %1383 = vmatprep.subr.mxu0 %v1382
    %v1384 = vand.u32 %v76, 4294901760
    %1385 = vmatpush1.msra.mxu0 %v1384
    %v1386 = vand.u32 %v80, 4294901760
    %1387 = vmatprep.subr.mxu0 %v1386
    %v1388 = vand.u32 %v79, 4294901760
    %1389 = vmatpush1.msra.mxu0 %v1388
    %v1390 = vand.u32 %v83, 4294901760
    %1391 = vmatprep.subr.mxu0 %v1390
    %v1392 = vand.u32 %v82, 4294901760
    %1393 = vmatpush1.msra.mxu0 %v1392
    %v1394 = vand.u32 %v86, 4294901760
    %1395 = vmatprep.subr.mxu0 %v1394
    %v1396 = vand.u32 %v85, 4294901760
    %1397 = vmatpush1.msra.mxu0 %v1396
    %v1398 = vand.u32 %v89, 4294901760
    %1399 = vmatprep.subr.mxu0 %v1398
    %v1400 = vand.u32 %v88, 4294901760
    %1401 = vmatpush1.msra.mxu0 %v1400
    %v1402 = vand.u32 %v92, 4294901760
    %1403 = vmatprep.subr.mxu0 %v1402
    %v1404 = vand.u32 %v91, 4294901760
    %1405 = vmatpush1.msra.mxu0 %v1404
    %v1406 = vand.u32 %v95, 4294901760
    %1407 = vmatprep.subr.mxu0 %v1406
    %v1408 = vand.u32 %v94, 4294901760
    %1409 = vmatpush1.msra.mxu0 %v1408
    %v1410 = vand.u32 %v98, 4294901760
    %1411 = vmatprep.subr.mxu0 %v1410
    %v1412 = vand.u32 %v97, 4294901760
    %1413 = vmatpush1.msra.mxu0 %v1412
    %v1414 = vand.u32 %v101, 4294901760
    %1415 = vmatprep.subr.mxu0 %v1414
    %v1416 = vand.u32 %v100, 4294901760
    %1417 = vmatpush1.msra.mxu0 %v1416
    %v1418 = vand.u32 %v104, 4294901760
    %1419 = vmatprep.subr.mxu0 %v1418
    %v1420 = vand.u32 %v103, 4294901760
    %1421 = vmatpush1.msra.mxu0 %v1420
    %v1422 = vand.u32 %v107, 4294901760
    %1423 = vmatprep.subr.mxu0 %v1422
    %v1424 = vand.u32 %v106, 4294901760
    %1425 = vmatpush1.msra.mxu0 %v1424
    %v1426 = vand.u32 %v110, 4294901760
    %1427 = vmatprep.subr.mxu0 %v1426
    %v1428 = vand.u32 %v109, 4294901760
    %1429 = vmatpush1.msra.mxu0 %v1428
    %v1430 = vand.u32 %v113, 4294901760
    %1431 = vmatprep.subr.mxu0 %v1430
    %v1432 = vand.u32 %v112, 4294901760
    %1433 = vmatpush1.msra.mxu0 %v1432
    %v1434 = vand.u32 %v116, 4294901760
    %1435 = vmatprep.subr.mxu0 %v1434
    %v1436 = vand.u32 %v115, 4294901760
    %1437 = vmatpush1.msra.mxu0 %v1436
    %v1438 = vand.u32 %v119, 4294901760
    %1439 = vmatprep.subr.mxu0 %v1438
    %v1440 = vand.u32 %v118, 4294901760
    %1441 = vmatpush1.msra.mxu0 %v1440
    %v1442 = vand.u32 %v122, 4294901760
    %1443 = vmatprep.subr.mxu0 %v1442
    %v1444 = vand.u32 %v121, 4294901760
    %1445 = vmatpush1.msra.mxu0 %v1444
    %v1446 = vand.u32 %v125, 4294901760
    %1447 = vmatprep.subr.mxu0 %v1446
    %v1448 = vand.u32 %v124, 4294901760
    %1449 = vmatpush1.msra.mxu0 %v1448
    %v1450 = vand.u32 %v128, 4294901760
    %1451 = vmatprep.subr.mxu0 %v1450
    %v1452 = vand.u32 %v127, 4294901760
    %1453 = vmatpush1.msra.mxu0 %v1452
    %v1454 = vand.u32 %v131, 4294901760
    %1455 = vmatprep.subr.mxu0 %v1454
    %v1456 = vand.u32 %v130, 4294901760
    %1457 = vmatpush1.msra.mxu0 %v1456
    %v1458 = vand.u32 %v134, 4294901760
    %1459 = vmatprep.subr.mxu0 %v1458
    %v1460 = vand.u32 %v133, 4294901760
    %1461 = vmatpush1.msra.mxu0 %v1460
    %v1462 = vand.u32 %v137, 4294901760
    %1463 = vmatprep.subr.mxu0 %v1462
    %v1464 = vand.u32 %v136, 4294901760
    %1465 = vmatpush1.msra.mxu0 %v1464
    %v1466 = vand.u32 %v140, 4294901760
    %1467 = vmatprep.subr.mxu0 %v1466
    %v1468 = vand.u32 %v139, 4294901760
    %1469 = vmatpush1.msra.mxu0 %v1468
    %v1470 = vand.u32 %v143, 4294901760
    %1471 = vmatprep.subr.mxu0 %v1470
    %v1472 = vand.u32 %v142, 4294901760
    %1473 = vmatpush1.msra.mxu0 %v1472
    %v1474 = vand.u32 %v46, 4294901760
    %1475 = vmatprep.mubr.f32.mxu0 %v1474
    %v1476 = vand.u32 %v45, 4294901760
    %1477 = vmatmul.mubr.f32.gmra.mrb[0].mxu0 %v1476
    %v1478 = vpop.f32.mrb[0].mxu0
    %v1479 = vadd.f32 %v1334, %v1478
    %v1480 = vpop.f32.mrb[0].mxu0
    %v1481 = vadd.f32 %v1336, %v1480
    %v1482 = vand.u32 %v48, 4294901760
    %1483 = vmatprep.mubr.f32.mxu0 %v1482
    %v1484 = vand.u32 %v47, 4294901760
    %1485 = vmatmul.mubr.f32.gmra.mrb[0].mxu0 %v1484
    %v1486 = vpop.f32.mrb[0].mxu0
    %v1487 = vadd.f32 %v1342, %v1486
    %v1488 = vpop.f32.mrb[0].mxu0
    %v1489 = vadd.f32 %v1344, %v1488
    %1490 = vdwg.mxu0
    %1491 = vmatprep.subr.mxu0 0.0
    %v1492 = vand.u32 %v51, 4294901760
    %1493 = vmatpush1.msra.mxu0 %v1492
    %1494 = vmatprep.subr.mxu0 0.0
    %v1495 = vand.u32 %v54, 4294901760
    %1496 = vmatpush1.msra.mxu0 %v1495
    %1497 = vmatprep.subr.mxu0 0.0
    %v1498 = vand.u32 %v57, 4294901760
    %1499 = vmatpush1.msra.mxu0 %v1498
    %1500 = vmatprep.subr.mxu0 0.0
    %v1501 = vand.u32 %v60, 4294901760
    %1502 = vmatpush1.msra.mxu0 %v1501
    %1503 = vmatprep.subr.mxu0 0.0
    %v1504 = vand.u32 %v63, 4294901760
    %1505 = vmatpush1.msra.mxu0 %v1504
    %1506 = vmatprep.subr.mxu0 0.0
    %v1507 = vand.u32 %v66, 4294901760
    %1508 = vmatpush1.msra.mxu0 %v1507
    %1509 = vmatprep.subr.mxu0 0.0
    %v1510 = vand.u32 %v69, 4294901760
    %1511 = vmatpush1.msra.mxu0 %v1510
    %1512 = vmatprep.subr.mxu0 0.0
    %v1513 = vand.u32 %v72, 4294901760
    %1514 = vmatpush1.msra.mxu0 %v1513
    %1515 = vmatprep.subr.mxu0 0.0
    %v1516 = vand.u32 %v75, 4294901760
    %1517 = vmatpush1.msra.mxu0 %v1516
    %1518 = vmatprep.subr.mxu0 0.0
    %v1519 = vand.u32 %v78, 4294901760
    %1520 = vmatpush1.msra.mxu0 %v1519
    %1521 = vmatprep.subr.mxu0 0.0
    %v1522 = vand.u32 %v81, 4294901760
    %1523 = vmatpush1.msra.mxu0 %v1522
    %1524 = vmatprep.subr.mxu0 0.0
    %v1525 = vand.u32 %v84, 4294901760
    %1526 = vmatpush1.msra.mxu0 %v1525
    %1527 = vmatprep.subr.mxu0 0.0
    %v1528 = vand.u32 %v87, 4294901760
    %1529 = vmatpush1.msra.mxu0 %v1528
    %1530 = vmatprep.subr.mxu0 0.0
    %v1531 = vand.u32 %v90, 4294901760
    %1532 = vmatpush1.msra.mxu0 %v1531
    %1533 = vmatprep.subr.mxu0 0.0
    %v1534 = vand.u32 %v93, 4294901760
    %1535 = vmatpush1.msra.mxu0 %v1534
    %1536 = vmatprep.subr.mxu0 0.0
    %v1537 = vand.u32 %v96, 4294901760
    %1538 = vmatpush1.msra.mxu0 %v1537
    %1539 = vmatprep.subr.mxu0 0.0
    %v1540 = vand.u32 %v99, 4294901760
    %1541 = vmatpush1.msra.mxu0 %v1540
    %1542 = vmatprep.subr.mxu0 0.0
    %v1543 = vand.u32 %v102, 4294901760
    %1544 = vmatpush1.msra.mxu0 %v1543
    %1545 = vmatprep.subr.mxu0 0.0
    %v1546 = vand.u32 %v105, 4294901760
    %1547 = vmatpush1.msra.mxu0 %v1546
    %1548 = vmatprep.subr.mxu0 0.0
    %v1549 = vand.u32 %v108, 4294901760
    %1550 = vmatpush1.msra.mxu0 %v1549
    %1551 = vmatprep.subr.mxu0 0.0
    %v1552 = vand.u32 %v111, 4294901760
    %1553 = vmatpush1.msra.mxu0 %v1552
    %1554 = vmatprep.subr.mxu0 0.0
    %v1555 = vand.u32 %v114, 4294901760
    %1556 = vmatpush1.msra.mxu0 %v1555
    %1557 = vmatprep.subr.mxu0 0.0
    %v1558 = vand.u32 %v117, 4294901760
    %1559 = vmatpush1.msra.mxu0 %v1558
    %1560 = vmatprep.subr.mxu0 0.0
    %v1561 = vand.u32 %v120, 4294901760
    %1562 = vmatpush1.msra.mxu0 %v1561
    %1563 = vmatprep.subr.mxu0 0.0
    %v1564 = vand.u32 %v123, 4294901760
    %1565 = vmatpush1.msra.mxu0 %v1564
    %1566 = vmatprep.subr.mxu0 0.0
    %v1567 = vand.u32 %v126, 4294901760
    %1568 = vmatpush1.msra.mxu0 %v1567
    %1569 = vmatprep.subr.mxu0 0.0
    %v1570 = vand.u32 %v129, 4294901760
    %1571 = vmatpush1.msra.mxu0 %v1570
    %1572 = vmatprep.subr.mxu0 0.0
    %v1573 = vand.u32 %v132, 4294901760
    %1574 = vmatpush1.msra.mxu0 %v1573
    %1575 = vmatprep.subr.mxu0 0.0
    %v1576 = vand.u32 %v135, 4294901760
    %1577 = vmatpush1.msra.mxu0 %v1576
    %1578 = vmatprep.subr.mxu0 0.0
    %v1579 = vand.u32 %v138, 4294901760
    %1580 = vmatpush1.msra.mxu0 %v1579
    %1581 = vmatprep.subr.mxu0 0.0
    %v1582 = vand.u32 %v141, 4294901760
    %1583 = vmatpush1.msra.mxu0 %v1582
    %1584 = vmatprep.subr.mxu0 0.0
    %v1585 = vand.u32 %v144, 4294901760
    %1586 = vmatpush1.msra.mxu0 %v1585
    %v1587 = vand.u32 %v46, 4294901760
    %v1588 = vsub.f32 %v46, %v1587
    %v1589 = vand.u32 %v1588, 4294901760
    %v1590 = vsub.f32 %v1588, %v1589
    %v1591 = vand.u32 %v1590, 4294901760
    %1592 = vmatprep.mubr.f32.mxu0 %v1591
    %v1593 = vand.u32 %v45, 4294901760
    %v1594 = vsub.f32 %v45, %v1593
    %v1595 = vand.u32 %v1594, 4294901760
    %v1596 = vsub.f32 %v1594, %v1595
    %v1597 = vand.u32 %v1596, 4294901760
    %1598 = vmatmul.mubr.f32.gmra.mrb[0].mxu0 %v1597
    %v1599 = vpop.f32.mrb[0].mxu0
    %v1600 = vadd.f32 0.0, %v1599
    %v1601 = vpop.f32.mrb[0].mxu0
    %v1602 = vand.u32 %v48, 4294901760
    %v1603 = vsub.f32 %v48, %v1602
    %v1604 = vand.u32 %v1603, 4294901760
    %v1605 = vsub.f32 %v1603, %v1604
    %v1606 = vand.u32 %v1605, 4294901760
    %1607 = vmatprep.mubr.f32.mxu0 %v1606
    %v1608 = vand.u32 %v47, 4294901760
    %v1609 = vsub.f32 %v47, %v1608
    %v1610 = vand.u32 %v1609, 4294901760
    %v1611 = vsub.f32 %v1609, %v1610
    %v1612 = vand.u32 %v1611, 4294901760
    %1613 = vmatmul.mubr.f32.gmra.mrb[0].mxu0 %v1612
    %v1614 = vpop.f32.mrb[0].mxu0
    %v1615 = vadd.f32 0.0, %v1614
    %v1616 = vpop.f32.mrb[0].mxu0
    %1617 = vdwg.mxu0
    %1618 = vmatprep.subr.mxu0 0.0
    %v1619 = vand.u32 %v51, 4294901760
    %v1620 = vsub.f32 %v51, %v1619
    %v1621 = vand.u32 %v1620, 4294901760
    %v1622 = vsub.f32 %v1620, %v1621
    %v1623 = vand.u32 %v1622, 4294901760
    %1624 = vmatpush1.msra.mxu0 %v1623
    %1625 = vmatprep.subr.mxu0 0.0
    %v1626 = vand.u32 %v54, 4294901760
    %v1627 = vsub.f32 %v54, %v1626
    %v1628 = vand.u32 %v1627, 4294901760
    %v1629 = vsub.f32 %v1627, %v1628
    %v1630 = vand.u32 %v1629, 4294901760
    %1631 = vmatpush1.msra.mxu0 %v1630
    %1632 = vmatprep.subr.mxu0 0.0
    %v1633 = vand.u32 %v57, 4294901760
    %v1634 = vsub.f32 %v57, %v1633
    %v1635 = vand.u32 %v1634, 4294901760
    %v1636 = vsub.f32 %v1634, %v1635
    %v1637 = vand.u32 %v1636, 4294901760
    %1638 = vmatpush1.msra.mxu0 %v1637
    %1639 = vmatprep.subr.mxu0 0.0
    %v1640 = vand.u32 %v60, 4294901760
    %v1641 = vsub.f32 %v60, %v1640
    %v1642 = vand.u32 %v1641, 4294901760
    %v1643 = vsub.f32 %v1641, %v1642
    %v1644 = vand.u32 %v1643, 4294901760
    %1645 = vmatpush1.msra.mxu0 %v1644
    %1646 = vmatprep.subr.mxu0 0.0
    %v1647 = vand.u32 %v63, 4294901760
    %v1648 = vsub.f32 %v63, %v1647
    %v1649 = vand.u32 %v1648, 4294901760
    %v1650 = vsub.f32 %v1648, %v1649
    %v1651 = vand.u32 %v1650, 4294901760
    %1652 = vmatpush1.msra.mxu0 %v1651
    %1653 = vmatprep.subr.mxu0 0.0
    %v1654 = vand.u32 %v66, 4294901760
    %v1655 = vsub.f32 %v66, %v1654
    %v1656 = vand.u32 %v1655, 4294901760
    %v1657 = vsub.f32 %v1655, %v1656
    %v1658 = vand.u32 %v1657, 4294901760
    %1659 = vmatpush1.msra.mxu0 %v1658
    %1660 = vmatprep.subr.mxu0 0.0
    %v1661 = vand.u32 %v69, 4294901760
    %v1662 = vsub.f32 %v69, %v1661
    %v1663 = vand.u32 %v1662, 4294901760
    %v1664 = vsub.f32 %v1662, %v1663
    %v1665 = vand.u32 %v1664, 4294901760
    %1666 = vmatpush1.msra.mxu0 %v1665
    %1667 = vmatprep.subr.mxu0 0.0
    %v1668 = vand.u32 %v72, 4294901760
    %v1669 = vsub.f32 %v72, %v1668
    %v1670 = vand.u32 %v1669, 4294901760
    %v1671 = vsub.f32 %v1669, %v1670
    %v1672 = vand.u32 %v1671, 4294901760
    %1673 = vmatpush1.msra.mxu0 %v1672
    %1674 = vmatprep.subr.mxu0 0.0
    %v1675 = vand.u32 %v75, 4294901760
    %v1676 = vsub.f32 %v75, %v1675
    %v1677 = vand.u32 %v1676, 4294901760
    %v1678 = vsub.f32 %v1676, %v1677
    %v1679 = vand.u32 %v1678, 4294901760
    %1680 = vmatpush1.msra.mxu0 %v1679
    %1681 = vmatprep.subr.mxu0 0.0
    %v1682 = vand.u32 %v78, 4294901760
    %v1683 = vsub.f32 %v78, %v1682
    %v1684 = vand.u32 %v1683, 4294901760
    %v1685 = vsub.f32 %v1683, %v1684
    %v1686 = vand.u32 %v1685, 4294901760
    %1687 = vmatpush1.msra.mxu0 %v1686
    %1688 = vmatprep.subr.mxu0 0.0
    %v1689 = vand.u32 %v81, 4294901760
    %v1690 = vsub.f32 %v81, %v1689
    %v1691 = vand.u32 %v1690, 4294901760
    %v1692 = vsub.f32 %v1690, %v1691
    %v1693 = vand.u32 %v1692, 4294901760
    %1694 = vmatpush1.msra.mxu0 %v1693
    %1695 = vmatprep.subr.mxu0 0.0
    %v1696 = vand.u32 %v84, 4294901760
    %v1697 = vsub.f32 %v84, %v1696
    %v1698 = vand.u32 %v1697, 4294901760
    %v1699 = vsub.f32 %v1697, %v1698
    %v1700 = vand.u32 %v1699, 4294901760
    %1701 = vmatpush1.msra.mxu0 %v1700
    %1702 = vmatprep.subr.mxu0 0.0
    %v1703 = vand.u32 %v87, 4294901760
    %v1704 = vsub.f32 %v87, %v1703
    %v1705 = vand.u32 %v1704, 4294901760
    %v1706 = vsub.f32 %v1704, %v1705
    %v1707 = vand.u32 %v1706, 4294901760
    %1708 = vmatpush1.msra.mxu0 %v1707
    %1709 = vmatprep.subr.mxu0 0.0
    %v1710 = vand.u32 %v90, 4294901760
    %v1711 = vsub.f32 %v90, %v1710
    %v1712 = vand.u32 %v1711, 4294901760
    %v1713 = vsub.f32 %v1711, %v1712
    %v1714 = vand.u32 %v1713, 4294901760
    %1715 = vmatpush1.msra.mxu0 %v1714
    %1716 = vmatprep.subr.mxu0 0.0
    %v1717 = vand.u32 %v93, 4294901760
    %v1718 = vsub.f32 %v93, %v1717
    %v1719 = vand.u32 %v1718, 4294901760
    %v1720 = vsub.f32 %v1718, %v1719
    %v1721 = vand.u32 %v1720, 4294901760
    %1722 = vmatpush1.msra.mxu0 %v1721
    %1723 = vmatprep.subr.mxu0 0.0
    %v1724 = vand.u32 %v96, 4294901760
    %v1725 = vsub.f32 %v96, %v1724
    %v1726 = vand.u32 %v1725, 4294901760
    %v1727 = vsub.f32 %v1725, %v1726
    %v1728 = vand.u32 %v1727, 4294901760
    %1729 = vmatpush1.msra.mxu0 %v1728
    %1730 = vmatprep.subr.mxu0 0.0
    %v1731 = vand.u32 %v99, 4294901760
    %v1732 = vsub.f32 %v99, %v1731
    %v1733 = vand.u32 %v1732, 4294901760
    %v1734 = vsub.f32 %v1732, %v1733
    %v1735 = vand.u32 %v1734, 4294901760
    %1736 = vmatpush1.msra.mxu0 %v1735
    %1737 = vmatprep.subr.mxu0 0.0
    %v1738 = vand.u32 %v102, 4294901760
    %v1739 = vsub.f32 %v102, %v1738
    %v1740 = vand.u32 %v1739, 4294901760
    %v1741 = vsub.f32 %v1739, %v1740
    %v1742 = vand.u32 %v1741, 4294901760
    %1743 = vmatpush1.msra.mxu0 %v1742
    %1744 = vmatprep.subr.mxu0 0.0
    %v1745 = vand.u32 %v105, 4294901760
    %v1746 = vsub.f32 %v105, %v1745
    %v1747 = vand.u32 %v1746, 4294901760
    %v1748 = vsub.f32 %v1746, %v1747
    %v1749 = vand.u32 %v1748, 4294901760
    %1750 = vmatpush1.msra.mxu0 %v1749
    %1751 = vmatprep.subr.mxu0 0.0
    %v1752 = vand.u32 %v108, 4294901760
    %v1753 = vsub.f32 %v108, %v1752
    %v1754 = vand.u32 %v1753, 4294901760
    %v1755 = vsub.f32 %v1753, %v1754
    %v1756 = vand.u32 %v1755, 4294901760
    %1757 = vmatpush1.msra.mxu0 %v1756
    %1758 = vmatprep.subr.mxu0 0.0
    %v1759 = vand.u32 %v111, 4294901760
    %v1760 = vsub.f32 %v111, %v1759
    %v1761 = vand.u32 %v1760, 4294901760
    %v1762 = vsub.f32 %v1760, %v1761
    %v1763 = vand.u32 %v1762, 4294901760
    %1764 = vmatpush1.msra.mxu0 %v1763
    %1765 = vmatprep.subr.mxu0 0.0
    %v1766 = vand.u32 %v114, 4294901760
    %v1767 = vsub.f32 %v114, %v1766
    %v1768 = vand.u32 %v1767, 4294901760
    %v1769 = vsub.f32 %v1767, %v1768
    %v1770 = vand.u32 %v1769, 4294901760
    %1771 = vmatpush1.msra.mxu0 %v1770
    %1772 = vmatprep.subr.mxu0 0.0
    %v1773 = vand.u32 %v117, 4294901760
    %v1774 = vsub.f32 %v117, %v1773
    %v1775 = vand.u32 %v1774, 4294901760
    %v1776 = vsub.f32 %v1774, %v1775
    %v1777 = vand.u32 %v1776, 4294901760
    %1778 = vmatpush1.msra.mxu0 %v1777
    %1779 = vmatprep.subr.mxu0 0.0
    %v1780 = vand.u32 %v120, 4294901760
    %v1781 = vsub.f32 %v120, %v1780
    %v1782 = vand.u32 %v1781, 4294901760
    %v1783 = vsub.f32 %v1781, %v1782
    %v1784 = vand.u32 %v1783, 4294901760
    %1785 = vmatpush1.msra.mxu0 %v1784
    %1786 = vmatprep.subr.mxu0 0.0
    %v1787 = vand.u32 %v123, 4294901760
    %v1788 = vsub.f32 %v123, %v1787
    %v1789 = vand.u32 %v1788, 4294901760
    %v1790 = vsub.f32 %v1788, %v1789
    %v1791 = vand.u32 %v1790, 4294901760
    %1792 = vmatpush1.msra.mxu0 %v1791
    %1793 = vmatprep.subr.mxu0 0.0
    %v1794 = vand.u32 %v126, 4294901760
    %v1795 = vsub.f32 %v126, %v1794
    %v1796 = vand.u32 %v1795, 4294901760
    %v1797 = vsub.f32 %v1795, %v1796
    %v1798 = vand.u32 %v1797, 4294901760
    %1799 = vmatpush1.msra.mxu0 %v1798
    %1800 = vmatprep.subr.mxu0 0.0
    %v1801 = vand.u32 %v129, 4294901760
    %v1802 = vsub.f32 %v129, %v1801
    %v1803 = vand.u32 %v1802, 4294901760
    %v1804 = vsub.f32 %v1802, %v1803
    %v1805 = vand.u32 %v1804, 4294901760
    %1806 = vmatpush1.msra.mxu0 %v1805
    %1807 = vmatprep.subr.mxu0 0.0
    %v1808 = vand.u32 %v132, 4294901760
    %v1809 = vsub.f32 %v132, %v1808
    %v1810 = vand.u32 %v1809, 4294901760
    %v1811 = vsub.f32 %v1809, %v1810
    %v1812 = vand.u32 %v1811, 4294901760
    %1813 = vmatpush1.msra.mxu0 %v1812
    %1814 = vmatprep.subr.mxu0 0.0
    %v1815 = vand.u32 %v135, 4294901760
    %v1816 = vsub.f32 %v135, %v1815
    %v1817 = vand.u32 %v1816, 4294901760
    %v1818 = vsub.f32 %v1816, %v1817
    %v1819 = vand.u32 %v1818, 4294901760
    %1820 = vmatpush1.msra.mxu0 %v1819
    %1821 = vmatprep.subr.mxu0 0.0
    %v1822 = vand.u32 %v138, 4294901760
    %v1823 = vsub.f32 %v138, %v1822
    %v1824 = vand.u32 %v1823, 4294901760
    %v1825 = vsub.f32 %v1823, %v1824
    %v1826 = vand.u32 %v1825, 4294901760
    %1827 = vmatpush1.msra.mxu0 %v1826
    %1828 = vmatprep.subr.mxu0 0.0
    %v1829 = vand.u32 %v141, 4294901760
    %v1830 = vsub.f32 %v141, %v1829
    %v1831 = vand.u32 %v1830, 4294901760
    %v1832 = vsub.f32 %v1830, %v1831
    %v1833 = vand.u32 %v1832, 4294901760
    %1834 = vmatpush1.msra.mxu0 %v1833
    %1835 = vmatprep.subr.mxu0 0.0
    %v1836 = vand.u32 %v144, 4294901760
    %v1837 = vsub.f32 %v144, %v1836
    %v1838 = vand.u32 %v1837, 4294901760
    %v1839 = vsub.f32 %v1837, %v1838
    %v1840 = vand.u32 %v1839, 4294901760
    %1841 = vmatpush1.msra.mxu0 %v1840
    %v1842 = vand.u32 %v46, 4294901760
    %1843 = vmatprep.mubr.f32.mxu0 %v1842
    %v1844 = vand.u32 %v45, 4294901760
    %1845 = vmatmul.mubr.f32.gmra.mrb[0].mxu0 %v1844
    %v1846 = vpop.f32.mrb[0].mxu0
    %v1847 = vadd.f32 %v1600, %v1846
    %v1848 = vpop.f32.mrb[0].mxu0
    %v1849 = vand.u32 %v48, 4294901760
    %1850 = vmatprep.mubr.f32.mxu0 %v1849
    %v1851 = vand.u32 %v47, 4294901760
    %1852 = vmatmul.mubr.f32.gmra.mrb[0].mxu0 %v1851
    %v1853 = vpop.f32.mrb[0].mxu0
    %v1854 = vadd.f32 %v1615, %v1853
    %v1855 = vpop.f32.mrb[0].mxu0
    %1856 = vdwg.mxu0
    %1857 = vmatprep.subr.mxu0 0.0
    %v1858 = vand.u32 %v51, 4294901760
    %v1859 = vsub.f32 %v51, %v1858
    %1860 = vmatpush1.msra.mxu0 %v1859
    %1861 = vmatprep.subr.mxu0 0.0
    %v1862 = vand.u32 %v54, 4294901760
    %v1863 = vsub.f32 %v54, %v1862
    %1864 = vmatpush1.msra.mxu0 %v1863
    %1865 = vmatprep.subr.mxu0 0.0
    %v1866 = vand.u32 %v57, 4294901760
    %v1867 = vsub.f32 %v57, %v1866
    %1868 = vmatpush1.msra.mxu0 %v1867
    %1869 = vmatprep.subr.mxu0 0.0
    %v1870 = vand.u32 %v60, 4294901760
    %v1871 = vsub.f32 %v60, %v1870
    %1872 = vmatpush1.msra.mxu0 %v1871
    %1873 = vmatprep.subr.mxu0 0.0
    %v1874 = vand.u32 %v63, 4294901760
    %v1875 = vsub.f32 %v63, %v1874
    %1876 = vmatpush1.msra.mxu0 %v1875
    %1877 = vmatprep.subr.mxu0 0.0
    %v1878 = vand.u32 %v66, 4294901760
    %v1879 = vsub.f32 %v66, %v1878
    %1880 = vmatpush1.msra.mxu0 %v1879
    %1881 = vmatprep.subr.mxu0 0.0
    %v1882 = vand.u32 %v69, 4294901760
    %v1883 = vsub.f32 %v69, %v1882
    %1884 = vmatpush1.msra.mxu0 %v1883
    %1885 = vmatprep.subr.mxu0 0.0
    %v1886 = vand.u32 %v72, 4294901760
    %v1887 = vsub.f32 %v72, %v1886
    %1888 = vmatpush1.msra.mxu0 %v1887
    %1889 = vmatprep.subr.mxu0 0.0
    %v1890 = vand.u32 %v75, 4294901760
    %v1891 = vsub.f32 %v75, %v1890
    %1892 = vmatpush1.msra.mxu0 %v1891
    %1893 = vmatprep.subr.mxu0 0.0
    %v1894 = vand.u32 %v78, 4294901760
    %v1895 = vsub.f32 %v78, %v1894
    %1896 = vmatpush1.msra.mxu0 %v1895
    %1897 = vmatprep.subr.mxu0 0.0
    %v1898 = vand.u32 %v81, 4294901760
    %v1899 = vsub.f32 %v81, %v1898
    %1900 = vmatpush1.msra.mxu0 %v1899
    %1901 = vmatprep.subr.mxu0 0.0
    %v1902 = vand.u32 %v84, 4294901760
    %v1903 = vsub.f32 %v84, %v1902
    %1904 = vmatpush1.msra.mxu0 %v1903
    %1905 = vmatprep.subr.mxu0 0.0
    %v1906 = vand.u32 %v87, 4294901760
    %v1907 = vsub.f32 %v87, %v1906
    %1908 = vmatpush1.msra.mxu0 %v1907
    %1909 = vmatprep.subr.mxu0 0.0
    %v1910 = vand.u32 %v90, 4294901760
    %v1911 = vsub.f32 %v90, %v1910
    %1912 = vmatpush1.msra.mxu0 %v1911
    %1913 = vmatprep.subr.mxu0 0.0
    %v1914 = vand.u32 %v93, 4294901760
    %v1915 = vsub.f32 %v93, %v1914
    %1916 = vmatpush1.msra.mxu0 %v1915
    %1917 = vmatprep.subr.mxu0 0.0
    %v1918 = vand.u32 %v96, 4294901760
    %v1919 = vsub.f32 %v96, %v1918
    %1920 = vmatpush1.msra.mxu0 %v1919
    %1921 = vmatprep.subr.mxu0 0.0
    %v1922 = vand.u32 %v99, 4294901760
    %v1923 = vsub.f32 %v99, %v1922
    %1924 = vmatpush1.msra.mxu0 %v1923
    %1925 = vmatprep.subr.mxu0 0.0
    %v1926 = vand.u32 %v102, 4294901760
    %v1927 = vsub.f32 %v102, %v1926
    %1928 = vmatpush1.msra.mxu0 %v1927
    %1929 = vmatprep.subr.mxu0 0.0
    %v1930 = vand.u32 %v105, 4294901760
    %v1931 = vsub.f32 %v105, %v1930
    %1932 = vmatpush1.msra.mxu0 %v1931
    %1933 = vmatprep.subr.mxu0 0.0
    %v1934 = vand.u32 %v108, 4294901760
    %v1935 = vsub.f32 %v108, %v1934
    %1936 = vmatpush1.msra.mxu0 %v1935
    %1937 = vmatprep.subr.mxu0 0.0
    %v1938 = vand.u32 %v111, 4294901760
    %v1939 = vsub.f32 %v111, %v1938
    %1940 = vmatpush1.msra.mxu0 %v1939
    %1941 = vmatprep.subr.mxu0 0.0
    %v1942 = vand.u32 %v114, 4294901760
    %v1943 = vsub.f32 %v114, %v1942
    %1944 = vmatpush1.msra.mxu0 %v1943
    %1945 = vmatprep.subr.mxu0 0.0
    %v1946 = vand.u32 %v117, 4294901760
    %v1947 = vsub.f32 %v117, %v1946
    %1948 = vmatpush1.msra.mxu0 %v1947
    %1949 = vmatprep.subr.mxu0 0.0
    %v1950 = vand.u32 %v120, 4294901760
    %v1951 = vsub.f32 %v120, %v1950
    %1952 = vmatpush1.msra.mxu0 %v1951
    %1953 = vmatprep.subr.mxu0 0.0
    %v1954 = vand.u32 %v123, 4294901760
    %v1955 = vsub.f32 %v123, %v1954
    %1956 = vmatpush1.msra.mxu0 %v1955
    %1957 = vmatprep.subr.mxu0 0.0
    %v1958 = vand.u32 %v126, 4294901760
    %v1959 = vsub.f32 %v126, %v1958
    %1960 = vmatpush1.msra.mxu0 %v1959
    %1961 = vmatprep.subr.mxu0 0.0
    %v1962 = vand.u32 %v129, 4294901760
    %v1963 = vsub.f32 %v129, %v1962
    %1964 = vmatpush1.msra.mxu0 %v1963
    %1965 = vmatprep.subr.mxu0 0.0
    %v1966 = vand.u32 %v132, 4294901760
    %v1967 = vsub.f32 %v132, %v1966
    %1968 = vmatpush1.msra.mxu0 %v1967
    %1969 = vmatprep.subr.mxu0 0.0
    %v1970 = vand.u32 %v135, 4294901760
    %v1971 = vsub.f32 %v135, %v1970
    %1972 = vmatpush1.msra.mxu0 %v1971
    %1973 = vmatprep.subr.mxu0 0.0
    %v1974 = vand.u32 %v138, 4294901760
    %v1975 = vsub.f32 %v138, %v1974
    %1976 = vmatpush1.msra.mxu0 %v1975
    %1977 = vmatprep.subr.mxu0 0.0
    %v1978 = vand.u32 %v141, 4294901760
    %v1979 = vsub.f32 %v141, %v1978
    %1980 = vmatpush1.msra.mxu0 %v1979
    %1981 = vmatprep.subr.mxu0 0.0
    %v1982 = vand.u32 %v144, 4294901760
    %v1983 = vsub.f32 %v144, %v1982
    %1984 = vmatpush1.msra.mxu0 %v1983
    %v1985 = vand.u32 %v46, 4294901760
    %v1986 = vsub.f32 %v46, %v1985
    %1987 = vmatprep.mubr.f32.mxu0 %v1986
    %v1988 = vand.u32 %v45, 4294901760
    %v1989 = vsub.f32 %v45, %v1988
    %1990 = vmatmul.mubr.f32.gmra.mrb[0].mxu0 %v1989
    %v1991 = vpop.f32.mrb[0].mxu0
    %v1992 = vadd.f32 %v1847, %v1991
    %v1993 = vpop.f32.mrb[0].mxu0
    %v1994 = vand.u32 %v48, 4294901760
    %v1995 = vsub.f32 %v48, %v1994
    %1996 = vmatprep.mubr.f32.mxu0 %v1995
    %v1997 = vand.u32 %v47, 4294901760
    %v1998 = vsub.f32 %v47, %v1997
    %1999 = vmatmul.mubr.f32.gmra.mrb[0].mxu0 %v1998
    %v2000 = vpop.f32.mrb[0].mxu0
    %v2001 = vadd.f32 %v1854, %v2000
    %v2002 = vpop.f32.mrb[0].mxu0
    %2003 = vdwg.mxu0
    %2004 = vmatprep.subr.mxu0 0.0
    %v2005 = vand.u32 %v51, 4294901760
    %2006 = vmatpush1.msra.mxu0 %v2005
    %2007 = vmatprep.subr.mxu0 0.0
    %v2008 = vand.u32 %v54, 4294901760
    %2009 = vmatpush1.msra.mxu0 %v2008
    %2010 = vmatprep.subr.mxu0 0.0
    %v2011 = vand.u32 %v57, 4294901760
    %2012 = vmatpush1.msra.mxu0 %v2011
    %2013 = vmatprep.subr.mxu0 0.0
    %v2014 = vand.u32 %v60, 4294901760
    %2015 = vmatpush1.msra.mxu0 %v2014
    %2016 = vmatprep.subr.mxu0 0.0
    %v2017 = vand.u32 %v63, 4294901760
    %2018 = vmatpush1.msra.mxu0 %v2017
    %2019 = vmatprep.subr.mxu0 0.0
    %v2020 = vand.u32 %v66, 4294901760
    %2021 = vmatpush1.msra.mxu0 %v2020
    %2022 = vmatprep.subr.mxu0 0.0
    %v2023 = vand.u32 %v69, 4294901760
    %2024 = vmatpush1.msra.mxu0 %v2023
    %2025 = vmatprep.subr.mxu0 0.0
    %v2026 = vand.u32 %v72, 4294901760
    %2027 = vmatpush1.msra.mxu0 %v2026
    %2028 = vmatprep.subr.mxu0 0.0
    %v2029 = vand.u32 %v75, 4294901760
    %2030 = vmatpush1.msra.mxu0 %v2029
    %2031 = vmatprep.subr.mxu0 0.0
    %v2032 = vand.u32 %v78, 4294901760
    %2033 = vmatpush1.msra.mxu0 %v2032
    %2034 = vmatprep.subr.mxu0 0.0
    %v2035 = vand.u32 %v81, 4294901760
    %2036 = vmatpush1.msra.mxu0 %v2035
    %2037 = vmatprep.subr.mxu0 0.0
    %v2038 = vand.u32 %v84, 4294901760
    %2039 = vmatpush1.msra.mxu0 %v2038
    %2040 = vmatprep.subr.mxu0 0.0
    %v2041 = vand.u32 %v87, 4294901760
    %2042 = vmatpush1.msra.mxu0 %v2041
    %2043 = vmatprep.subr.mxu0 0.0
    %v2044 = vand.u32 %v90, 4294901760
    %2045 = vmatpush1.msra.mxu0 %v2044
    %2046 = vmatprep.subr.mxu0 0.0
    %v2047 = vand.u32 %v93, 4294901760
    %2048 = vmatpush1.msra.mxu0 %v2047
    %2049 = vmatprep.subr.mxu0 0.0
    %v2050 = vand.u32 %v96, 4294901760
    %2051 = vmatpush1.msra.mxu0 %v2050
    %2052 = vmatprep.subr.mxu0 0.0
    %v2053 = vand.u32 %v99, 4294901760
    %2054 = vmatpush1.msra.mxu0 %v2053
    %2055 = vmatprep.subr.mxu0 0.0
    %v2056 = vand.u32 %v102, 4294901760
    %2057 = vmatpush1.msra.mxu0 %v2056
    %2058 = vmatprep.subr.mxu0 0.0
    %v2059 = vand.u32 %v105, 4294901760
    %2060 = vmatpush1.msra.mxu0 %v2059
    %2061 = vmatprep.subr.mxu0 0.0
    %v2062 = vand.u32 %v108, 4294901760
    %2063 = vmatpush1.msra.mxu0 %v2062
    %2064 = vmatprep.subr.mxu0 0.0
    %v2065 = vand.u32 %v111, 4294901760
    %2066 = vmatpush1.msra.mxu0 %v2065
    %2067 = vmatprep.subr.mxu0 0.0
    %v2068 = vand.u32 %v114, 4294901760
    %2069 = vmatpush1.msra.mxu0 %v2068
    %2070 = vmatprep.subr.mxu0 0.0
    %v2071 = vand.u32 %v117, 4294901760
    %2072 = vmatpush1.msra.mxu0 %v2071
    %2073 = vmatprep.subr.mxu0 0.0
    %v2074 = vand.u32 %v120, 4294901760
    %2075 = vmatpush1.msra.mxu0 %v2074
    %2076 = vmatprep.subr.mxu0 0.0
    %v2077 = vand.u32 %v123, 4294901760
    %2078 = vmatpush1.msra.mxu0 %v2077
    %2079 = vmatprep.subr.mxu0 0.0
    %v2080 = vand.u32 %v126, 4294901760
    %2081 = vmatpush1.msra.mxu0 %v2080
    %2082 = vmatprep.subr.mxu0 0.0
    %v2083 = vand.u32 %v129, 4294901760
    %2084 = vmatpush1.msra.mxu0 %v2083
    %2085 = vmatprep.subr.mxu0 0.0
    %v2086 = vand.u32 %v132, 4294901760
    %2087 = vmatpush1.msra.mxu0 %v2086
    %2088 = vmatprep.subr.mxu0 0.0
    %v2089 = vand.u32 %v135, 4294901760
    %2090 = vmatpush1.msra.mxu0 %v2089
    %2091 = vmatprep.subr.mxu0 0.0
    %v2092 = vand.u32 %v138, 4294901760
    %2093 = vmatpush1.msra.mxu0 %v2092
    %2094 = vmatprep.subr.mxu0 0.0
    %v2095 = vand.u32 %v141, 4294901760
    %2096 = vmatpush1.msra.mxu0 %v2095
    %2097 = vmatprep.subr.mxu0 0.0
    %v2098 = vand.u32 %v144, 4294901760
    %2099 = vmatpush1.msra.mxu0 %v2098
    %v2100 = vand.u32 %v46, 4294901760
    %v2101 = vsub.f32 %v46, %v2100
    %v2102 = vand.u32 %v2101, 4294901760
    %2103 = vmatprep.mubr.f32.mxu0 %v2102
    %v2104 = vand.u32 %v45, 4294901760
    %v2105 = vsub.f32 %v45, %v2104
    %v2106 = vand.u32 %v2105, 4294901760
    %2107 = vmatmul.mubr.f32.gmra.mrb[0].mxu0 %v2106
    %v2108 = vpop.f32.mrb[0].mxu0
    %v2109 = vadd.f32 %v1992, %v2108
    %v2110 = vpop.f32.mrb[0].mxu0
    %v2111 = vand.u32 %v48, 4294901760
    %v2112 = vsub.f32 %v48, %v2111
    %v2113 = vand.u32 %v2112, 4294901760
    %2114 = vmatprep.mubr.f32.mxu0 %v2113
    %v2115 = vand.u32 %v47, 4294901760
    %v2116 = vsub.f32 %v47, %v2115
    %v2117 = vand.u32 %v2116, 4294901760
    %2118 = vmatmul.mubr.f32.gmra.mrb[0].mxu0 %v2117
    %v2119 = vpop.f32.mrb[0].mxu0
    %v2120 = vadd.f32 %v2001, %v2119
    %v2121 = vpop.f32.mrb[0].mxu0
    %2122 = vdwg.mxu0
    %2123 = vmatprep.subr.mxu0 0.0
    %v2124 = vand.u32 %v51, 4294901760
    %v2125 = vsub.f32 %v51, %v2124
    %v2126 = vand.u32 %v2125, 4294901760
    %2127 = vmatpush1.msra.mxu0 %v2126
    %2128 = vmatprep.subr.mxu0 0.0
    %v2129 = vand.u32 %v54, 4294901760
    %v2130 = vsub.f32 %v54, %v2129
    %v2131 = vand.u32 %v2130, 4294901760
    %2132 = vmatpush1.msra.mxu0 %v2131
    %2133 = vmatprep.subr.mxu0 0.0
    %v2134 = vand.u32 %v57, 4294901760
    %v2135 = vsub.f32 %v57, %v2134
    %v2136 = vand.u32 %v2135, 4294901760
    %2137 = vmatpush1.msra.mxu0 %v2136
    %2138 = vmatprep.subr.mxu0 0.0
    %v2139 = vand.u32 %v60, 4294901760
    %v2140 = vsub.f32 %v60, %v2139
    %v2141 = vand.u32 %v2140, 4294901760
    %2142 = vmatpush1.msra.mxu0 %v2141
    %2143 = vmatprep.subr.mxu0 0.0
    %v2144 = vand.u32 %v63, 4294901760
    %v2145 = vsub.f32 %v63, %v2144
    %v2146 = vand.u32 %v2145, 4294901760
    %2147 = vmatpush1.msra.mxu0 %v2146
    %2148 = vmatprep.subr.mxu0 0.0
    %v2149 = vand.u32 %v66, 4294901760
    %v2150 = vsub.f32 %v66, %v2149
    %v2151 = vand.u32 %v2150, 4294901760
    %2152 = vmatpush1.msra.mxu0 %v2151
    %2153 = vmatprep.subr.mxu0 0.0
    %v2154 = vand.u32 %v69, 4294901760
    %v2155 = vsub.f32 %v69, %v2154
    %v2156 = vand.u32 %v2155, 4294901760
    %2157 = vmatpush1.msra.mxu0 %v2156
    %2158 = vmatprep.subr.mxu0 0.0
    %v2159 = vand.u32 %v72, 4294901760
    %v2160 = vsub.f32 %v72, %v2159
    %v2161 = vand.u32 %v2160, 4294901760
    %2162 = vmatpush1.msra.mxu0 %v2161
    %2163 = vmatprep.subr.mxu0 0.0
    %v2164 = vand.u32 %v75, 4294901760
    %v2165 = vsub.f32 %v75, %v2164
    %v2166 = vand.u32 %v2165, 4294901760
    %2167 = vmatpush1.msra.mxu0 %v2166
    %2168 = vmatprep.subr.mxu0 0.0
    %v2169 = vand.u32 %v78, 4294901760
    %v2170 = vsub.f32 %v78, %v2169
    %v2171 = vand.u32 %v2170, 4294901760
    %2172 = vmatpush1.msra.mxu0 %v2171
    %2173 = vmatprep.subr.mxu0 0.0
    %v2174 = vand.u32 %v81, 4294901760
    %v2175 = vsub.f32 %v81, %v2174
    %v2176 = vand.u32 %v2175, 4294901760
    %2177 = vmatpush1.msra.mxu0 %v2176
    %2178 = vmatprep.subr.mxu0 0.0
    %v2179 = vand.u32 %v84, 4294901760
    %v2180 = vsub.f32 %v84, %v2179
    %v2181 = vand.u32 %v2180, 4294901760
    %2182 = vmatpush1.msra.mxu0 %v2181
    %2183 = vmatprep.subr.mxu0 0.0
    %v2184 = vand.u32 %v87, 4294901760
    %v2185 = vsub.f32 %v87, %v2184
    %v2186 = vand.u32 %v2185, 4294901760
    %2187 = vmatpush1.msra.mxu0 %v2186
    %2188 = vmatprep.subr.mxu0 0.0
    %v2189 = vand.u32 %v90, 4294901760
    %v2190 = vsub.f32 %v90, %v2189
    %v2191 = vand.u32 %v2190, 4294901760
    %2192 = vmatpush1.msra.mxu0 %v2191
    %2193 = vmatprep.subr.mxu0 0.0
    %v2194 = vand.u32 %v93, 4294901760
    %v2195 = vsub.f32 %v93, %v2194
    %v2196 = vand.u32 %v2195, 4294901760
    %2197 = vmatpush1.msra.mxu0 %v2196
    %2198 = vmatprep.subr.mxu0 0.0
    %v2199 = vand.u32 %v96, 4294901760
    %v2200 = vsub.f32 %v96, %v2199
    %v2201 = vand.u32 %v2200, 4294901760
    %2202 = vmatpush1.msra.mxu0 %v2201
    %2203 = vmatprep.subr.mxu0 0.0
    %v2204 = vand.u32 %v99, 4294901760
    %v2205 = vsub.f32 %v99, %v2204
    %v2206 = vand.u32 %v2205, 4294901760
    %2207 = vmatpush1.msra.mxu0 %v2206
    %2208 = vmatprep.subr.mxu0 0.0
    %v2209 = vand.u32 %v102, 4294901760
    %v2210 = vsub.f32 %v102, %v2209
    %v2211 = vand.u32 %v2210, 4294901760
    %2212 = vmatpush1.msra.mxu0 %v2211
    %2213 = vmatprep.subr.mxu0 0.0
    %v2214 = vand.u32 %v105, 4294901760
    %v2215 = vsub.f32 %v105, %v2214
    %v2216 = vand.u32 %v2215, 4294901760
    %2217 = vmatpush1.msra.mxu0 %v2216
    %2218 = vmatprep.subr.mxu0 0.0
    %v2219 = vand.u32 %v108, 4294901760
    %v2220 = vsub.f32 %v108, %v2219
    %v2221 = vand.u32 %v2220, 4294901760
    %2222 = vmatpush1.msra.mxu0 %v2221
    %2223 = vmatprep.subr.mxu0 0.0
    %v2224 = vand.u32 %v111, 4294901760
    %v2225 = vsub.f32 %v111, %v2224
    %v2226 = vand.u32 %v2225, 4294901760
    %2227 = vmatpush1.msra.mxu0 %v2226
    %2228 = vmatprep.subr.mxu0 0.0
    %v2229 = vand.u32 %v114, 4294901760
    %v2230 = vsub.f32 %v114, %v2229
    %v2231 = vand.u32 %v2230, 4294901760
    %2232 = vmatpush1.msra.mxu0 %v2231
    %2233 = vmatprep.subr.mxu0 0.0
    %v2234 = vand.u32 %v117, 4294901760
    %v2235 = vsub.f32 %v117, %v2234
    %v2236 = vand.u32 %v2235, 4294901760
    %2237 = vmatpush1.msra.mxu0 %v2236
    %2238 = vmatprep.subr.mxu0 0.0
    %v2239 = vand.u32 %v120, 4294901760
    %v2240 = vsub.f32 %v120, %v2239
    %v2241 = vand.u32 %v2240, 4294901760
    %2242 = vmatpush1.msra.mxu0 %v2241
    %2243 = vmatprep.subr.mxu0 0.0
    %v2244 = vand.u32 %v123, 4294901760
    %v2245 = vsub.f32 %v123, %v2244
    %v2246 = vand.u32 %v2245, 4294901760
    %2247 = vmatpush1.msra.mxu0 %v2246
    %2248 = vmatprep.subr.mxu0 0.0
    %v2249 = vand.u32 %v126, 4294901760
    %v2250 = vsub.f32 %v126, %v2249
    %v2251 = vand.u32 %v2250, 4294901760
    %2252 = vmatpush1.msra.mxu0 %v2251
    %2253 = vmatprep.subr.mxu0 0.0
    %v2254 = vand.u32 %v129, 4294901760
    %v2255 = vsub.f32 %v129, %v2254
    %v2256 = vand.u32 %v2255, 4294901760
    %2257 = vmatpush1.msra.mxu0 %v2256
    %2258 = vmatprep.subr.mxu0 0.0
    %v2259 = vand.u32 %v132, 4294901760
    %v2260 = vsub.f32 %v132, %v2259
    %v2261 = vand.u32 %v2260, 4294901760
    %2262 = vmatpush1.msra.mxu0 %v2261
    %2263 = vmatprep.subr.mxu0 0.0
    %v2264 = vand.u32 %v135, 4294901760
    %v2265 = vsub.f32 %v135, %v2264
    %v2266 = vand.u32 %v2265, 4294901760
    %2267 = vmatpush1.msra.mxu0 %v2266
    %2268 = vmatprep.subr.mxu0 0.0
    %v2269 = vand.u32 %v138, 4294901760
    %v2270 = vsub.f32 %v138, %v2269
    %v2271 = vand.u32 %v2270, 4294901760
    %2272 = vmatpush1.msra.mxu0 %v2271
    %2273 = vmatprep.subr.mxu0 0.0
    %v2274 = vand.u32 %v141, 4294901760
    %v2275 = vsub.f32 %v141, %v2274
    %v2276 = vand.u32 %v2275, 4294901760
    %2277 = vmatpush1.msra.mxu0 %v2276
    %2278 = vmatprep.subr.mxu0 0.0
    %v2279 = vand.u32 %v144, 4294901760
    %v2280 = vsub.f32 %v144, %v2279
    %v2281 = vand.u32 %v2280, 4294901760
    %2282 = vmatpush1.msra.mxu0 %v2281
    %v2283 = vand.u32 %v46, 4294901760
    %2284 = vmatprep.mubr.f32.mxu0 %v2283
    %v2285 = vand.u32 %v45, 4294901760
    %2286 = vmatmul.mubr.f32.gmra.mrb[0].mxu0 %v2285
    %v2287 = vpop.f32.mrb[0].mxu0
    %v2288 = vadd.f32 %v2109, %v2287
    %v2289 = vpop.f32.mrb[0].mxu0
    %v2290 = vand.u32 %v48, 4294901760
    %2291 = vmatprep.mubr.f32.mxu0 %v2290
    %v2292 = vand.u32 %v47, 4294901760
    %2293 = vmatmul.mubr.f32.gmra.mrb[0].mxu0 %v2292
    %v2294 = vpop.f32.mrb[0].mxu0
    %v2295 = vadd.f32 %v2120, %v2294
    %v2296 = vpop.f32.mrb[0].mxu0
    %2297 = vdwg.mxu0
    %2298 = vmatprep.subr.mxu0 0.0
    %v2299 = vand.u32 %v51, 4294901760
    %2300 = vmatpush1.msra.mxu0 %v2299
    %2301 = vmatprep.subr.mxu0 0.0
    %v2302 = vand.u32 %v54, 4294901760
    %2303 = vmatpush1.msra.mxu0 %v2302
    %2304 = vmatprep.subr.mxu0 0.0
    %v2305 = vand.u32 %v57, 4294901760
    %2306 = vmatpush1.msra.mxu0 %v2305
    %2307 = vmatprep.subr.mxu0 0.0
    %v2308 = vand.u32 %v60, 4294901760
    %2309 = vmatpush1.msra.mxu0 %v2308
    %2310 = vmatprep.subr.mxu0 0.0
    %v2311 = vand.u32 %v63, 4294901760
    %2312 = vmatpush1.msra.mxu0 %v2311
    %2313 = vmatprep.subr.mxu0 0.0
    %v2314 = vand.u32 %v66, 4294901760
    %2315 = vmatpush1.msra.mxu0 %v2314
    %2316 = vmatprep.subr.mxu0 0.0
    %v2317 = vand.u32 %v69, 4294901760
    %2318 = vmatpush1.msra.mxu0 %v2317
    %2319 = vmatprep.subr.mxu0 0.0
    %v2320 = vand.u32 %v72, 4294901760
    %2321 = vmatpush1.msra.mxu0 %v2320
    %2322 = vmatprep.subr.mxu0 0.0
    %v2323 = vand.u32 %v75, 4294901760
    %2324 = vmatpush1.msra.mxu0 %v2323
    %2325 = vmatprep.subr.mxu0 0.0
    %v2326 = vand.u32 %v78, 4294901760
    %2327 = vmatpush1.msra.mxu0 %v2326
    %2328 = vmatprep.subr.mxu0 0.0
    %v2329 = vand.u32 %v81, 4294901760
    %2330 = vmatpush1.msra.mxu0 %v2329
    %2331 = vmatprep.subr.mxu0 0.0
    %v2332 = vand.u32 %v84, 4294901760
    %2333 = vmatpush1.msra.mxu0 %v2332
    %2334 = vmatprep.subr.mxu0 0.0
    %v2335 = vand.u32 %v87, 4294901760
    %2336 = vmatpush1.msra.mxu0 %v2335
    %2337 = vmatprep.subr.mxu0 0.0
    %v2338 = vand.u32 %v90, 4294901760
    %2339 = vmatpush1.msra.mxu0 %v2338
    %2340 = vmatprep.subr.mxu0 0.0
    %v2341 = vand.u32 %v93, 4294901760
    %2342 = vmatpush1.msra.mxu0 %v2341
    %2343 = vmatprep.subr.mxu0 0.0
    %v2344 = vand.u32 %v96, 4294901760
    %2345 = vmatpush1.msra.mxu0 %v2344
    %2346 = vmatprep.subr.mxu0 0.0
    %v2347 = vand.u32 %v99, 4294901760
    %2348 = vmatpush1.msra.mxu0 %v2347
    %2349 = vmatprep.subr.mxu0 0.0
    %v2350 = vand.u32 %v102, 4294901760
    %2351 = vmatpush1.msra.mxu0 %v2350
    %2352 = vmatprep.subr.mxu0 0.0
    %v2353 = vand.u32 %v105, 4294901760
    %2354 = vmatpush1.msra.mxu0 %v2353
    %2355 = vmatprep.subr.mxu0 0.0
    %v2356 = vand.u32 %v108, 4294901760
    %2357 = vmatpush1.msra.mxu0 %v2356
    %2358 = vmatprep.subr.mxu0 0.0
    %v2359 = vand.u32 %v111, 4294901760
    %2360 = vmatpush1.msra.mxu0 %v2359
    %2361 = vmatprep.subr.mxu0 0.0
    %v2362 = vand.u32 %v114, 4294901760
    %2363 = vmatpush1.msra.mxu0 %v2362
    %2364 = vmatprep.subr.mxu0 0.0
    %v2365 = vand.u32 %v117, 4294901760
    %2366 = vmatpush1.msra.mxu0 %v2365
    %2367 = vmatprep.subr.mxu0 0.0
    %v2368 = vand.u32 %v120, 4294901760
    %2369 = vmatpush1.msra.mxu0 %v2368
    %2370 = vmatprep.subr.mxu0 0.0
    %v2371 = vand.u32 %v123, 4294901760
    %2372 = vmatpush1.msra.mxu0 %v2371
    %2373 = vmatprep.subr.mxu0 0.0
    %v2374 = vand.u32 %v126, 4294901760
    %2375 = vmatpush1.msra.mxu0 %v2374
    %2376 = vmatprep.subr.mxu0 0.0
    %v2377 = vand.u32 %v129, 4294901760
    %2378 = vmatpush1.msra.mxu0 %v2377
    %2379 = vmatprep.subr.mxu0 0.0
    %v2380 = vand.u32 %v132, 4294901760
    %2381 = vmatpush1.msra.mxu0 %v2380
    %2382 = vmatprep.subr.mxu0 0.0
    %v2383 = vand.u32 %v135, 4294901760
    %2384 = vmatpush1.msra.mxu0 %v2383
    %2385 = vmatprep.subr.mxu0 0.0
    %v2386 = vand.u32 %v138, 4294901760
    %2387 = vmatpush1.msra.mxu0 %v2386
    %2388 = vmatprep.subr.mxu0 0.0
    %v2389 = vand.u32 %v141, 4294901760
    %2390 = vmatpush1.msra.mxu0 %v2389
    %2391 = vmatprep.subr.mxu0 0.0
    %v2392 = vand.u32 %v144, 4294901760
    %2393 = vmatpush1.msra.mxu0 %v2392
    %v2394 = vand.u32 %v46, 4294901760
    %2395 = vmatprep.mubr.f32.mxu0 %v2394
    %v2396 = vand.u32 %v45, 4294901760
    %2397 = vmatmul.mubr.f32.gmra.mrb[0].mxu0 %v2396
    %v2398 = vpop.f32.mrb[0].mxu0
    %v2399 = vadd.f32 %v2288, %v2398
    %v2400 = vpop.f32.mrb[0].mxu0
    %v2401 = vand.u32 %v48, 4294901760
    %2402 = vmatprep.mubr.f32.mxu0 %v2401
    %v2403 = vand.u32 %v47, 4294901760
    %2404 = vmatmul.mubr.f32.gmra.mrb[0].mxu0 %v2403
    %v2405 = vpop.f32.mrb[0].mxu0
    %v2406 = vadd.f32 %v2295, %v2405
    %v2407 = vpop.f32.mrb[0].mxu0
    %2408 = vdwg.mxu0
    %v2409 = vmul.f32 %v1479, %v1479
    %v2410 = vmul.f32 %v1481, %v1481
    %v2411 = vmul.f32 %v1487, %v1487
    %v2412 = vmul.f32 %v1489, %v1489
    %v2413 = vmul.f32 %v2399, %v2399
    %v2414 = vmul.f32 %v2406, %v2406
    %2419 = vrot.lane.b32.xlu0 %v2410, 112
    %v2420 = vpop.permute.xlu0 %2419
    %2421 = vrot.lane.b32.xlu0 %v2413, 112
    %v2422 = vpop.permute.xlu0 %2421
    %2423 = vrot.lane.b32.xlu0 %v2412, 112
    %v2424 = vpop.permute.xlu0 %2423
    %2425 = vrot.lane.b32.xlu0 %v2414, 112
    %v2426 = vpop.permute.xlu0 %2425
    %vm2427 = vcmask 916480
    %v2428 = vsel %vm2427, %v2420, %v2422
    %v2429 = vsel %vm2427, %v2424, %v2426
    %v2434 = vadd.f32 %v2409, %v2428
    %v2435 = vadd.f32 %v2410, %v2422
    %v2436 = vadd.f32 %v2411, %v2429
    %v2437 = vadd.f32 %v2412, %v2426
    %v2438 = vrsqrt.pop %v2434
    %v2439 = vmul.f32 %v2434, %v2438
    %vm2440 = vcmp.eq.f32.partialorder %v2434, inf
    %v2441 = vsel %vm2440, %v2434, %v2439
    %vm2442 = vcmp.eq.f32.partialorder %v2434, 0.0
    %v2443 = vand.u32 %v2434, 2147483648
    %v2444 = vsel %vm2442, %v2443, %v2441
    %v2445 = vrsqrt.pop %v2435
    %v2446 = vmul.f32 %v2435, %v2445
    %vm2447 = vcmp.eq.f32.partialorder %v2435, inf
    %v2448 = vsel %vm2447, %v2435, %v2446
    %vm2449 = vcmp.eq.f32.partialorder %v2435, 0.0
    %v2450 = vand.u32 %v2435, 2147483648
    %v2451 = vsel %vm2449, %v2450, %v2448
    %v2452 = vrsqrt.pop %v2436
    %v2453 = vmul.f32 %v2436, %v2452
    %vm2454 = vcmp.eq.f32.partialorder %v2436, inf
    %v2455 = vsel %vm2454, %v2436, %v2453
    %vm2456 = vcmp.eq.f32.partialorder %v2436, 0.0
    %v2457 = vand.u32 %v2436, 2147483648
    %v2458 = vsel %vm2456, %v2457, %v2455
    %v2459 = vrsqrt.pop %v2437
    %v2460 = vmul.f32 %v2437, %v2459
    %vm2461 = vcmp.eq.f32.partialorder %v2437, inf
    %v2462 = vsel %vm2461, %v2437, %v2460
    %vm2463 = vcmp.eq.f32.partialorder %v2437, 0.0
    %v2464 = vand.u32 %v2437, 2147483648
    %v2465 = vsel %vm2463, %v2464, %v2462
    %vm2466 = vcmask 130048
    %v2467 = vsel %vm2466, %v2435, 0.0
    %v2468 = vadd.f32 %v2434, %v2467
    %2469 = vadd.xlane.f32.xlu0 %v2468
    %v2470 = vpop.xlane.xlu0 %2469
    %vm2471 = vcmask 1043456
    %v2472 = vsel %vm2471, %v2436, 0.0
    %vm2473 = vcmask 125952
    %v2474 = vsel %vm2473, %v2437, 0.0
    %v2475 = vadd.f32 %v2472, %v2474
    %2476 = vadd.xlane.f32.xlu0 %v2475
    %v2477 = vpop.xlane.xlu0 %2476
    %v2478 = vrsqrt.pop %v2470
    %v2479 = vmul.f32 %v2470, %v2478
    %vm2480 = vcmp.eq.f32.partialorder %v2470, inf
    %v2481 = vsel %vm2480, %v2470, %v2479
    %vm2482 = vcmp.eq.f32.partialorder %v2470, 0.0
    %v2483 = vand.u32 %v2470, 2147483648
    %v2484 = vsel %vm2482, %v2483, %v2481
    %v2485 = vrsqrt.pop %v2477
    %v2486 = vmul.f32 %v2477, %v2485
    %vm2487 = vcmp.eq.f32.partialorder %v2477, inf
    %v2488 = vsel %vm2487, %v2477, %v2486
    %vm2489 = vcmp.eq.f32.partialorder %v2477, 0.0
    %v2490 = vand.u32 %v2477, 2147483648
    %v2491 = vsel %vm2489, %v2490, %v2488
    %v2492 = vadd.f32 %v2470, 1e-24
    %v2493 = vadd.f32 %v2477, 1e-24
    %v2494 = vrsqrt.pop %v2492
    %v2495 = vrsqrt.pop %v2493
    %v2496 = vmul.f32 %v2444, %v2494
    %v2497 = vmul.f32 %v2451, %v2494
    %v2498 = vmul.f32 %v2458, %v2495
    %v2499 = vmul.f32 %v2465, %v2495
    %2500 = vst [vmem:[#allocation4] sm:$0xff] %v2496
    %2501 = vst.msk [vmem:[#allocation4 + $0x8] sm:$0xff] %vm2466, %v2497
    %2502 = vst [vmem:[#allocation4 + $0x10] sm:$0xf] %v2498
    %2503 = vst.msk [vmem:[#allocation4 + $0x18] sm:$0xf] %vm2473, %v2499
    %v2504 = vld [vmem:[%s2] sm:$0xff]
    %v2505 = vld [vmem:[%s2 + $0x8] sm:$0xff]
    %v2506 = vld [vmem:[%s2 + $0x10] sm:$0xff]
    %v2507 = vld [vmem:[%s2 + $0x18] sm:$0xff]
    %v2508 = vld [vmem:[%s2 + $0x20] sm:$0xff]
    %v2509 = vld [vmem:[%s2 + $0x28] sm:$0xff]
    %v2510 = vld [vmem:[%s2 + $0x30] sm:$0xff]
    %v2511 = vld [vmem:[%s2 + $0x38] sm:$0xff]
    %v2512 = vld [vmem:[%s2 + $0x40] sm:$0xff]
    %v2513 = vld [vmem:[%s2 + $0x48] sm:$0xff]
    %v2514 = vld [vmem:[%s2 + $0x50] sm:$0xff]
    %v2515 = vld [vmem:[%s2 + $0x58] sm:$0xff]
    %v2516 = vld [vmem:[%s2 + $0x60] sm:$0xff]
    %v2517 = vld [vmem:[%s2 + $0x68] sm:$0xff]
    %v2518 = vld [vmem:[%s2 + $0x70] sm:$0xff]
    %v2519 = vld [vmem:[%s2 + $0x78] sm:$0xff]
    %v2520 = vld [vmem:[%s2 + $0x80] sm:$0xff]
    %v2521 = vld [vmem:[%s2 + $0x88] sm:$0xff]
    %v2522 = vld [vmem:[%s3] sm:$0x1]
    %v2524 = vlaneseq
    %v2525 = vshrl.u32 %v2524, 7
    %v2526 = vsub.s32 0, %v2525
    %v2527 = vrot.slane %v2522, %v2526
    %v2530 = vsel %vm2466, %v2497, 0
    %v2533 = vsel %vm2466, %v2499, 0
    %2535 = vmatprep.subr.mxu0 0.0
    %2536 = vmatpush1.msra.mxu0 %v2504
    %2537 = vmatprep.subr.mxu0 0.0
    %2538 = vmatpush1.msra.mxu0 %v2505
    %2539 = vmatprep.subr.mxu0 0.0
    %2540 = vmatpush1.msra.mxu0 %v2506
    %2541 = vmatprep.subr.mxu0 0.0
    %2542 = vmatpush1.msra.mxu0 %v2507
    %2543 = vmatprep.subr.mxu0 0.0
    %2544 = vmatpush1.msra.mxu0 %v2508
    %2545 = vmatprep.subr.mxu0 0.0
    %2546 = vmatpush1.msra.mxu0 %v2509
    %2547 = vmatprep.subr.mxu0 0.0
    %2548 = vmatpush1.msra.mxu0 %v2510
    %2549 = vmatprep.subr.mxu0 0.0
    %2550 = vmatpush1.msra.mxu0 %v2511
    %2551 = vmatprep.subr.mxu0 0.0
    %2552 = vmatpush1.msra.mxu0 %v2512
    %2553 = vmatprep.subr.mxu0 0.0
    %2554 = vmatpush1.msra.mxu0 %v2513
    %2555 = vmatprep.subr.mxu0 0.0
    %2556 = vmatpush1.msra.mxu0 %v2514
    %2557 = vmatprep.subr.mxu0 0.0
    %2558 = vmatpush1.msra.mxu0 %v2515
    %2559 = vmatprep.subr.mxu0 0.0
    %2560 = vmatpush1.msra.mxu0 %v2516
    %2561 = vmatprep.subr.mxu0 0.0
    %2562 = vmatpush1.msra.mxu0 %v2517
    %2563 = vmatprep.subr.mxu0 0.0
    %2564 = vmatpush1.msra.mxu0 %v2518
    %2565 = vmatprep.subr.mxu0 0.0
    %2566 = vmatpush1.msra.mxu0 %v2519
    %2567 = vmatprep.subr.mxu0 0.0
    %2568 = vmatpush1.msra.mxu0 %v2520
    %2569 = vmatprep.subr.mxu0 0.0
    %2570 = vmatpush1.msra.mxu0 %v2521
    %2571 = vmatprep.subr.mxu0 0.0
    %2572 = vmatpush1.msra.mxu0 0.0
    %2573 = vmatprep.subr.mxu0 0.0
    %2574 = vmatpush1.msra.mxu0 0.0
    %2575 = vmatprep.subr.mxu0 0.0
    %2576 = vmatpush1.msra.mxu0 0.0
    %2577 = vmatprep.subr.mxu0 0.0
    %2578 = vmatpush1.msra.mxu0 0.0
    %2579 = vmatprep.subr.mxu0 0.0
    %2580 = vmatpush1.msra.mxu0 0.0
    %2581 = vmatprep.subr.mxu0 0.0
    %2582 = vmatpush1.msra.mxu0 0.0
    %2583 = vmatprep.subr.mxu0 0.0
    %2584 = vmatpush1.msra.mxu0 0.0
    %2585 = vmatprep.subr.mxu0 0.0
    %2586 = vmatpush1.msra.mxu0 0.0
    %2587 = vmatprep.subr.mxu0 0.0
    %2588 = vmatpush1.msra.mxu0 0.0
    %2589 = vmatprep.subr.mxu0 0.0
    %2590 = vmatpush1.msra.mxu0 0.0
    %2591 = vmatprep.subr.mxu0 0.0
    %2592 = vmatpush1.msra.mxu0 0.0
    %2593 = vmatprep.subr.mxu0 0.0
    %2594 = vmatpush1.msra.mxu0 0.0
    %2595 = vmatprep.subr.mxu0 0.0
    %2596 = vmatpush1.msra.mxu0 0.0
    %2597 = vmatprep.subr.mxu0 0.0
    %2598 = vmatpush1.msra.mxu0 0.0
    %2599 = vmatprep.mubr.f32.mxu0 %v2530
    %2600 = vmatmul.mubr.f32.gmra.mrb[0].mxu0 %v2496
    %v2601 = vpop.f32.mrb[0].mxu0
    %v2602 = vadd.f32 %v2527, %v2601
    %v2603 = vpop.f32.mrb[0].mxu0
    %2604 = vmatprep.mubr.f32.mxu0 %v2533
    %2605 = vmatmul.mubr.f32.gmra.mrb[0].mxu0 %v2498
    %v2606 = vpop.f32.mrb[0].mxu0
    %v2607 = vadd.f32 %v2527, %v2606
    %v2608 = vpop.f32.mrb[0].mxu0
    %2609 = vdwg.mxu0
    %v2610 = vld [vmem:[%s4] sm:$0xff]
    %v2611 = vld [vmem:[%s4 + $0x8] sm:$0xff]
    %v2612 = vld [vmem:[%s4 + $0x10] sm:$0xff]
    %v2613 = vld [vmem:[%s4 + $0x18] sm:$0xff]
    %v2614 = vld [vmem:[%s5] sm:$0x1]
    %v2616 = vlaneseq
    %v2617 = vshrl.u32 %v2616, 7
    %v2618 = vsub.s32 0, %v2617
    %v2619 = vrot.slane %v2614, %v2618
    %vm2621 = vcmask 261120
    %v2623 = vsel %vm2621, %v2602, 0
    %v2626 = vsel %vm2621, %v2607, 0
    %2628 = vmatprep.subr.mxu0 0.0
    %2629 = vmatpush1.msra.mxu0 %v2610
    %2630 = vmatprep.subr.mxu0 0.0
    %2631 = vmatpush1.msra.mxu0 %v2611
    %2632 = vmatprep.subr.mxu0 0.0
    %2633 = vmatpush1.msra.mxu0 %v2612
    %2634 = vmatprep.subr.mxu0 0.0
    %2635 = vmatpush1.msra.mxu0 %v2613
    %2636 = vmatprep.subr.mxu0 0.0
    %2637 = vmatpush1.msra.mxu0 0.0
    %2638 = vmatprep.subr.mxu0 0.0
    %2639 = vmatpush1.msra.mxu0 0.0
    %2640 = vmatprep.subr.mxu0 0.0
    %2641 = vmatpush1.msra.mxu0 0.0
    %2642 = vmatprep.subr.mxu0 0.0
    %2643 = vmatpush1.msra.mxu0 0.0
    %2644 = vmatprep.subr.mxu0 0.0
    %2645 = vmatpush1.msra.mxu0 0.0
    %2646 = vmatprep.subr.mxu0 0.0
    %2647 = vmatpush1.msra.mxu0 0.0
    %2648 = vmatprep.subr.mxu0 0.0
    %2649 = vmatpush1.msra.mxu0 0.0
    %2650 = vmatprep.subr.mxu0 0.0
    %2651 = vmatpush1.msra.mxu0 0.0
    %2652 = vmatprep.subr.mxu0 0.0
    %2653 = vmatpush1.msra.mxu0 0.0
    %2654 = vmatprep.subr.mxu0 0.0
    %2655 = vmatpush1.msra.mxu0 0.0
    %2656 = vmatprep.subr.mxu0 0.0
    %2657 = vmatpush1.msra.mxu0 0.0
    %2658 = vmatprep.subr.mxu0 0.0
    %2659 = vmatpush1.msra.mxu0 0.0
    %2660 = vmatprep.subr.mxu0 0.0
    %2661 = vmatpush1.msra.mxu0 0.0
    %2662 = vmatprep.subr.mxu0 0.0
    %2663 = vmatpush1.msra.mxu0 0.0
    %2664 = vmatprep.subr.mxu0 0.0
    %2665 = vmatpush1.msra.mxu0 0.0
    %2666 = vmatprep.subr.mxu0 0.0
    %2667 = vmatpush1.msra.mxu0 0.0
    %2668 = vmatprep.subr.mxu0 0.0
    %2669 = vmatpush1.msra.mxu0 0.0
    %2670 = vmatprep.subr.mxu0 0.0
    %2671 = vmatpush1.msra.mxu0 0.0
    %2672 = vmatprep.subr.mxu0 0.0
    %2673 = vmatpush1.msra.mxu0 0.0
    %2674 = vmatprep.subr.mxu0 0.0
    %2675 = vmatpush1.msra.mxu0 0.0
    %2676 = vmatprep.subr.mxu0 0.0
    %2677 = vmatpush1.msra.mxu0 0.0
    %2678 = vmatprep.subr.mxu0 0.0
    %2679 = vmatpush1.msra.mxu0 0.0
    %2680 = vmatprep.subr.mxu0 0.0
    %2681 = vmatpush1.msra.mxu0 0.0
    %2682 = vmatprep.subr.mxu0 0.0
    %2683 = vmatpush1.msra.mxu0 0.0
    %2684 = vmatprep.subr.mxu0 0.0
    %2685 = vmatpush1.msra.mxu0 0.0
    %2686 = vmatprep.subr.mxu0 0.0
    %2687 = vmatpush1.msra.mxu0 0.0
    %2688 = vmatprep.subr.mxu0 0.0
    %2689 = vmatpush1.msra.mxu0 0.0
    %2690 = vmatprep.subr.mxu0 0.0
    %2691 = vmatpush1.msra.mxu0 0.0
    %2692 = vmatprep.mubr.f32.mxu0 0.0
    %2693 = vmatmul.mubr.f32.gmra.mrb[0].mxu0 %v2623
    %v2694 = vpop.f32.mrb[0].mxu0
    %v2695 = vadd.f32 %v2619, %v2694
    %v2696 = vpop.f32.mrb[0].mxu0
    %2697 = vmatprep.mubr.f32.mxu0 0.0
    %2698 = vmatmul.mubr.f32.gmra.mrb[0].mxu0 %v2626
    %v2699 = vpop.f32.mrb[0].mxu0
    %v2700 = vadd.f32 %v2619, %v2699
    %v2701 = vpop.f32.mrb[0].mxu0
    %2702 = vdwg.mxu0
    %v2703 = vld [vmem:[%s6] sm:$0xff]
    %v2704 = vld [vmem:[%s6 + $0x8] sm:$0xff]
    %v2705 = vld [vmem:[%s6 + $0x10] sm:$0xff]
    %v2706 = vld [vmem:[%s6 + $0x18] sm:$0xff]
    %v2707 = vld [vmem:[%s7] sm:$0x1]
    %v2709 = vlaneseq
    %v2710 = vshrl.u32 %v2709, 7
    %v2711 = vsub.s32 0, %v2710
    %v2712 = vrot.slane %v2707, %v2711
    %v2715 = vsel %vm2621, %v2695, 0
    %v2718 = vsel %vm2621, %v2700, 0
    %2720 = vmatprep.subr.mxu0 0.0
    %2721 = vmatpush1.msra.mxu0 %v2703
    %2722 = vmatprep.subr.mxu0 0.0
    %2723 = vmatpush1.msra.mxu0 %v2704
    %2724 = vmatprep.subr.mxu0 0.0
    %2725 = vmatpush1.msra.mxu0 %v2705
    %2726 = vmatprep.subr.mxu0 0.0
    %2727 = vmatpush1.msra.mxu0 %v2706
    %2728 = vmatprep.subr.mxu0 0.0
    %2729 = vmatpush1.msra.mxu0 0.0
    %2730 = vmatprep.subr.mxu0 0.0
    %2731 = vmatpush1.msra.mxu0 0.0
    %2732 = vmatprep.subr.mxu0 0.0
    %2733 = vmatpush1.msra.mxu0 0.0
    %2734 = vmatprep.subr.mxu0 0.0
    %2735 = vmatpush1.msra.mxu0 0.0
    %2736 = vmatprep.subr.mxu0 0.0
    %2737 = vmatpush1.msra.mxu0 0.0
    %2738 = vmatprep.subr.mxu0 0.0
    %2739 = vmatpush1.msra.mxu0 0.0
    %2740 = vmatprep.subr.mxu0 0.0
    %2741 = vmatpush1.msra.mxu0 0.0
    %2742 = vmatprep.subr.mxu0 0.0
    %2743 = vmatpush1.msra.mxu0 0.0
    %2744 = vmatprep.subr.mxu0 0.0
    %2745 = vmatpush1.msra.mxu0 0.0
    %2746 = vmatprep.subr.mxu0 0.0
    %2747 = vmatpush1.msra.mxu0 0.0
    %2748 = vmatprep.subr.mxu0 0.0
    %2749 = vmatpush1.msra.mxu0 0.0
    %2750 = vmatprep.subr.mxu0 0.0
    %2751 = vmatpush1.msra.mxu0 0.0
    %2752 = vmatprep.subr.mxu0 0.0
    %2753 = vmatpush1.msra.mxu0 0.0
    %2754 = vmatprep.subr.mxu0 0.0
    %2755 = vmatpush1.msra.mxu0 0.0
    %2756 = vmatprep.subr.mxu0 0.0
    %2757 = vmatpush1.msra.mxu0 0.0
    %2758 = vmatprep.subr.mxu0 0.0
    %2759 = vmatpush1.msra.mxu0 0.0
    %2760 = vmatprep.subr.mxu0 0.0
    %2761 = vmatpush1.msra.mxu0 0.0
    %2762 = vmatprep.subr.mxu0 0.0
    %2763 = vmatpush1.msra.mxu0 0.0
    %2764 = vmatprep.subr.mxu0 0.0
    %2765 = vmatpush1.msra.mxu0 0.0
    %2766 = vmatprep.subr.mxu0 0.0
    %2767 = vmatpush1.msra.mxu0 0.0
    %2768 = vmatprep.subr.mxu0 0.0
    %2769 = vmatpush1.msra.mxu0 0.0
    %2770 = vmatprep.subr.mxu0 0.0
    %2771 = vmatpush1.msra.mxu0 0.0
    %2772 = vmatprep.subr.mxu0 0.0
    %2773 = vmatpush1.msra.mxu0 0.0
    %2774 = vmatprep.subr.mxu0 0.0
    %2775 = vmatpush1.msra.mxu0 0.0
    %2776 = vmatprep.subr.mxu0 0.0
    %2777 = vmatpush1.msra.mxu0 0.0
    %2778 = vmatprep.subr.mxu0 0.0
    %2779 = vmatpush1.msra.mxu0 0.0
    %2780 = vmatprep.subr.mxu0 0.0
    %2781 = vmatpush1.msra.mxu0 0.0
    %2782 = vmatprep.subr.mxu0 0.0
    %2783 = vmatpush1.msra.mxu0 0.0
    %2784 = vmatprep.mubr.f32.mxu0 0.0
    %2785 = vmatmul.mubr.f32.gmra.mrb[0].mxu0 %v2715
    %v2786 = vpop.f32.mrb[0].mxu0
    %v2787 = vadd.f32 %v2712, %v2786
    %v2788 = vpop.f32.mrb[0].mxu0
    %2789 = vmatprep.mubr.f32.mxu0 0.0
    %2790 = vmatmul.mubr.f32.gmra.mrb[0].mxu0 %v2718
    %v2791 = vpop.f32.mrb[0].mxu0
    %v2792 = vadd.f32 %v2712, %v2791
    %v2793 = vpop.f32.mrb[0].mxu0
    %2794 = vdwg.mxu0
    %2795 = vmax.xlane.f32.xlu0 %v2787
    %v2796 = vpop.xlane.xlu0 %2795
    %v2797 = vsel %vm2471, %v2792, -inf
    %2798 = vmax.xlane.f32.xlu0 %v2797
    %v2799 = vpop.xlane.xlu0 %2798
    %v2800 = vlaneseq
    %v2801 = vand.u32 %v2800, 127
    %vm2802 = vcmp.eq.f32.partialorder %v2787, %v2796
    %vm2803 = vcmp.eq.f32.partialorder %v2792, %v2799
    %v2804 = vsel %vm2802, %v2801, 128
    %v2805 = vsel %vm2803, %v2801, 128
    %v2806 = vand.u32 %v2804, 65535
    %v2807 = vshra.s32 %v2804, 16
    %v2808 = vcvt.s32.f32 %v2806
    %v2809 = vcvt.s32.f32 %v2807
    %2810 = vmin.xlane.f32.xlu0 %v2809
    %v2811 = vpop.xlane.xlu0 %2810
    %vm2812 = vcmp.eq.f32.partialorder %v2809, %v2811
    %v2813 = vsel %vm2812, %v2808, inf
    %2814 = vmin.xlane.f32.xlu0 %v2813
    %v2815 = vpop.xlane.xlu0 %2814
    %v2816 = vcvt.f32.s32 %v2815
    %v2817 = vcvt.f32.s32 %v2811
    %v2818 = vshll.u32 %v2817, 16
    %v2819 = vadd.s32 %v2818, %v2816
    %v2820 = vsel %vm2471, %v2805, 2147483647
    %v2821 = vand.u32 %v2820, 65535
    %v2822 = vshra.s32 %v2820, 16
    %v2823 = vcvt.s32.f32 %v2821
    %v2824 = vcvt.s32.f32 %v2822
    %2825 = vmin.xlane.f32.xlu0 %v2824
    %v2826 = vpop.xlane.xlu0 %2825
    %vm2827 = vcmp.eq.f32.partialorder %v2824, %v2826
    %v2828 = vsel %vm2827, %v2823, inf
    %2829 = vmin.xlane.f32.xlu0 %v2828
    %v2830 = vpop.xlane.xlu0 %2829
    %v2831 = vcvt.f32.s32 %v2830
    %v2832 = vcvt.f32.s32 %v2826
    %v2833 = vshll.u32 %v2832, 16
    %v2834 = vadd.s32 %v2833, %v2831
    %vm2835 = vcmp.eq.s32.totalorder %v2801, %v2819
    %vm2836 = vcmp.eq.s32.totalorder %v2801, %v2834
    %v2837 = vsel %vm2835, 1, 0
    %v2838 = vsel %vm2836, 1, 0
    %v2839 = vcvt.s32.f32 %v2837
    %v2840 = vcvt.s32.f32 %v2838
    %v2841 = vld [vmem:[%s8] sm:$0xff]
    %v2842 = vld [vmem:[%s8 + $0x8] sm:$0xff]
    %v2843 = vld [vmem:[%s8 + $0x10] sm:$0xff]
    %v2844 = vld [vmem:[%s8 + $0x18] sm:$0xff]
    %v2845 = vld [vmem:[%s8 + $0x20] sm:$0xff]
    %v2846 = vld [vmem:[%s8 + $0x28] sm:$0xff]
    %v2847 = vld [vmem:[%s8 + $0x30] sm:$0xff]
    %v2848 = vld [vmem:[%s8 + $0x38] sm:$0xff]
    %v2849 = vld [vmem:[%s8 + $0x40] sm:$0xff]
    %v2850 = vld [vmem:[%s8 + $0x48] sm:$0xff]
    %v2851 = vld [vmem:[%s8 + $0x50] sm:$0xff]
    %v2852 = vld [vmem:[%s8 + $0x58] sm:$0xff]
    %v2853 = vld [vmem:[%s8 + $0x60] sm:$0xff]
    %v2854 = vld [vmem:[%s8 + $0x68] sm:$0xff]
    %v2855 = vld [vmem:[%s8 + $0x70] sm:$0xff]
    %v2856 = vld [vmem:[%s8 + $0x78] sm:$0xff]
    %v2857 = vld [vmem:[%s9] sm:$0x1]
    %v2859 = vlaneseq
    %v2860 = vshrl.u32 %v2859, 7
    %v2861 = vsub.s32 0, %v2860
    %v2862 = vrot.slane %v2857, %v2861
    %2864 = vmatprep.subr.mxu0 0.0
    %2865 = vmatpush1.msra.mxu0 %v2841
    %2866 = vmatprep.subr.mxu0 0.0
    %2867 = vmatpush1.msra.mxu0 %v2842
    %2868 = vmatprep.subr.mxu0 0.0
    %2869 = vmatpush1.msra.mxu0 %v2843
    %2870 = vmatprep.subr.mxu0 0.0
    %2871 = vmatpush1.msra.mxu0 %v2844
    %2872 = vmatprep.subr.mxu0 0.0
    %2873 = vmatpush1.msra.mxu0 %v2845
    %2874 = vmatprep.subr.mxu0 0.0
    %2875 = vmatpush1.msra.mxu0 %v2846
    %2876 = vmatprep.subr.mxu0 0.0
    %2877 = vmatpush1.msra.mxu0 %v2847
    %2878 = vmatprep.subr.mxu0 0.0
    %2879 = vmatpush1.msra.mxu0 %v2848
    %2880 = vmatprep.subr.mxu0 0.0
    %2881 = vmatpush1.msra.mxu0 %v2849
    %2882 = vmatprep.subr.mxu0 0.0
    %2883 = vmatpush1.msra.mxu0 %v2850
    %2884 = vmatprep.subr.mxu0 0.0
    %2885 = vmatpush1.msra.mxu0 %v2851
    %2886 = vmatprep.subr.mxu0 0.0
    %2887 = vmatpush1.msra.mxu0 %v2852
    %2888 = vmatprep.subr.mxu0 0.0
    %2889 = vmatpush1.msra.mxu0 %v2853
    %2890 = vmatprep.subr.mxu0 0.0
    %2891 = vmatpush1.msra.mxu0 %v2854
    %2892 = vmatprep.subr.mxu0 0.0
    %2893 = vmatpush1.msra.mxu0 %v2855
    %2894 = vmatprep.subr.mxu0 0.0
    %2895 = vmatpush1.msra.mxu0 %v2856
    %2896 = vmatprep.subr.mxu0 0.0
    %2897 = vmatpush1.msra.mxu0 0.0
    %2898 = vmatprep.subr.mxu0 0.0
    %2899 = vmatpush1.msra.mxu0 0.0
    %2900 = vmatprep.subr.mxu0 0.0
    %2901 = vmatpush1.msra.mxu0 0.0
    %2902 = vmatprep.subr.mxu0 0.0
    %2903 = vmatpush1.msra.mxu0 0.0
    %2904 = vmatprep.subr.mxu0 0.0
    %2905 = vmatpush1.msra.mxu0 0.0
    %2906 = vmatprep.subr.mxu0 0.0
    %2907 = vmatpush1.msra.mxu0 0.0
    %2908 = vmatprep.subr.mxu0 0.0
    %2909 = vmatpush1.msra.mxu0 0.0
    %2910 = vmatprep.subr.mxu0 0.0
    %2911 = vmatpush1.msra.mxu0 0.0
    %2912 = vmatprep.subr.mxu0 0.0
    %2913 = vmatpush1.msra.mxu0 0.0
    %2914 = vmatprep.subr.mxu0 0.0
    %2915 = vmatpush1.msra.mxu0 0.0
    %2916 = vmatprep.subr.mxu0 0.0
    %2917 = vmatpush1.msra.mxu0 0.0
    %2918 = vmatprep.subr.mxu0 0.0
    %2919 = vmatpush1.msra.mxu0 0.0
    %2920 = vmatprep.subr.mxu0 0.0
    %2921 = vmatpush1.msra.mxu0 0.0
    %2922 = vmatprep.subr.mxu0 0.0
    %2923 = vmatpush1.msra.mxu0 0.0
    %2924 = vmatprep.subr.mxu0 0.0
    %2925 = vmatpush1.msra.mxu0 0.0
    %2926 = vmatprep.subr.mxu0 0.0
    %2927 = vmatpush1.msra.mxu0 0.0
    %2928 = vmatprep.mubr.f32.mxu0 0.0
    %2929 = vmatmul.mubr.f32.gmra.mrb[0].mxu0 %v2839
    %v2930 = vpop.f32.mrb[0].mxu0
    %v2931 = vadd.f32 %v2862, %v2930
    %v2932 = vpop.f32.mrb[0].mxu0
    %2933 = vmatprep.mubr.f32.mxu0 0.0
    %2934 = vmatmul.mubr.f32.gmra.mrb[0].mxu0 %v2840
    %v2935 = vpop.f32.mrb[0].mxu0
    %v2936 = vadd.f32 %v2862, %v2935
    %v2937 = vpop.f32.mrb[0].mxu0
    %2938 = vdwg.mxu0
    %v2939 = vld [vmem:[%s10] sm:$0xff]
    %v2940 = vld [vmem:[%s10 + $0x8] sm:$0xff]
    %v2941 = vld [vmem:[%s10 + $0x10] sm:$0xff]
    %v2942 = vld [vmem:[%s10 + $0x18] sm:$0xff]
    %v2943 = vld [vmem:[%s10 + $0x20] sm:$0xff]
    %v2944 = vld [vmem:[%s10 + $0x28] sm:$0xff]
    %v2945 = vld [vmem:[%s10 + $0x30] sm:$0xff]
    %v2946 = vld [vmem:[%s10 + $0x38] sm:$0xff]
    %v2947 = vld [vmem:[%s11] sm:$0x3]
    %v2949 = vlaneseq
    %v2950 = vshrl.u32 %v2949, 7
    %v2951 = vsub.s32 0, %v2950
    %v2952 = vrot.slane %v2947, %v2951
    %v2953 = vlaneseq
    %v2954 = vshrl.u32 %v2953, 7
    %v2955 = vsub.s32 1, %v2954
    %v2956 = vrot.slane %v2947, %v2955
    %v2960 = vsel %vm2621, %v2931, 0
    %v2963 = vsel %vm2621, %v2936, 0
    %2965 = vmatprep.subr.mxu0 %v2940
    %2966 = vmatpush1.msra.mxu0 %v2939
    %2967 = vmatprep.subr.mxu0 %v2942
    %2968 = vmatpush1.msra.mxu0 %v2941
    %2969 = vmatprep.subr.mxu0 %v2944
    %2970 = vmatpush1.msra.mxu0 %v2943
    %2971 = vmatprep.subr.mxu0 %v2946
    %2972 = vmatpush1.msra.mxu0 %v2945
    %2973 = vmatprep.subr.mxu0 0.0
    %2974 = vmatpush1.msra.mxu0 0.0
    %2975 = vmatprep.subr.mxu0 0.0
    %2976 = vmatpush1.msra.mxu0 0.0
    %2977 = vmatprep.subr.mxu0 0.0
    %2978 = vmatpush1.msra.mxu0 0.0
    %2979 = vmatprep.subr.mxu0 0.0
    %2980 = vmatpush1.msra.mxu0 0.0
    %2981 = vmatprep.subr.mxu0 0.0
    %2982 = vmatpush1.msra.mxu0 0.0
    %2983 = vmatprep.subr.mxu0 0.0
    %2984 = vmatpush1.msra.mxu0 0.0
    %2985 = vmatprep.subr.mxu0 0.0
    %2986 = vmatpush1.msra.mxu0 0.0
    %2987 = vmatprep.subr.mxu0 0.0
    %2988 = vmatpush1.msra.mxu0 0.0
    %2989 = vmatprep.subr.mxu0 0.0
    %2990 = vmatpush1.msra.mxu0 0.0
    %2991 = vmatprep.subr.mxu0 0.0
    %2992 = vmatpush1.msra.mxu0 0.0
    %2993 = vmatprep.subr.mxu0 0.0
    %2994 = vmatpush1.msra.mxu0 0.0
    %2995 = vmatprep.subr.mxu0 0.0
    %2996 = vmatpush1.msra.mxu0 0.0
    %2997 = vmatprep.subr.mxu0 0.0
    %2998 = vmatpush1.msra.mxu0 0.0
    %2999 = vmatprep.subr.mxu0 0.0
    %3000 = vmatpush1.msra.mxu0 0.0
    %3001 = vmatprep.subr.mxu0 0.0
    %3002 = vmatpush1.msra.mxu0 0.0
    %3003 = vmatprep.subr.mxu0 0.0
    %3004 = vmatpush1.msra.mxu0 0.0
    %3005 = vmatprep.subr.mxu0 0.0
    %3006 = vmatpush1.msra.mxu0 0.0
    %3007 = vmatprep.subr.mxu0 0.0
    %3008 = vmatpush1.msra.mxu0 0.0
    %3009 = vmatprep.subr.mxu0 0.0
    %3010 = vmatpush1.msra.mxu0 0.0
    %3011 = vmatprep.subr.mxu0 0.0
    %3012 = vmatpush1.msra.mxu0 0.0
    %3013 = vmatprep.subr.mxu0 0.0
    %3014 = vmatpush1.msra.mxu0 0.0
    %3015 = vmatprep.subr.mxu0 0.0
    %3016 = vmatpush1.msra.mxu0 0.0
    %3017 = vmatprep.subr.mxu0 0.0
    %3018 = vmatpush1.msra.mxu0 0.0
    %3019 = vmatprep.subr.mxu0 0.0
    %3020 = vmatpush1.msra.mxu0 0.0
    %3021 = vmatprep.subr.mxu0 0.0
    %3022 = vmatpush1.msra.mxu0 0.0
    %3023 = vmatprep.subr.mxu0 0.0
    %3024 = vmatpush1.msra.mxu0 0.0
    %3025 = vmatprep.subr.mxu0 0.0
    %3026 = vmatpush1.msra.mxu0 0.0
    %3027 = vmatprep.subr.mxu0 0.0
    %3028 = vmatpush1.msra.mxu0 0.0
    %3029 = vmatprep.mubr.f32.mxu0 0.0
    %3030 = vmatmul.mubr.f32.gmra.mrb[0].mxu0 %v2960
    %v3031 = vpop.f32.mrb[0].mxu0
    %v3032 = vadd.f32 %v2952, %v3031
    %v3033 = vpop.f32.mrb[0].mxu0
    %v3034 = vadd.f32 %v2956, %v3033
    %3035 = vmatprep.mubr.f32.mxu0 0.0
    %3036 = vmatmul.mubr.f32.gmra.mrb[0].mxu0 %v2963
    %v3037 = vpop.f32.mrb[0].mxu0
    %v3038 = vadd.f32 %v2952, %v3037
    %v3039 = vpop.f32.mrb[0].mxu0
    %v3040 = vadd.f32 %v2956, %v3039
    %3041 = vdwg.mxu0
    %v3042 = vmul.f32 %v3032, %v3032
    %v3043 = vmul.f32 %v3034, %v3034
    %v3044 = vmul.f32 %v3038, %v3038
    %v3045 = vmul.f32 %v3040, %v3040
    %v3046 = vsel %vm2466, %v3043, 0.0
    %v3047 = vadd.f32 %v3042, %v3046
    %3048 = vadd.xlane.f32.xlu0 %v3047
    %v3049 = vpop.xlane.xlu0 %3048
    %v3050 = vsel %vm2471, %v3044, 0.0
    %v3051 = vsel %vm2473, %v3045, 0.0
    %v3052 = vadd.f32 %v3050, %v3051
    %3053 = vadd.xlane.f32.xlu0 %v3052
    %v3054 = vpop.xlane.xlu0 %3053
    %v3055 = vadd.f32 %v3049, 1e-16
    %v3056 = vadd.f32 %v3054, 1e-16
    %v3057 = vrsqrt.pop %v3055
    %v3058 = vrsqrt.pop %v3056
    %v3059 = vmul.f32 %v3032, %v3057
    %v3060 = vmul.f32 %v3034, %v3057
    %v3061 = vmul.f32 %v3038, %v3058
    %v3062 = vmul.f32 %v3040, %v3058
    %v3063 = vmul.f32 %v3059, %v2484
    %v3064 = vmul.f32 %v3060, %v2484
    %v3065 = vmul.f32 %v3061, %v2491
    %v3066 = vmul.f32 %v3062, %v2491
    %3067 = vst [vmem:[#allocation2] sm:$0xff] %v3063
    %3068 = vst.msk [vmem:[#allocation2 + $0x8] sm:$0xff] %vm2466, %v3064
    %3069 = vst [vmem:[#allocation2 + $0x10] sm:$0xf] %v3065
    %3070 = vst.msk [vmem:[#allocation2 + $0x18] sm:$0xf] %vm2473, %v3066
    // Predicated region
    $region50: #{tpu_custom_call.1} parent=1 // pred_check
      _
    $region51: #{tpu_custom_call.1} parent=1 // pred_check_branch
      %3072 = sbr.rel (0) target = $region53
    $region52: #{tpu_custom_call.1} parent=1 // pred_region
      %s3074 = ssub.s32 512, 512
      %3075 = vsyncadd [#allocation3], %s3074
      %s3076 = sshll.u32 [#allocation2], 4
      %s3077 = int_to_ptr.vmem [resolvable:$true] %s3076
      %3082 = dma.vmem_to_hbm [thread:$0]  %s3077, 512, %s12, [#allocation3], 256, 256, 16
    $region53: #{tpu_custom_call.1} parent=1 // pred_fallthru
      _
    // Predicated region
    $region54: #{tpu_custom_call.1} parent=1 // pred_check
      _
    $region55: #{tpu_custom_call.1} parent=1 // pred_check_branch
      %3084 = sbr.rel (0) target = $region57
    $region56: #{tpu_custom_call.1} parent=1 // pred_region
      %s3086 = ssub.s32 512, 512
      %3087 = vsyncadd [#allocation5], %s3086
      %s3088 = sshll.u32 [#allocation4], 4
      %s3089 = int_to_ptr.vmem [resolvable:$true] %s3088
      %3094 = dma.vmem_to_hbm [thread:$0]  %s3089, 512, %s13, [#allocation5], 256, 256, 16
    $region57: #{tpu_custom_call.1} parent=1 // pred_fallthru
      _
    // Predicated region
    $region58: #{tpu_custom_call.1} parent=1 // pred_check
      _
    $region59: #{tpu_custom_call.1} parent=1 // pred_check_branch
      %3096 = sbr.rel (0) target = $region61
    $region60: #{tpu_custom_call.1} parent=1 // pred_region
      %3097 = dma.done [#allocation3], 512
    $region61: #{tpu_custom_call.1} parent=1 // pred_fallthru
      _
    // Predicated region
    $region62: #{tpu_custom_call.1} parent=1 // pred_check
      _
    $region63: #{tpu_custom_call.1} parent=1 // pred_check_branch
      %3099 = sbr.rel (0) target = $region65
    $region64: #{tpu_custom_call.1} parent=1 // pred_region
      %3100 = dma.done [#allocation5], 512
    $region65: #{tpu_custom_call.1} parent=1 // pred_fallthru
      _
    %3101 = vsyncpa [#allocation3], 1
    %3102 = vsyncpa [#allocation5], 1

</llo_original>
